<compile_context>
chip_gen: v7x
topology: tpu7x:2x2x1
jax: 0.10.0
libtpu: 0.0.40
codegen_flags: <defaults>
</compile_context>

<pallas_src>
import functools
import math

import jax
import jax.numpy as jnp
from jax import lax
from jax.experimental import pallas as pl
from jax.experimental.pallas import tpu as pltpu

_LAYERS = ("input", "conv1", "conv2", "conv3", "conv4", "conv5", "conv6", "output")
_HIDDEN = 128


def _fused_simplenet_kernel(w0_ref, wcat_ref, x_ref, o_ref, *, H, W, C):
    # w0_ref:   (3, 3C)    f32  -- layer 0 (Cin=1) weights; rows = kx, cols = (ky, co).
    # wcat_ref: (7, 3C, 3C) bf16 -- layers 1..7;            rows = (kx, ci), cols = (ky, co).
    # x_ref:    (1, H*W, 1) f32  -- one image, spatially flattened.
    # o_ref:    (1, H*W, 1) f32
    HW = H * W

    x_col = x_ref[0]                                        # (HW, 1) f32, pre-ReLU residual

    # Column-boundary masks: the +-1 sublane rolls wrap at x == 0 / x == W-1; zero them.
    col = lax.broadcasted_iota(jnp.int32, (HW, C), 0) % W
    is_first_col = col == 0
    is_last_col = col == W - 1
    zrows = jnp.zeros((W, C), jnp.float32)

    def combine_ky(r):
        # r: (HW, 3C) f32 with columns grouped by ky.  out[y] = r_ky0[y-1] + r_ky1[y] + r_ky2[y+1].
        # The +-W row shifts are f32 sublane-tile aligned when W % 8 == 0 (W = 16 here).
        top = jnp.concatenate([zrows, r[:HW - W, 0:C]], axis=0)
        bot = jnp.concatenate([r[W:, 2 * C:3 * C], zrows], axis=0)
        return top + r[:, C:2 * C] + bot                    # (HW, C) f32

    # ---- Layer 0 (input conv, Cin=1): three (HW,1) x (1,3C) f32 outer products (VPU). ----
    a0 = jnp.maximum(x_col, 0.0)                            # (HW, 1) f32
    zrow1 = jnp.zeros((1, 1), jnp.float32)
    l0 = jnp.where(is_first_col[:, :1], 0.0,
                   jnp.concatenate([zrow1, a0[:HW - 1]], axis=0))       # a0[y, x-1]  (kx=0)
    r0 = jnp.where(is_last_col[:, :1], 0.0,
                   jnp.concatenate([a0[1:], zrow1], axis=0))            # a0[y, x+1]  (kx=2)
    r = l0 * w0_ref[0:1, :] + a0 * w0_ref[1:2, :] + r0 * w0_ref[2:3, :]  # (HW, 3C) f32
    h = combine_ky(r)                                       # (HW, C) f32

    # ---- Layers 1..7 (Cin=C): dense per-ky matmul, bf16 operands, f32 accumulation. ----
    def layer(l, h):
        a = jnp.maximum(h, 0.0)                             # ReLU in f32 (VPU)
        left = jnp.where(is_first_col, 0.0, pltpu.roll(a, shift=1, axis=0))       # kx = 0
        right = jnp.where(is_last_col, 0.0, pltpu.roll(a, shift=HW - 1, axis=0))  # kx = 2
        b = jnp.concatenate([left.astype(jnp.bfloat16),
                             a.astype(jnp.bfloat16),
                             right.astype(jnp.bfloat16)], axis=1)        # (HW, 3C) bf16
        r = jnp.dot(b, wcat_ref[l], preferred_element_type=jnp.float32)  # MXU, (HW, 3C) f32
        return combine_ky(r)

    h = lax.fori_loop(0, wcat_ref.shape[0], layer, h)

    # Output layer's single channel lives in lane 0 (other weight columns are zero-padded).
    o_ref[0] = (h[:, 0:1] + x_col).astype(o_ref.dtype)


def init_params(key, d=1, hidden=_HIDDEN):
    """Weights in HWIO (3, 3, Cin, Cout), init matching m.weight.data.normal_(0, sqrt(2/n))."""
    cins = [d] + [hidden] * 7
    couts = [hidden] * 7 + [d]
    params = {}
    for name, cin, cout in zip(_LAYERS, cins, couts):
        key, sub = jax.random.split(key)
        std = math.sqrt(2.0 / (3 * 3 * cout))
        params[name] = jax.random.normal(sub, (3, 3, cin, cout), jnp.float32) * std
    return params


def pack_weights(params, C=_HIDDEN):
    """Pack weights for the per-ky scheme.

    Returns:
      w0:   (3, 3C) f32   -- layer 0 (Cin=1); row = kx, col = ky*C + co.
      wcat: (7, 3C, 3C) bf16 -- layers 1..7; row = kx*C + ci, col = ky*C + co.
    The last layer's single output channel is zero-padded to C so it shares the dense path.
    """
    w_in = params["input"]                                   # (3, 3, 1, C) = (ky, kx, 1, co)
    w0 = jnp.transpose(w_in[:, :, 0, :], (1, 0, 2)).reshape(3, 3 * C).astype(jnp.float32)

    mats = []
    for name in _LAYERS[1:]:
        w = params[name]                                     # (3, 3, cin, cout)
        cin, cout = w.shape[2], w.shape[3]
        w = jnp.pad(w, ((0, 0), (0, 0), (0, C - cin), (0, C - cout)))
        mats.append(jnp.transpose(w, (1, 2, 0, 3)).reshape(3 * C, 3 * C))  # (kx, ci, ky, co)
    wcat = jnp.stack(mats).astype(jnp.bfloat16)
    return w0, wcat


@jax.jit
def simple_net_forward(x_nchw, w0, wcat):
    """x_nchw: (N, 1, H, W) f32 -> (N, 1, H, W) f32. Matches simpleNet(Y=True).forward."""
    N, d, H, W = x_nchw.shape
    # TODO(synk): Y=False (d=3, RGB) input path not implemented; kernel assumes d == 1.
    assert d == 1
    HW = H * W
    C = _HIDDEN
    x_flat = x_nchw.reshape(N, HW, 1)

    kernel = functools.partial(_fused_simplenet_kernel, H=H, W=W, C=C)
    out = pl.pallas_call(
        kernel,
        out_shape=jax.ShapeDtypeStruct((N, HW, 1), x_nchw.dtype),
        grid_spec=pltpu.PrefetchScalarGridSpec(
            num_scalar_prefetch=0,
            grid=(N,),
            in_specs=[
                pl.BlockSpec((3, 3 * C), lambda n: (0, 0)),               # layer-0 weights
                pl.BlockSpec((7, 3 * C, 3 * C), lambda n: (0, 0, 0)),     # dense-layer weights
                pl.BlockSpec((1, HW, 1), lambda n: (n, 0, 0)),            # one image
            ],
            out_specs=pl.BlockSpec((1, HW, 1), lambda n: (n, 0, 0)),
        ),
        compiler_params=pltpu.CompilerParams(
            dimension_semantics=("parallel",),     # v7x: one image per TensorCore for N >= 2
            vmem_limit_bytes=32 * 1024 * 1024,
        ),
    )(w0, wcat, x_flat)
    return out.reshape(N, 1, H, W)


def _ref_forward(x_nchw, params):
    # Pure-JAX reference (f32, HIGHEST precision).
    x = jnp.transpose(x_nchw, (0, 2, 3, 1))                  # NCHW -> NHWC
    out = x
    for name in _LAYERS:
        out = lax.conv_general_dilated(
            jnp.maximum(out, 0.0), params[name], (1, 1), "SAME",
            dimension_numbers=("NHWC", "HWIO", "NHWC"),
            precision=lax.Precision.HIGHEST)
    out = out + x
    return jnp.transpose(out, (0, 3, 1, 2))


if __name__ == "__main__":
    key = jax.random.PRNGKey(0)
    kp, kx = jax.random.split(key)
    params = init_params(kp, d=1)                            # Y=True -> single-channel input
    w0, wcat = pack_weights(params)

    x = jax.random.normal(kx, (2, 1, 16, 16), jnp.float32)

    out = jax.block_until_ready(simple_net_forward(x, w0, wcat))
    assert out.shape == x.shape and out.dtype == x.dtype

    ref = _ref_forward(x, params)
    err = float(jnp.max(jnp.abs(out - ref)))
    scale = float(jnp.max(jnp.abs(ref)))
    # Layers 1..7 use bf16 MXU operands with f32 accumulation vs an f32/HIGHEST reference.
    assert err <= 0.05 * scale + 5e-2, (err, scale)

    print("KERNEL_OK")
</pallas_src>

<mosaic_0001>
module attributes {stable_mosaic.version = 11 : i64} {
  func.func @_fused_simplenet_kernel(%arg0: i32, %arg1: memref<3x384xf32, #tpu.memory_space<vmem>>, %arg2: memref<7x384x384xbf16, #tpu.memory_space<vmem>>, %arg3: memref<1x256x1xf32, #tpu.memory_space<vmem>>, %arg4: memref<1x256x1xf32, #tpu.memory_space<vmem>>) attributes {dimension_semantics = [#tpu.dimension_semantics<parallel>], iteration_bounds = array<i64: 2>, scalar_prefetch = 0 : i64, scratch_operands = 0 : i64, tpu.core_type = #tpu.core_type<tc>, window_params = [{pipeline_mode = #tpu.pipeline_mode<synchronous>, transform_indices = @transform_0, window_bounds = array<i64: 3, 384>}, {pipeline_mode = #tpu.pipeline_mode<synchronous>, transform_indices = @transform_1, window_bounds = array<i64: 7, 384, 384>}, {transform_indices = @transform_2, window_bounds = array<i64: 1, 256, 1>}, {transform_indices = @transform_3, window_bounds = array<i64: 1, 256, 1>}]} {
    %c0 = arith.constant 0 : index
    %c0_0 = arith.constant 0 : index
    %c0_1 = arith.constant 0 : index
    %0 = vector.load %arg3[%c0, %c0_0, %c0_1] : memref<1x256x1xf32, #tpu.memory_space<vmem>>, vector<1x256x1xf32>
    %1 = vector.shape_cast %0 : vector<1x256x1xf32> to vector<256x1xf32>
    %2 = tpu.iota {dimensions = array<i32: 0>} : vector<256x128xi32>
    %c16_i32 = arith.constant 16 : i32
    %c0_i32 = arith.constant 0 : i32
    %3 = arith.cmpi eq, %c16_i32, %c0_i32 : i32
    %c1_i32 = arith.constant 1 : i32
    %4 = arith.select %3, %c1_i32, %c16_i32 : i32
    %5 = vector.broadcast %4 : i32 to vector<256x128xi32>
    %6 = arith.remsi %2, %5 : vector<256x128xi32>
    %c0_i32_2 = arith.constant 0 : i32
    %7 = vector.broadcast %c0_i32_2 : i32 to vector<256x128xi32>
    %8 = arith.cmpi ne, %6, %7 : vector<256x128xi32>
    %c0_i32_3 = arith.constant 0 : i32
    %9 = vector.broadcast %c0_i32_3 : i32 to vector<256x128xi32>
    %10 = arith.cmpi slt, %6, %9 : vector<256x128xi32>
    %c0_i32_4 = arith.constant 0 : i32
    %11 = arith.cmpi slt, %4, %c0_i32_4 : i32
    %12 = vector.broadcast %11 : i1 to vector<256x128xi1>
    %13 = vector.broadcast %12 : vector<256x128xi1> to vector<256x128xi1>
    %14 = arith.xori %10, %13 : vector<256x128xi1>
    %15 = arith.andi %14, %8 : vector<256x128xi1>
    %16 = vector.broadcast %4 : i32 to vector<256x128xi32>
    %17 = arith.addi %6, %16 : vector<256x128xi32>
    %18 = arith.select %15, %17, %6 : vector<256x128xi1>, vector<256x128xi32>
    %c0_i32_5 = arith.constant 0 : i32
    %19 = vector.broadcast %c0_i32_5 : i32 to vector<256x128xi32>
    %20 = arith.cmpi eq, %18, %19 : vector<256x128xi32>
    %c15_i32 = arith.constant 15 : i32
    %21 = vector.broadcast %c15_i32 : i32 to vector<256x128xi32>
    %22 = arith.cmpi eq, %18, %21 : vector<256x128xi32>
    %cst = arith.constant 0.000000e+00 : f32
    %23 = vector.broadcast %cst : f32 to vector<16x128xf32>
    %cst_6 = arith.constant 0.000000e+00 : f32
    %24 = vector.broadcast %cst_6 : f32 to vector<256x1xf32>
    %25 = arith.maximumf %1, %24 : vector<256x1xf32>
    %cst_7 = arith.constant 0.000000e+00 : f32
    %26 = vector.broadcast %cst_7 : f32 to vector<1x1xf32>
    %27 = vector.extract_strided_slice %20 {offsets = [0, 0], sizes = [256, 1], strides = [1, 1]} : vector<256x128xi1> to vector<256x1xi1>
    %28 = vector.extract_strided_slice %25 {offsets = [0, 0], sizes = [255, 1], strides = [1, 1]} : vector<256x1xf32> to vector<255x1xf32>
    %29 = tpu.concatenate %26, %28 in 0 : vector<1x1xf32>, vector<255x1xf32> -> vector<256x1xf32>
    %cst_8 = arith.constant 0.000000e+00 : f32
    %30 = vector.broadcast %cst_8 : f32 to vector<256x1xf32>
    %31 = arith.select %27, %30, %29 : vector<256x1xi1>, vector<256x1xf32>
    %32 = vector.extract_strided_slice %22 {offsets = [0, 0], sizes = [256, 1], strides = [1, 1]} : vector<256x128xi1> to vector<256x1xi1>
    %33 = vector.extract_strided_slice %25 {offsets = [1, 0], sizes = [255, 1], strides = [1, 1]} : vector<256x1xf32> to vector<255x1xf32>
    %34 = tpu.concatenate %33, %26 in 0 : vector<255x1xf32>, vector<1x1xf32> -> vector<256x1xf32>
    %cst_9 = arith.constant 0.000000e+00 : f32
    %35 = vector.broadcast %cst_9 : f32 to vector<256x1xf32>
    %36 = arith.select %32, %35, %34 : vector<256x1xi1>, vector<256x1xf32>
    %c0_10 = arith.constant 0 : index
    %c0_11 = arith.constant 0 : index
    %37 = vector.load %arg1[%c0_10, %c0_11] : memref<3x384xf32, #tpu.memory_space<vmem>>, vector<1x384xf32>
    %38 = vector.broadcast %31 : vector<256x1xf32> to vector<256x384xf32>
    %39 = vector.broadcast %37 : vector<1x384xf32> to vector<256x384xf32>
    %40 = arith.mulf %38, %39 : vector<256x384xf32>
    %c1 = arith.constant 1 : index
    %c0_12 = arith.constant 0 : index
    %41 = vector.load %arg1[%c1, %c0_12] : memref<3x384xf32, #tpu.memory_space<vmem>>, vector<1x384xf32>
    %42 = vector.broadcast %25 : vector<256x1xf32> to vector<256x384xf32>
    %43 = vector.broadcast %41 : vector<1x384xf32> to vector<256x384xf32>
    %44 = arith.mulf %42, %43 : vector<256x384xf32>
    %45 = arith.addf %40, %44 : vector<256x384xf32>
    %c2 = arith.constant 2 : index
    %c0_13 = arith.constant 0 : index
    %46 = vector.load %arg1[%c2, %c0_13] : memref<3x384xf32, #tpu.memory_space<vmem>>, vector<1x384xf32>
    %47 = vector.broadcast %36 : vector<256x1xf32> to vector<256x384xf32>
    %48 = vector.broadcast %46 : vector<1x384xf32> to vector<256x384xf32>
    %49 = arith.mulf %47, %48 : vector<256x384xf32>
    %50 = arith.addf %45, %49 : vector<256x384xf32>
    %51 = vector.extract_strided_slice %50 {offsets = [0, 0], sizes = [240, 128], strides = [1, 1]} : vector<256x384xf32> to vector<240x128xf32>
    %52 = tpu.concatenate %23, %51 in 0 : vector<16x128xf32>, vector<240x128xf32> -> vector<256x128xf32>
    %53 = vector.extract_strided_slice %50 {offsets = [16, 256], sizes = [240, 128], strides = [1, 1]} : vector<256x384xf32> to vector<240x128xf32>
    %54 = tpu.concatenate %53, %23 in 0 : vector<240x128xf32>, vector<16x128xf32> -> vector<256x128xf32>
    %55 = vector.extract_strided_slice %50 {offsets = [0, 128], sizes = [256, 128], strides = [1, 1]} : vector<256x384xf32> to vector<256x128xf32>
    %56 = arith.addf %52, %55 : vector<256x128xf32>
    %57 = arith.addf %56, %54 : vector<256x128xf32>
    %c0_i32_14 = arith.constant 0 : i32
    %c7_i32 = arith.constant 7 : i32
    %58 = arith.addi %c0_i32_14, %c7_i32 : i32
    %c1_i32_15 = arith.constant 1 : i32
    %59 = scf.for %arg5 = %c0_i32_14 to %58 step %c1_i32_15 iter_args(%arg6 = %57) -> (vector<256x128xf32>)  : i32 {
      %cst_20 = arith.constant 0.000000e+00 : f32
      %65 = vector.broadcast %cst_20 : f32 to vector<256x128xf32>
      %66 = arith.maximumf %arg6, %65 : vector<256x128xf32>
      %c1_i32_21 = arith.constant 1 : i32
      %67 = tpu.dynamic_rotate %66 by %c1_i32_21 dim 0 : vector<256x128xf32>, i32 -> vector<256x128xf32>
      %cst_22 = arith.constant 0.000000e+00 : f32
      %68 = vector.broadcast %cst_22 : f32 to vector<256x128xf32>
      %69 = arith.select %20, %68, %67 : vector<256x128xi1>, vector<256x128xf32>
      %c255_i32 = arith.constant 255 : i32
      %70 = tpu.dynamic_rotate %66 by %c255_i32 dim 0 : vector<256x128xf32>, i32 -> vector<256x128xf32>
      %cst_23 = arith.constant 0.000000e+00 : f32
      %71 = vector.broadcast %cst_23 : f32 to vector<256x128xf32>
      %72 = arith.select %22, %71, %70 : vector<256x128xi1>, vector<256x128xf32>
      %73 = arith.truncf %69 : vector<256x128xf32> to vector<256x128xbf16>
      %74 = arith.truncf %66 : vector<256x128xf32> to vector<256x128xbf16>
      %75 = arith.truncf %72 : vector<256x128xf32> to vector<256x128xbf16>
      %76 = tpu.concatenate %73, %74, %75 in 1 : vector<256x128xbf16>, vector<256x128xbf16>, vector<256x128xbf16> -> vector<256x384xbf16>
      %77 = arith.index_cast %arg5 : i32 to index
      %c0_24 = arith.constant 0 : index
      %c0_25 = arith.constant 0 : index
      %78 = vector.load %arg2[%77, %c0_24, %c0_25] : memref<7x384x384xbf16, #tpu.memory_space<vmem>>, vector<1x384x384xbf16>
      %79 = vector.shape_cast %78 : vector<1x384x384xbf16> to vector<384x384xbf16>
      %cst_26 = arith.constant dense<0.000000e+00> : vector<256x384xf32>
      %80 = tpu.matmul %76, %79, %cst_26 {dimension_numbers = #tpu.dot_dimension_numbers<[1], [0], [0], [1], [0, 0, 1, 1], [], []>} : vector<256x384xbf16>, vector<384x384xbf16>, vector<256x384xf32> -> vector<256x384xf32>
      %81 = vector.extract_strided_slice %80 {offsets = [0, 0], sizes = [240, 128], strides = [1, 1]} : vector<256x384xf32> to vector<240x128xf32>
      %82 = tpu.concatenate %23, %81 in 0 : vector<16x128xf32>, vector<240x128xf32> -> vector<256x128xf32>
      %83 = vector.extract_strided_slice %80 {offsets = [16, 256], sizes = [240, 128], strides = [1, 1]} : vector<256x384xf32> to vector<240x128xf32>
      %84 = tpu.concatenate %83, %23 in 0 : vector<240x128xf32>, vector<16x128xf32> -> vector<256x128xf32>
      %85 = vector.extract_strided_slice %80 {offsets = [0, 128], sizes = [256, 128], strides = [1, 1]} : vector<256x384xf32> to vector<256x128xf32>
      %86 = arith.addf %82, %85 : vector<256x128xf32>
      %87 = arith.addf %86, %84 : vector<256x128xf32>
      scf.yield %87 : vector<256x128xf32>
    }
    %c7_i32_16 = arith.constant 7 : i32
    %60 = vector.extract_strided_slice %59 {offsets = [0, 0], sizes = [256, 1], strides = [1, 1]} : vector<256x128xf32> to vector<256x1xf32>
    %61 = arith.addf %60, %1 : vector<256x1xf32>
    %c0_17 = arith.constant 0 : index
    %c0_18 = arith.constant 0 : index
    %c0_19 = arith.constant 0 : index
    %62 = vector.load %arg4[%c0_17, %c0_18, %c0_19] : memref<1x256x1xf32, #tpu.memory_space<vmem>>, vector<1x256x1xf32>
    %63 = vector.shape_cast %62 : vector<1x256x1xf32> to vector<256x1xf32>
    %64 = vector.shape_cast %61 : vector<256x1xf32> to vector<1x256x1xf32>
    tpu.vector_store %arg4[%c0_17, %c0_18, %c0_19], %64 {strides = array<i32>} : memref<1x256x1xf32, #tpu.memory_space<vmem>>, vector<1x256x1xf32>,
    return
  }
  func.func @transform_0(%arg0: i32) -> (i32, i32) {
    %c0_i32 = arith.constant 0 : i32
    %c0_i32_0 = arith.constant 0 : i32
    %c0_i32_1 = arith.constant 0 : i32
    return %c0_i32, %c0_i32_0 : i32, i32
  }
  func.func @transform_1(%arg0: i32) -> (i32, i32, i32) {
    %c0_i32 = arith.constant 0 : i32
    %c0_i32_0 = arith.constant 0 : i32
    %c0_i32_1 = arith.constant 0 : i32
    %c0_i32_2 = arith.constant 0 : i32
    return %c0_i32, %c0_i32_0, %c0_i32_1 : i32, i32, i32
  }
  func.func @transform_2(%arg0: i32) -> (i32, i32, i32) {
    %c0_i32 = arith.constant 0 : i32
    %c0_i32_0 = arith.constant 0 : i32
    %c0_i32_1 = arith.constant 0 : i32
    return %arg0, %c0_i32, %c0_i32_0 : i32, i32, i32
  }
  func.func @transform_3(%arg0: i32) -> (i32, i32, i32) {
    %c0_i32 = arith.constant 0 : i32
    %c0_i32_0 = arith.constant 0 : i32
    %c0_i32_1 = arith.constant 0 : i32
    return %arg0, %c0_i32, %c0_i32_0 : i32, i32, i32
  }
}

</mosaic_0001>

<llo_original>
// kernel: simple_net_forward.1
$region0: #{simple_net_forward.1}
  #allocation0 [shape = 'u32[]', space=smem, size = 0x4, offset = 0x4, fixed_abs, tag = 'smem constant byte address 0x4 - core index']
  #allocation1 [shape = 'u32[144,128]{1,0:T(1,128)}', space=vmem, size = 0x12000, scoped, tag = 'internal scratch']
  %s0 = inlined_call_operand.hbm [shape: f32[3,384], index: 0, kind: input, shape index: {}]
  %s1 = inlined_call_operand.hbm [shape: bf16[7,384,384], index: 1, kind: input, shape index: {}]
  %s2 = inlined_call_operand.vmem [shape: f32[2,256,1], index: 2, kind: input, shape index: {}]
  %s3 = inlined_call_operand.vmem [shape: f32[2,256,1], index: 3, kind: output, shape index: {}]
  %s4 = sld [smem:[#allocation0]]
  $region60: #{simple_net_forward.1} parent=0
    _
  %s6 = ssub.s32 1, %s4
  %s7 = scalar_select 0, %s6, %s4
  $region1: #{simple_net_forward.1} parent=0
    #allocation2 [shape = 'u8[6144]{0}', space=vmem, size = 0x1800, scoped, tag = 'input window, operand 0, single buffered']
    #allocation3 [shape = 's32[2]{0}', space=sflag, size = 0x8, scoped, tag = 'scoped memory for simple_net_forward.1']
    #allocation4 [shape = 'u8[2064384]{0}', space=vmem, size = 0x1f8000, scoped, tag = 'input window, operand 1, single buffered']
    #allocation5 [shape = 's32[1]{0}', space=sflag, size = 0x4, scoped, tag = 'scoped memory for simple_net_forward.1']
    %8 = vsyncpa [#allocation3], 0
    %9 = vsyncpa [#allocation5], 0
    loop: start=0, step=1, limit=4
    $region2: #{simple_net_forward.1} parent=1 // loop_pre_header
      _
    $region3: #{simple_net_forward.1} parent=1 // loop_header
      %s11 = sphi 0, %s15
      %p12 = scmp.ge.s32.totalorder %s11, 4
      %s19 = sphi 0, %s19
      %s21 = sphi 0, %s19
      %s22 = sphi 0, %s21
      %s36 = sphi 0, %s22
      %s40 = sphi 0, %s40
      %s42 = sphi 0, %s40
      %s43 = sphi 0, %s42
      %s57 = sphi 0, %s43
      %s63 = sphi 0, %s65
      %s66 = sphi 0, %s63
      %s67 = sphi 0, %s66
      %s83 = sphi 0, %s67
      %s89 = sphi 0, %s91
      %s92 = sphi 0, %s89
      %s93 = sphi 0, %s92
      %s109 = sphi 0, %s93
    $region4: #{simple_net_forward.1} parent=1 // loop_header_branch
      %14 = sbr.rel (%p12) target = $region8
    $region5: #{simple_net_forward.1} parent=1 // loop_body
      %s16 = ssub.s32 %s11, 1
      %s17 = ssub.s32 %s11, 2
      %s18 = sadd.s32 %s11, 1
      %s20 = sadd.s32 %s19, 1
      %p23 = scmp.eq.s32.totalorder %s11, 1
      %p24 = scmp.ne.s32.totalorder %s19, %s21
      %p25 = scmp.eq.s32.totalorder %s11, 0
      %p26 = por %p24, %p25
      %p27 = scmp.ne.s32.totalorder %s19, %s21
      %p28 = scmp.eq.s32.totalorder %s16, 1
      %p29 = por %p27, %p28
      %p30 = scmp.ne.s32.totalorder %s21, %s22
      %p31 = scmp.eq.s32.totalorder %s16, 0
      %p32 = por %p30, %p31
      %p33 = scmp.ne.s32.totalorder %s21, %s22
      %p34 = scmp.eq.s32.totalorder %s17, 1
      %p35 = por %p33, %p34
      %p37 = scmp.ne.s32.totalorder %s22, %s36
      %p38 = scmp.eq.s32.totalorder %s17, 0
      %p39 = por %p37, %p38
      %s41 = sadd.s32 %s40, 1
      %p44 = scmp.eq.s32.totalorder %s11, 1
      %p45 = scmp.ne.s32.totalorder %s40, %s42
      %p46 = scmp.eq.s32.totalorder %s11, 0
      %p47 = por %p45, %p46
      %p48 = scmp.ne.s32.totalorder %s40, %s42
      %p49 = scmp.eq.s32.totalorder %s16, 1
      %p50 = por %p48, %p49
      %p51 = scmp.ne.s32.totalorder %s42, %s43
      %p52 = scmp.eq.s32.totalorder %s16, 0
      %p53 = por %p51, %p52
      %p54 = scmp.ne.s32.totalorder %s42, %s43
      %p55 = scmp.eq.s32.totalorder %s17, 1
      %p56 = por %p54, %p55
      %p58 = scmp.ne.s32.totalorder %s43, %s57
      %p59 = scmp.eq.s32.totalorder %s17, 0
      %p60 = por %p58, %p59
      %s61 = ssub.s32 %s11, %s18
      %p62 = scmp.eq.s32.totalorder %s61, 0
      %s64 = sadd.s32 %s63, 1
      %s65 = scalar_select %p62, %s63, %s64
      %p68 = pneg %p62
      %p69 = scmp.eq.s32.totalorder %s11, 1
      %p70 = por %p68, %p69
      %p71 = scmp.ne.s32.totalorder %s63, %s66
      %p72 = scmp.eq.s32.totalorder %s11, 0
      %p73 = por %p71, %p72
      %p74 = scmp.ne.s32.totalorder %s63, %s66
      %p75 = scmp.eq.s32.totalorder %s16, 1
      %p76 = por %p74, %p75
      %p77 = scmp.ne.s32.totalorder %s66, %s67
      %p78 = scmp.eq.s32.totalorder %s16, 0
      %p79 = por %p77, %p78
      %p80 = scmp.ne.s32.totalorder %s66, %s67
      %p81 = scmp.eq.s32.totalorder %s17, 1
      %p82 = por %p80, %p81
      %p84 = scmp.ne.s32.totalorder %s67, %s83
      %p85 = scmp.eq.s32.totalorder %s17, 0
      %p86 = por %p84, %p85
      %s87 = ssub.s32 %s11, %s18
      %p88 = scmp.eq.s32.totalorder %s87, 0
      %s90 = sadd.s32 %s89, 1
      %s91 = scalar_select %p88, %s89, %s90
      %p94 = pneg %p88
      %p95 = scmp.eq.s32.totalorder %s11, 1
      %p96 = por %p94, %p95
      %p97 = scmp.ne.s32.totalorder %s89, %s92
      %p98 = scmp.eq.s32.totalorder %s11, 0
      %p99 = por %p97, %p98
      %p100 = scmp.ne.s32.totalorder %s89, %s92
      %p101 = scmp.eq.s32.totalorder %s16, 1
      %p102 = por %p100, %p101
      %p103 = scmp.ne.s32.totalorder %s92, %s93
      %p104 = scmp.eq.s32.totalorder %s16, 0
      %p105 = por %p103, %p104
      %p106 = scmp.ne.s32.totalorder %s92, %s93
      %p107 = scmp.eq.s32.totalorder %s17, 1
      %p108 = por %p106, %p107
      %p110 = scmp.ne.s32.totalorder %s93, %s109
      %p111 = scmp.eq.s32.totalorder %s17, 0
      %p112 = por %p110, %p111
      %p113 = scmp.le.s32.totalorder 1, %s11
      %p114 = scmp.lt.s32.totalorder %s11, 3
      %p115 = pnand %p113, %p114
      %p116 = pneg %p115
      // Predicated region
      $region9: #{simple_net_forward.1} parent=5 // pred_check
        _
      $region10: #{simple_net_forward.1} parent=5 // pred_check_branch
        %118 = sbr.rel (%p115) target = $region12
      $region11: #{simple_net_forward.1} parent=5 // pred_region
        %s119 = ssub.s32 %s11, 1
        // Predicated region
        $region13: #{simple_net_forward.1} parent=11 // pred_check
          %p120 = pneg %p32
        $region14: #{simple_net_forward.1} parent=11 // pred_check_branch
          %122 = sbr.rel (%p120) target = $region16
        $region15: #{simple_net_forward.1} parent=11 // pred_region
          %s124 = ssub.s32 192, 192
          %125 = vsyncadd [#allocation3], %s124
          %s127 = sshll.u32 [#allocation2], 4
          %s128 = int_to_ptr.vmem [resolvable:$true] %s127
          %130 = dma.hbm_to_vmem [thread:$0]  %s0, 192, %s128, [#allocation3]
        $region16: #{simple_net_forward.1} parent=11 // pred_fallthru
          _
        // Predicated region
        $region17: #{simple_net_forward.1} parent=11 // pred_check
          %p131 = pneg %p53
        $region18: #{simple_net_forward.1} parent=11 // pred_check_branch
          %133 = sbr.rel (%p131) target = $region20
        $region19: #{simple_net_forward.1} parent=11 // pred_region
          %s135 = ssub.s32 64512, 64512
          %136 = vsyncadd [#allocation5], %s135
          %s137 = sshll.u32 [#allocation4], 4
          %s138 = int_to_ptr.vmem [resolvable:$true] %s137
          %143 = dma.hbm_to_vmem [thread:$0]  %s1, 64512, %s138, [#allocation5], 192, 192, 12
        $region20: #{simple_net_forward.1} parent=11 // pred_fallthru
          _
      $region12: #{simple_net_forward.1} parent=5 // pred_fallthru
        _
      %p144 = scmp.lt.s32.totalorder %s11, 2
      // Predicated region
      $region21: #{simple_net_forward.1} parent=5 // pred_check
        %p145 = pneg %p144
      $region22: #{simple_net_forward.1} parent=5 // pred_check_branch
        %147 = sbr.rel (%p145) target = $region24
      $region23: #{simple_net_forward.1} parent=5 // pred_region
        // Predicated region
        $region25: #{simple_net_forward.1} parent=23 // pred_check
          %p148 = pneg %p73
        $region26: #{simple_net_forward.1} parent=23 // pred_check_branch
          %150 = sbr.rel (%p148) target = $region28
        $region27: #{simple_net_forward.1} parent=23 // pred_region
          %p151 = scmp.lt.s32.totalorder %s11, 1
          %s152 = scalar_select %p151, %s11, 1
          %s153 = smul.addr %s152, 32
          %s154 = smul.addr %s153, 8
          %s155 = scalar_lea.vmem %s2, %s154
        $region28: #{simple_net_forward.1} parent=23 // pred_fallthru
          _
      $region24: #{simple_net_forward.1} parent=5 // pred_fallthru
        _
      %p156 = scmp.le.s32.totalorder 1, %s11
      %p157 = scmp.lt.s32.totalorder %s11, 3
      %p158 = pnand %p156, %p157
      %p159 = pneg %p158
      // Predicated region
      $region29: #{simple_net_forward.1} parent=5 // pred_check
        _
      $region30: #{simple_net_forward.1} parent=5 // pred_check_branch
        %161 = sbr.rel (%p158) target = $region32
      $region31: #{simple_net_forward.1} parent=5 // pred_region
        %s162 = ssub.s32 %s11, 1
        // Predicated region
        $region33: #{simple_net_forward.1} parent=31 // pred_check
          %p163 = pneg %p32
        $region34: #{simple_net_forward.1} parent=31 // pred_check_branch
          %165 = sbr.rel (%p163) target = $region36
        $region35: #{simple_net_forward.1} parent=31 // pred_region
          %166 = dma.done [#allocation3], 192
        $region36: #{simple_net_forward.1} parent=31 // pred_fallthru
          _
        // Predicated region
        $region37: #{simple_net_forward.1} parent=31 // pred_check
          %p167 = pneg %p53
        $region38: #{simple_net_forward.1} parent=31 // pred_check_branch
          %169 = sbr.rel (%p167) target = $region40
        $region39: #{simple_net_forward.1} parent=31 // pred_region
          %170 = dma.done [#allocation5], 64512
        $region40: #{simple_net_forward.1} parent=31 // pred_fallthru
          _
        %p171 = pneg %p32
        %p172 = pneg %p29
        %p173 = pneg %p53
        %p174 = pneg %p50
        %p175 = scmp.lt.s32.totalorder %s16, 1
        %s176 = scalar_select %p175, %s16, 1
        %s177 = smul.addr %s176, 32
        %s178 = smul.addr %s177, 8
        %s179 = scalar_lea.vmem %s2, %s178
        %p180 = pneg %p79
        %p181 = pneg %p76
        %p182 = pneg %p105
        %p183 = pneg %p102
        %p184 = scmp.lt.s32.totalorder %s16, 1
        %s185 = scalar_select %p184, %s16, 1
        %s186 = smul.addr %s185, 32
        %s187 = smul.addr %s186, 8
        %s188 = scalar_lea.vmem %s3, %s187
        %p189 = scmp.lt.s32.totalorder %s16, 1
        %s190 = scalar_select %p189, %s16, 1
        %s191 = smul.addr %s190, 32
        %s192 = smul.addr %s191, 8
        %s193 = scalar_lea.vmem %s2, %s192
        %p194 = scmp.lt.s32.totalorder %s16, 1
        %s195 = scalar_select %p194, %s16, 1
        %s196 = smul.addr %s195, 32
        %s197 = smul.addr %s196, 8
        %s198 = scalar_lea.vmem %s3, %s197
        %v200 = vld [vmem:[%s193] sm:$0xff]
        %v201 = vld [vmem:[%s193 + $0x8] sm:$0xff]
        %v202 = vld [vmem:[%s193 + $0x10] sm:$0xff]
        %v203 = vld [vmem:[%s193 + $0x18] sm:$0xff]
        %v204 = vld [vmem:[%s193 + $0x20] sm:$0xff]
        %v205 = vld [vmem:[%s193 + $0x28] sm:$0xff]
        %v206 = vld [vmem:[%s193 + $0x30] sm:$0xff]
        %v207 = vld [vmem:[%s193 + $0x38] sm:$0xff]
        %v208 = vld [vmem:[%s193 + $0x40] sm:$0xff]
        %v209 = vld [vmem:[%s193 + $0x48] sm:$0xff]
        %v210 = vld [vmem:[%s193 + $0x50] sm:$0xff]
        %v211 = vld [vmem:[%s193 + $0x58] sm:$0xff]
        %v212 = vld [vmem:[%s193 + $0x60] sm:$0xff]
        %v213 = vld [vmem:[%s193 + $0x68] sm:$0xff]
        %v214 = vld [vmem:[%s193 + $0x70] sm:$0xff]
        %v215 = vld [vmem:[%s193 + $0x78] sm:$0xff]
        %v216 = vld [vmem:[%s193 + $0x80] sm:$0xff]
        %v217 = vld [vmem:[%s193 + $0x88] sm:$0xff]
        %v218 = vld [vmem:[%s193 + $0x90] sm:$0xff]
        %v219 = vld [vmem:[%s193 + $0x98] sm:$0xff]
        %v220 = vld [vmem:[%s193 + $0xa0] sm:$0xff]
        %v221 = vld [vmem:[%s193 + $0xa8] sm:$0xff]
        %v222 = vld [vmem:[%s193 + $0xb0] sm:$0xff]
        %v223 = vld [vmem:[%s193 + $0xb8] sm:$0xff]
        %v224 = vld [vmem:[%s193 + $0xc0] sm:$0xff]
        %v225 = vld [vmem:[%s193 + $0xc8] sm:$0xff]
        %v226 = vld [vmem:[%s193 + $0xd0] sm:$0xff]
        %v227 = vld [vmem:[%s193 + $0xd8] sm:$0xff]
        %v228 = vld [vmem:[%s193 + $0xe0] sm:$0xff]
        %v229 = vld [vmem:[%s193 + $0xe8] sm:$0xff]
        %v230 = vld [vmem:[%s193 + $0xf0] sm:$0xff]
        %v231 = vld [vmem:[%s193 + $0xf8] sm:$0xff]
        %v232 = vlaneseq
        %v233 = vshrl.u32 %v232, 7
        %v234 = vadd.s32 %v233, 8
        %v235 = vadd.s32 %v233, 16
        %v236 = vadd.s32 %v233, 24
        %v237 = vadd.s32 %v233, 32
        %v238 = vadd.s32 %v233, 40
        %v239 = vadd.s32 %v233, 48
        %v240 = vadd.s32 %v233, 56
        %v241 = vadd.s32 %v233, 64
        %v242 = vadd.s32 %v233, 72
        %v243 = vadd.s32 %v233, 80
        %v244 = vadd.s32 %v233, 88
        %v245 = vadd.s32 %v233, 96
        %v246 = vadd.s32 %v233, 104
        %v247 = vadd.s32 %v233, 112
        %v248 = vadd.s32 %v233, 120
        %v249 = vadd.s32 %v233, 128
        %v250 = vadd.s32 %v233, 136
        %v251 = vadd.s32 %v233, 144
        %v252 = vadd.s32 %v233, 152
        %v253 = vadd.s32 %v233, 160
        %v254 = vadd.s32 %v233, 168
        %v255 = vadd.s32 %v233, 176
        %v256 = vadd.s32 %v233, 184
        %v257 = vadd.s32 %v233, 192
        %v258 = vadd.s32 %v233, 200
        %v259 = vadd.s32 %v233, 208
        %v260 = vadd.s32 %v233, 216
        %v261 = vadd.s32 %v233, 224
        %v262 = vadd.s32 %v233, 232
        %v263 = vadd.s32 %v233, 240
        %v264 = vadd.s32 %v233, 248
        %vm265 = vcmp.lt.s32.totalorder %v233, 0
        %v266 = vsub.s32 0, %v233
        %v267 = vsel %vm265, %v266, %v233
        %v268 = vshrl.u32 %v267, 4
        %v269 = vand.u32 %v267, 15
        %v270 = vsub.s32 0, %v269
        %v271 = vsel %vm265, %v270, %v269
        %vm272 = vcmp.lt.s32.totalorder %v234, 0
        %v273 = vsub.s32 0, %v234
        %v274 = vsel %vm272, %v273, %v234
        %v275 = vshrl.u32 %v274, 4
        %v276 = vand.u32 %v274, 15
        %v277 = vsub.s32 0, %v276
        %v278 = vsel %vm272, %v277, %v276
        %vm279 = vcmp.lt.s32.totalorder %v235, 0
        %v280 = vsub.s32 0, %v235
        %v281 = vsel %vm279, %v280, %v235
        %v282 = vshrl.u32 %v281, 4
        %v283 = vand.u32 %v281, 15
        %v284 = vsub.s32 0, %v283
        %v285 = vsel %vm279, %v284, %v283
        %vm286 = vcmp.lt.s32.totalorder %v236, 0
        %v287 = vsub.s32 0, %v236
        %v288 = vsel %vm286, %v287, %v236
        %v289 = vshrl.u32 %v288, 4
        %v290 = vand.u32 %v288, 15
        %v291 = vsub.s32 0, %v290
        %v292 = vsel %vm286, %v291, %v290
        %vm293 = vcmp.lt.s32.totalorder %v237, 0
        %v294 = vsub.s32 0, %v237
        %v295 = vsel %vm293, %v294, %v237
        %v296 = vshrl.u32 %v295, 4
        %v297 = vand.u32 %v295, 15
        %v298 = vsub.s32 0, %v297
        %v299 = vsel %vm293, %v298, %v297
        %vm300 = vcmp.lt.s32.totalorder %v238, 0
        %v301 = vsub.s32 0, %v238
        %v302 = vsel %vm300, %v301, %v238
        %v303 = vshrl.u32 %v302, 4
        %v304 = vand.u32 %v302, 15
        %v305 = vsub.s32 0, %v304
        %v306 = vsel %vm300, %v305, %v304
        %vm307 = vcmp.lt.s32.totalorder %v239, 0
        %v308 = vsub.s32 0, %v239
        %v309 = vsel %vm307, %v308, %v239
        %v310 = vshrl.u32 %v309, 4
        %v311 = vand.u32 %v309, 15
        %v312 = vsub.s32 0, %v311
        %v313 = vsel %vm307, %v312, %v311
        %vm314 = vcmp.lt.s32.totalorder %v240, 0
        %v315 = vsub.s32 0, %v240
        %v316 = vsel %vm314, %v315, %v240
        %v317 = vshrl.u32 %v316, 4
        %v318 = vand.u32 %v316, 15
        %v319 = vsub.s32 0, %v318
        %v320 = vsel %vm314, %v319, %v318
        %vm321 = vcmp.lt.s32.totalorder %v241, 0
        %v322 = vsub.s32 0, %v241
        %v323 = vsel %vm321, %v322, %v241
        %v324 = vshrl.u32 %v323, 4
        %v325 = vand.u32 %v323, 15
        %v326 = vsub.s32 0, %v325
        %v327 = vsel %vm321, %v326, %v325
        %vm328 = vcmp.lt.s32.totalorder %v242, 0
        %v329 = vsub.s32 0, %v242
        %v330 = vsel %vm328, %v329, %v242
        %v331 = vshrl.u32 %v330, 4
        %v332 = vand.u32 %v330, 15
        %v333 = vsub.s32 0, %v332
        %v334 = vsel %vm328, %v333, %v332
        %vm335 = vcmp.lt.s32.totalorder %v243, 0
        %v336 = vsub.s32 0, %v243
        %v337 = vsel %vm335, %v336, %v243
        %v338 = vshrl.u32 %v337, 4
        %v339 = vand.u32 %v337, 15
        %v340 = vsub.s32 0, %v339
        %v341 = vsel %vm335, %v340, %v339
        %vm342 = vcmp.lt.s32.totalorder %v244, 0
        %v343 = vsub.s32 0, %v244
        %v344 = vsel %vm342, %v343, %v244
        %v345 = vshrl.u32 %v344, 4
        %v346 = vand.u32 %v344, 15
        %v347 = vsub.s32 0, %v346
        %v348 = vsel %vm342, %v347, %v346
        %vm349 = vcmp.lt.s32.totalorder %v245, 0
        %v350 = vsub.s32 0, %v245
        %v351 = vsel %vm349, %v350, %v245
        %v352 = vshrl.u32 %v351, 4
        %v353 = vand.u32 %v351, 15
        %v354 = vsub.s32 0, %v353
        %v355 = vsel %vm349, %v354, %v353
        %vm356 = vcmp.lt.s32.totalorder %v246, 0
        %v357 = vsub.s32 0, %v246
        %v358 = vsel %vm356, %v357, %v246
        %v359 = vshrl.u32 %v358, 4
        %v360 = vand.u32 %v358, 15
        %v361 = vsub.s32 0, %v360
        %v362 = vsel %vm356, %v361, %v360
        %vm363 = vcmp.lt.s32.totalorder %v247, 0
        %v364 = vsub.s32 0, %v247
        %v365 = vsel %vm363, %v364, %v247
        %v366 = vshrl.u32 %v365, 4
        %v367 = vand.u32 %v365, 15
        %v368 = vsub.s32 0, %v367
        %v369 = vsel %vm363, %v368, %v367
        %vm370 = vcmp.lt.s32.totalorder %v248, 0
        %v371 = vsub.s32 0, %v248
        %v372 = vsel %vm370, %v371, %v248
        %v373 = vshrl.u32 %v372, 4
        %v374 = vand.u32 %v372, 15
        %v375 = vsub.s32 0, %v374
        %v376 = vsel %vm370, %v375, %v374
        %vm377 = vcmp.lt.s32.totalorder %v249, 0
        %v378 = vsub.s32 0, %v249
        %v379 = vsel %vm377, %v378, %v249
        %v380 = vshrl.u32 %v379, 4
        %v381 = vand.u32 %v379, 15
        %v382 = vsub.s32 0, %v381
        %v383 = vsel %vm377, %v382, %v381
        %vm384 = vcmp.lt.s32.totalorder %v250, 0
        %v385 = vsub.s32 0, %v250
        %v386 = vsel %vm384, %v385, %v250
        %v387 = vshrl.u32 %v386, 4
        %v388 = vand.u32 %v386, 15
        %v389 = vsub.s32 0, %v388
        %v390 = vsel %vm384, %v389, %v388
        %vm391 = vcmp.lt.s32.totalorder %v251, 0
        %v392 = vsub.s32 0, %v251
        %v393 = vsel %vm391, %v392, %v251
        %v394 = vshrl.u32 %v393, 4
        %v395 = vand.u32 %v393, 15
        %v396 = vsub.s32 0, %v395
        %v397 = vsel %vm391, %v396, %v395
        %vm398 = vcmp.lt.s32.totalorder %v252, 0
        %v399 = vsub.s32 0, %v252
        %v400 = vsel %vm398, %v399, %v252
        %v401 = vshrl.u32 %v400, 4
        %v402 = vand.u32 %v400, 15
        %v403 = vsub.s32 0, %v402
        %v404 = vsel %vm398, %v403, %v402
        %vm405 = vcmp.lt.s32.totalorder %v253, 0
        %v406 = vsub.s32 0, %v253
        %v407 = vsel %vm405, %v406, %v253
        %v408 = vshrl.u32 %v407, 4
        %v409 = vand.u32 %v407, 15
        %v410 = vsub.s32 0, %v409
        %v411 = vsel %vm405, %v410, %v409
        %vm412 = vcmp.lt.s32.totalorder %v254, 0
        %v413 = vsub.s32 0, %v254
        %v414 = vsel %vm412, %v413, %v254
        %v415 = vshrl.u32 %v414, 4
        %v416 = vand.u32 %v414, 15
        %v417 = vsub.s32 0, %v416
        %v418 = vsel %vm412, %v417, %v416
        %vm419 = vcmp.lt.s32.totalorder %v255, 0
        %v420 = vsub.s32 0, %v255
        %v421 = vsel %vm419, %v420, %v255
        %v422 = vshrl.u32 %v421, 4
        %v423 = vand.u32 %v421, 15
        %v424 = vsub.s32 0, %v423
        %v425 = vsel %vm419, %v424, %v423
        %vm426 = vcmp.lt.s32.totalorder %v256, 0
        %v427 = vsub.s32 0, %v256
        %v428 = vsel %vm426, %v427, %v256
        %v429 = vshrl.u32 %v428, 4
        %v430 = vand.u32 %v428, 15
        %v431 = vsub.s32 0, %v430
        %v432 = vsel %vm426, %v431, %v430
        %vm433 = vcmp.lt.s32.totalorder %v257, 0
        %v434 = vsub.s32 0, %v257
        %v435 = vsel %vm433, %v434, %v257
        %v436 = vshrl.u32 %v435, 4
        %v437 = vand.u32 %v435, 15
        %v438 = vsub.s32 0, %v437
        %v439 = vsel %vm433, %v438, %v437
        %vm440 = vcmp.lt.s32.totalorder %v258, 0
        %v441 = vsub.s32 0, %v258
        %v442 = vsel %vm440, %v441, %v258
        %v443 = vshrl.u32 %v442, 4
        %v444 = vand.u32 %v442, 15
        %v445 = vsub.s32 0, %v444
        %v446 = vsel %vm440, %v445, %v444
        %vm447 = vcmp.lt.s32.totalorder %v259, 0
        %v448 = vsub.s32 0, %v259
        %v449 = vsel %vm447, %v448, %v259
        %v450 = vshrl.u32 %v449, 4
        %v451 = vand.u32 %v449, 15
        %v452 = vsub.s32 0, %v451
        %v453 = vsel %vm447, %v452, %v451
        %vm454 = vcmp.lt.s32.totalorder %v260, 0
        %v455 = vsub.s32 0, %v260
        %v456 = vsel %vm454, %v455, %v260
        %v457 = vshrl.u32 %v456, 4
        %v458 = vand.u32 %v456, 15
        %v459 = vsub.s32 0, %v458
        %v460 = vsel %vm454, %v459, %v458
        %vm461 = vcmp.lt.s32.totalorder %v261, 0
        %v462 = vsub.s32 0, %v261
        %v463 = vsel %vm461, %v462, %v261
        %v464 = vshrl.u32 %v463, 4
        %v465 = vand.u32 %v463, 15
        %v466 = vsub.s32 0, %v465
        %v467 = vsel %vm461, %v466, %v465
        %vm468 = vcmp.lt.s32.totalorder %v262, 0
        %v469 = vsub.s32 0, %v262
        %v470 = vsel %vm468, %v469, %v262
        %v471 = vshrl.u32 %v470, 4
        %v472 = vand.u32 %v470, 15
        %v473 = vsub.s32 0, %v472
        %v474 = vsel %vm468, %v473, %v472
        %vm475 = vcmp.lt.s32.totalorder %v263, 0
        %v476 = vsub.s32 0, %v263
        %v477 = vsel %vm475, %v476, %v263
        %v478 = vshrl.u32 %v477, 4
        %v479 = vand.u32 %v477, 15
        %v480 = vsub.s32 0, %v479
        %v481 = vsel %vm475, %v480, %v479
        %vm482 = vcmp.lt.s32.totalorder %v264, 0
        %v483 = vsub.s32 0, %v264
        %v484 = vsel %vm482, %v483, %v264
        %v485 = vshrl.u32 %v484, 4
        %v486 = vand.u32 %v484, 15
        %v487 = vsub.s32 0, %v486
        %v488 = vsel %vm482, %v487, %v486
        %vm489 = vcmp.ne.s32.totalorder %v271, 0
        %vm490 = vcmp.ne.s32.totalorder %v278, 0
        %vm491 = vcmp.ne.s32.totalorder %v285, 0
        %vm492 = vcmp.ne.s32.totalorder %v292, 0
        %vm493 = vcmp.ne.s32.totalorder %v299, 0
        %vm494 = vcmp.ne.s32.totalorder %v306, 0
        %vm495 = vcmp.ne.s32.totalorder %v313, 0
        %vm496 = vcmp.ne.s32.totalorder %v320, 0
        %vm497 = vcmp.ne.s32.totalorder %v327, 0
        %vm498 = vcmp.ne.s32.totalorder %v334, 0
        %vm499 = vcmp.ne.s32.totalorder %v341, 0
        %vm500 = vcmp.ne.s32.totalorder %v348, 0
        %vm501 = vcmp.ne.s32.totalorder %v355, 0
        %vm502 = vcmp.ne.s32.totalorder %v362, 0
        %vm503 = vcmp.ne.s32.totalorder %v369, 0
        %vm504 = vcmp.ne.s32.totalorder %v376, 0
        %vm505 = vcmp.ne.s32.totalorder %v383, 0
        %vm506 = vcmp.ne.s32.totalorder %v390, 0
        %vm507 = vcmp.ne.s32.totalorder %v397, 0
        %vm508 = vcmp.ne.s32.totalorder %v404, 0
        %vm509 = vcmp.ne.s32.totalorder %v411, 0
        %vm510 = vcmp.ne.s32.totalorder %v418, 0
        %vm511 = vcmp.ne.s32.totalorder %v425, 0
        %vm512 = vcmp.ne.s32.totalorder %v432, 0
        %vm513 = vcmp.ne.s32.totalorder %v439, 0
        %vm514 = vcmp.ne.s32.totalorder %v446, 0
        %vm515 = vcmp.ne.s32.totalorder %v453, 0
        %vm516 = vcmp.ne.s32.totalorder %v460, 0
        %vm517 = vcmp.ne.s32.totalorder %v467, 0
        %vm518 = vcmp.ne.s32.totalorder %v474, 0
        %vm519 = vcmp.ne.s32.totalorder %v481, 0
        %vm520 = vcmp.ne.s32.totalorder %v488, 0
        %vm521 = vcmp.lt.s32.totalorder %v271, 0
        %vm522 = vcmp.lt.s32.totalorder %v278, 0
        %vm523 = vcmp.lt.s32.totalorder %v285, 0
        %vm524 = vcmp.lt.s32.totalorder %v292, 0
        %vm525 = vcmp.lt.s32.totalorder %v299, 0
        %vm526 = vcmp.lt.s32.totalorder %v306, 0
        %vm527 = vcmp.lt.s32.totalorder %v313, 0
        %vm528 = vcmp.lt.s32.totalorder %v320, 0
        %vm529 = vcmp.lt.s32.totalorder %v327, 0
        %vm530 = vcmp.lt.s32.totalorder %v334, 0
        %vm531 = vcmp.lt.s32.totalorder %v341, 0
        %vm532 = vcmp.lt.s32.totalorder %v348, 0
        %vm533 = vcmp.lt.s32.totalorder %v355, 0
        %vm534 = vcmp.lt.s32.totalorder %v362, 0
        %vm535 = vcmp.lt.s32.totalorder %v369, 0
        %vm536 = vcmp.lt.s32.totalorder %v376, 0
        %vm537 = vcmp.lt.s32.totalorder %v383, 0
        %vm538 = vcmp.lt.s32.totalorder %v390, 0
        %vm539 = vcmp.lt.s32.totalorder %v397, 0
        %vm540 = vcmp.lt.s32.totalorder %v404, 0
        %vm541 = vcmp.lt.s32.totalorder %v411, 0
        %vm542 = vcmp.lt.s32.totalorder %v418, 0
        %vm543 = vcmp.lt.s32.totalorder %v425, 0
        %vm544 = vcmp.lt.s32.totalorder %v432, 0
        %vm545 = vcmp.lt.s32.totalorder %v439, 0
        %vm546 = vcmp.lt.s32.totalorder %v446, 0
        %vm547 = vcmp.lt.s32.totalorder %v453, 0
        %vm548 = vcmp.lt.s32.totalorder %v460, 0
        %vm549 = vcmp.lt.s32.totalorder %v467, 0
        %vm550 = vcmp.lt.s32.totalorder %v474, 0
        %vm551 = vcmp.lt.s32.totalorder %v481, 0
        %vm552 = vcmp.lt.s32.totalorder %v488, 0
        %vm553 = vmand %vm521, %vm489
        %vm554 = vmand %vm522, %vm490
        %vm555 = vmand %vm523, %vm491
        %vm556 = vmand %vm524, %vm492
        %vm557 = vmand %vm525, %vm493
        %vm558 = vmand %vm526, %vm494
        %vm559 = vmand %vm527, %vm495
        %vm560 = vmand %vm528, %vm496
        %vm561 = vmand %vm529, %vm497
        %vm562 = vmand %vm530, %vm498
        %vm563 = vmand %vm531, %vm499
        %vm564 = vmand %vm532, %vm500
        %vm565 = vmand %vm533, %vm501
        %vm566 = vmand %vm534, %vm502
        %vm567 = vmand %vm535, %vm503
        %vm568 = vmand %vm536, %vm504
        %vm569 = vmand %vm537, %vm505
        %vm570 = vmand %vm538, %vm506
        %vm571 = vmand %vm539, %vm507
        %vm572 = vmand %vm540, %vm508
        %vm573 = vmand %vm541, %vm509
        %vm574 = vmand %vm542, %vm510
        %vm575 = vmand %vm543, %vm511
        %vm576 = vmand %vm544, %vm512
        %vm577 = vmand %vm545, %vm513
        %vm578 = vmand %vm546, %vm514
        %vm579 = vmand %vm547, %vm515
        %vm580 = vmand %vm548, %vm516
        %vm581 = vmand %vm549, %vm517
        %vm582 = vmand %vm550, %vm518
        %vm583 = vmand %vm551, %vm519
        %vm584 = vmand %vm552, %vm520
        %v585 = vadd.s32 %v271, 16
        %v586 = vadd.s32 %v278, 16
        %v587 = vadd.s32 %v285, 16
        %v588 = vadd.s32 %v292, 16
        %v589 = vadd.s32 %v299, 16
        %v590 = vadd.s32 %v306, 16
        %v591 = vadd.s32 %v313, 16
        %v592 = vadd.s32 %v320, 16
        %v593 = vadd.s32 %v327, 16
        %v594 = vadd.s32 %v334, 16
        %v595 = vadd.s32 %v341, 16
        %v596 = vadd.s32 %v348, 16
        %v597 = vadd.s32 %v355, 16
        %v598 = vadd.s32 %v362, 16
        %v599 = vadd.s32 %v369, 16
        %v600 = vadd.s32 %v376, 16
        %v601 = vadd.s32 %v383, 16
        %v602 = vadd.s32 %v390, 16
        %v603 = vadd.s32 %v397, 16
        %v604 = vadd.s32 %v404, 16
        %v605 = vadd.s32 %v411, 16
        %v606 = vadd.s32 %v418, 16
        %v607 = vadd.s32 %v425, 16
        %v608 = vadd.s32 %v432, 16
        %v609 = vadd.s32 %v439, 16
        %v610 = vadd.s32 %v446, 16
        %v611 = vadd.s32 %v453, 16
        %v612 = vadd.s32 %v460, 16
        %v613 = vadd.s32 %v467, 16
        %v614 = vadd.s32 %v474, 16
        %v615 = vadd.s32 %v481, 16
        %v616 = vadd.s32 %v488, 16
        %v617 = vsel %vm553, %v585, %v271
        %v618 = vsel %vm554, %v586, %v278
        %v619 = vsel %vm555, %v587, %v285
        %v620 = vsel %vm556, %v588, %v292
        %v621 = vsel %vm557, %v589, %v299
        %v622 = vsel %vm558, %v590, %v306
        %v623 = vsel %vm559, %v591, %v313
        %v624 = vsel %vm560, %v592, %v320
        %v625 = vsel %vm561, %v593, %v327
        %v626 = vsel %vm562, %v594, %v334
        %v627 = vsel %vm563, %v595, %v341
        %v628 = vsel %vm564, %v596, %v348
        %v629 = vsel %vm565, %v597, %v355
        %v630 = vsel %vm566, %v598, %v362
        %v631 = vsel %vm567, %v599, %v369
        %v632 = vsel %vm568, %v600, %v376
        %v633 = vsel %vm569, %v601, %v383
        %v634 = vsel %vm570, %v602, %v390
        %v635 = vsel %vm571, %v603, %v397
        %v636 = vsel %vm572, %v604, %v404
        %v637 = vsel %vm573, %v605, %v411
        %v638 = vsel %vm574, %v606, %v418
        %v639 = vsel %vm575, %v607, %v425
        %v640 = vsel %vm576, %v608, %v432
        %v641 = vsel %vm577, %v609, %v439
        %v642 = vsel %vm578, %v610, %v446
        %v643 = vsel %vm579, %v611, %v453
        %v644 = vsel %vm580, %v612, %v460
        %v645 = vsel %vm581, %v613, %v467
        %v646 = vsel %vm582, %v614, %v474
        %v647 = vsel %vm583, %v615, %v481
        %v648 = vsel %vm584, %v616, %v488
        %vm649 = vcmp.eq.s32.totalorder %v617, 0
        %vm650 = vcmp.eq.s32.totalorder %v618, 0
        %vm651 = vcmp.eq.s32.totalorder %v619, 0
        %vm652 = vcmp.eq.s32.totalorder %v620, 0
        %vm653 = vcmp.eq.s32.totalorder %v621, 0
        %vm654 = vcmp.eq.s32.totalorder %v622, 0
        %vm655 = vcmp.eq.s32.totalorder %v623, 0
        %vm656 = vcmp.eq.s32.totalorder %v624, 0
        %vm657 = vcmp.eq.s32.totalorder %v625, 0
        %vm658 = vcmp.eq.s32.totalorder %v626, 0
        %vm659 = vcmp.eq.s32.totalorder %v627, 0
        %vm660 = vcmp.eq.s32.totalorder %v628, 0
        %vm661 = vcmp.eq.s32.totalorder %v629, 0
        %vm662 = vcmp.eq.s32.totalorder %v630, 0
        %vm663 = vcmp.eq.s32.totalorder %v631, 0
        %vm664 = vcmp.eq.s32.totalorder %v632, 0
        %vm665 = vcmp.eq.s32.totalorder %v633, 0
        %vm666 = vcmp.eq.s32.totalorder %v634, 0
        %vm667 = vcmp.eq.s32.totalorder %v635, 0
        %vm668 = vcmp.eq.s32.totalorder %v636, 0
        %vm669 = vcmp.eq.s32.totalorder %v637, 0
        %vm670 = vcmp.eq.s32.totalorder %v638, 0
        %vm671 = vcmp.eq.s32.totalorder %v639, 0
        %vm672 = vcmp.eq.s32.totalorder %v640, 0
        %vm673 = vcmp.eq.s32.totalorder %v641, 0
        %vm674 = vcmp.eq.s32.totalorder %v642, 0
        %vm675 = vcmp.eq.s32.totalorder %v643, 0
        %vm676 = vcmp.eq.s32.totalorder %v644, 0
        %vm677 = vcmp.eq.s32.totalorder %v645, 0
        %vm678 = vcmp.eq.s32.totalorder %v646, 0
        %vm679 = vcmp.eq.s32.totalorder %v647, 0
        %vm680 = vcmp.eq.s32.totalorder %v648, 0
        %vm681 = vcmp.eq.s32.totalorder %v617, 15
        %vm682 = vcmp.eq.s32.totalorder %v618, 15
        %vm683 = vcmp.eq.s32.totalorder %v619, 15
        %vm684 = vcmp.eq.s32.totalorder %v620, 15
        %vm685 = vcmp.eq.s32.totalorder %v621, 15
        %vm686 = vcmp.eq.s32.totalorder %v622, 15
        %vm687 = vcmp.eq.s32.totalorder %v623, 15
        %vm688 = vcmp.eq.s32.totalorder %v624, 15
        %vm689 = vcmp.eq.s32.totalorder %v625, 15
        %vm690 = vcmp.eq.s32.totalorder %v626, 15
        %vm691 = vcmp.eq.s32.totalorder %v627, 15
        %vm692 = vcmp.eq.s32.totalorder %v628, 15
        %vm693 = vcmp.eq.s32.totalorder %v629, 15
        %vm694 = vcmp.eq.s32.totalorder %v630, 15
        %vm695 = vcmp.eq.s32.totalorder %v631, 15
        %vm696 = vcmp.eq.s32.totalorder %v632, 15
        %vm697 = vcmp.eq.s32.totalorder %v633, 15
        %vm698 = vcmp.eq.s32.totalorder %v634, 15
        %vm699 = vcmp.eq.s32.totalorder %v635, 15
        %vm700 = vcmp.eq.s32.totalorder %v636, 15
        %vm701 = vcmp.eq.s32.totalorder %v637, 15
        %vm702 = vcmp.eq.s32.totalorder %v638, 15
        %vm703 = vcmp.eq.s32.totalorder %v639, 15
        %vm704 = vcmp.eq.s32.totalorder %v640, 15
        %vm705 = vcmp.eq.s32.totalorder %v641, 15
        %vm706 = vcmp.eq.s32.totalorder %v642, 15
        %vm707 = vcmp.eq.s32.totalorder %v643, 15
        %vm708 = vcmp.eq.s32.totalorder %v644, 15
        %vm709 = vcmp.eq.s32.totalorder %v645, 15
        %vm710 = vcmp.eq.s32.totalorder %v646, 15
        %vm711 = vcmp.eq.s32.totalorder %v647, 15
        %vm712 = vcmp.eq.s32.totalorder %v648, 15
        %v713 = vmax.f32 %v200, 0.0
        %v714 = vmax.f32 %v201, 0.0
        %v715 = vmax.f32 %v202, 0.0
        %v716 = vmax.f32 %v203, 0.0
        %v717 = vmax.f32 %v204, 0.0
        %v718 = vmax.f32 %v205, 0.0
        %v719 = vmax.f32 %v206, 0.0
        %v720 = vmax.f32 %v207, 0.0
        %v721 = vmax.f32 %v208, 0.0
        %v722 = vmax.f32 %v209, 0.0
        %v723 = vmax.f32 %v210, 0.0
        %v724 = vmax.f32 %v211, 0.0
        %v725 = vmax.f32 %v212, 0.0
        %v726 = vmax.f32 %v213, 0.0
        %v727 = vmax.f32 %v214, 0.0
        %v728 = vmax.f32 %v215, 0.0
        %v729 = vmax.f32 %v216, 0.0
        %v730 = vmax.f32 %v217, 0.0
        %v731 = vmax.f32 %v218, 0.0
        %v732 = vmax.f32 %v219, 0.0
        %v733 = vmax.f32 %v220, 0.0
        %v734 = vmax.f32 %v221, 0.0
        %v735 = vmax.f32 %v222, 0.0
        %v736 = vmax.f32 %v223, 0.0
        %v737 = vmax.f32 %v224, 0.0
        %v738 = vmax.f32 %v225, 0.0
        %v739 = vmax.f32 %v226, 0.0
        %v740 = vmax.f32 %v227, 0.0
        %v741 = vmax.f32 %v228, 0.0
        %v742 = vmax.f32 %v229, 0.0
        %v743 = vmax.f32 %v230, 0.0
        %v744 = vmax.f32 %v231, 0.0
        %vm777 = vcmask 1040384
        %v778 = vrot.slane %v713, 7
        %v779 = vrot.slane %v714, 7
        %v780 = vsel %vm777, %v778, %v779
        %v781 = vrot.slane %v715, 7
        %v782 = vsel %vm777, %v779, %v781
        %v783 = vrot.slane %v716, 7
        %v784 = vsel %vm777, %v781, %v783
        %v785 = vrot.slane %v717, 7
        %v786 = vsel %vm777, %v783, %v785
        %v787 = vrot.slane %v718, 7
        %v788 = vsel %vm777, %v785, %v787
        %v789 = vrot.slane %v719, 7
        %v790 = vsel %vm777, %v787, %v789
        %v791 = vrot.slane %v720, 7
        %v792 = vsel %vm777, %v789, %v791
        %v793 = vrot.slane %v721, 7
        %v794 = vsel %vm777, %v791, %v793
        %v795 = vrot.slane %v722, 7
        %v796 = vsel %vm777, %v793, %v795
        %v797 = vrot.slane %v723, 7
        %v798 = vsel %vm777, %v795, %v797
        %v799 = vrot.slane %v724, 7
        %v800 = vsel %vm777, %v797, %v799
        %v801 = vrot.slane %v725, 7
        %v802 = vsel %vm777, %v799, %v801
        %v803 = vrot.slane %v726, 7
        %v804 = vsel %vm777, %v801, %v803
        %v805 = vrot.slane %v727, 7
        %v806 = vsel %vm777, %v803, %v805
        %v807 = vrot.slane %v728, 7
        %v808 = vsel %vm777, %v805, %v807
        %v809 = vrot.slane %v729, 7
        %v810 = vsel %vm777, %v807, %v809
        %v811 = vrot.slane %v730, 7
        %v812 = vsel %vm777, %v809, %v811
        %v813 = vrot.slane %v731, 7
        %v814 = vsel %vm777, %v811, %v813
        %v815 = vrot.slane %v732, 7
        %v816 = vsel %vm777, %v813, %v815
        %v817 = vrot.slane %v733, 7
        %v818 = vsel %vm777, %v815, %v817
        %v819 = vrot.slane %v734, 7
        %v820 = vsel %vm777, %v817, %v819
        %v821 = vrot.slane %v735, 7
        %v822 = vsel %vm777, %v819, %v821
        %v823 = vrot.slane %v736, 7
        %v824 = vsel %vm777, %v821, %v823
        %v825 = vrot.slane %v737, 7
        %v826 = vsel %vm777, %v823, %v825
        %v827 = vrot.slane %v738, 7
        %v828 = vsel %vm777, %v825, %v827
        %v829 = vrot.slane %v739, 7
        %v830 = vsel %vm777, %v827, %v829
        %v831 = vrot.slane %v740, 7
        %v832 = vsel %vm777, %v829, %v831
        %v833 = vrot.slane %v741, 7
        %v834 = vsel %vm777, %v831, %v833
        %v835 = vrot.slane %v742, 7
        %v836 = vsel %vm777, %v833, %v835
        %v837 = vrot.slane %v743, 7
        %v838 = vsel %vm777, %v835, %v837
        %v839 = vrot.slane %v744, 7
        %v840 = vsel %vm777, %v837, %v839
        %v873 = vsel %vm777, 0.0, %v778
        %v874 = vsel %vm649, 0.0, %v873
        %v875 = vsel %vm650, 0.0, %v780
        %v876 = vsel %vm651, 0.0, %v782
        %v877 = vsel %vm652, 0.0, %v784
        %v878 = vsel %vm653, 0.0, %v786
        %v879 = vsel %vm654, 0.0, %v788
        %v880 = vsel %vm655, 0.0, %v790
        %v881 = vsel %vm656, 0.0, %v792
        %v882 = vsel %vm657, 0.0, %v794
        %v883 = vsel %vm658, 0.0, %v796
        %v884 = vsel %vm659, 0.0, %v798
        %v885 = vsel %vm660, 0.0, %v800
        %v886 = vsel %vm661, 0.0, %v802
        %v887 = vsel %vm662, 0.0, %v804
        %v888 = vsel %vm663, 0.0, %v806
        %v889 = vsel %vm664, 0.0, %v808
        %v890 = vsel %vm665, 0.0, %v810
        %v891 = vsel %vm666, 0.0, %v812
        %v892 = vsel %vm667, 0.0, %v814
        %v893 = vsel %vm668, 0.0, %v816
        %v894 = vsel %vm669, 0.0, %v818
        %v895 = vsel %vm670, 0.0, %v820
        %v896 = vsel %vm671, 0.0, %v822
        %v897 = vsel %vm672, 0.0, %v824
        %v898 = vsel %vm673, 0.0, %v826
        %v899 = vsel %vm674, 0.0, %v828
        %v900 = vsel %vm675, 0.0, %v830
        %v901 = vsel %vm676, 0.0, %v832
        %v902 = vsel %vm677, 0.0, %v834
        %v903 = vsel %vm678, 0.0, %v836
        %v904 = vsel %vm679, 0.0, %v838
        %v905 = vsel %vm680, 0.0, %v840
        %vm906 = vcmask 1046528
        %v907 = vrot.slane %v713, 1
        %v908 = vrot.slane %v714, 1
        %v909 = vsel %vm906, %v907, %v908
        %v910 = vrot.slane %v715, 1
        %v911 = vsel %vm906, %v908, %v910
        %v912 = vrot.slane %v716, 1
        %v913 = vsel %vm906, %v910, %v912
        %v914 = vrot.slane %v717, 1
        %v915 = vsel %vm906, %v912, %v914
        %v916 = vrot.slane %v718, 1
        %v917 = vsel %vm906, %v914, %v916
        %v918 = vrot.slane %v719, 1
        %v919 = vsel %vm906, %v916, %v918
        %v920 = vrot.slane %v720, 1
        %v921 = vsel %vm906, %v918, %v920
        %v922 = vrot.slane %v721, 1
        %v923 = vsel %vm906, %v920, %v922
        %v924 = vrot.slane %v722, 1
        %v925 = vsel %vm906, %v922, %v924
        %v926 = vrot.slane %v723, 1
        %v927 = vsel %vm906, %v924, %v926
        %v928 = vrot.slane %v724, 1
        %v929 = vsel %vm906, %v926, %v928
        %v930 = vrot.slane %v725, 1
        %v931 = vsel %vm906, %v928, %v930
        %v932 = vrot.slane %v726, 1
        %v933 = vsel %vm906, %v930, %v932
        %v934 = vrot.slane %v727, 1
        %v935 = vsel %vm906, %v932, %v934
        %v936 = vrot.slane %v728, 1
        %v937 = vsel %vm906, %v934, %v936
        %v938 = vrot.slane %v729, 1
        %v939 = vsel %vm906, %v936, %v938
        %v940 = vrot.slane %v730, 1
        %v941 = vsel %vm906, %v938, %v940
        %v942 = vrot.slane %v731, 1
        %v943 = vsel %vm906, %v940, %v942
        %v944 = vrot.slane %v732, 1
        %v945 = vsel %vm906, %v942, %v944
        %v946 = vrot.slane %v733, 1
        %v947 = vsel %vm906, %v944, %v946
        %v948 = vrot.slane %v734, 1
        %v949 = vsel %vm906, %v946, %v948
        %v950 = vrot.slane %v735, 1
        %v951 = vsel %vm906, %v948, %v950
        %v952 = vrot.slane %v736, 1
        %v953 = vsel %vm906, %v950, %v952
        %v954 = vrot.slane %v737, 1
        %v955 = vsel %vm906, %v952, %v954
        %v956 = vrot.slane %v738, 1
        %v957 = vsel %vm906, %v954, %v956
        %v958 = vrot.slane %v739, 1
        %v959 = vsel %vm906, %v956, %v958
        %v960 = vrot.slane %v740, 1
        %v961 = vsel %vm906, %v958, %v960
        %v962 = vrot.slane %v741, 1
        %v963 = vsel %vm906, %v960, %v962
        %v964 = vrot.slane %v742, 1
        %v965 = vsel %vm906, %v962, %v964
        %v966 = vrot.slane %v743, 1
        %v967 = vsel %vm906, %v964, %v966
        %v968 = vrot.slane %v744, 1
        %v969 = vsel %vm906, %v966, %v968
        %v1002 = vsel %vm906, %v968, 0.0
        %v1003 = vsel %vm681, 0.0, %v909
        %v1004 = vsel %vm682, 0.0, %v911
        %v1005 = vsel %vm683, 0.0, %v913
        %v1006 = vsel %vm684, 0.0, %v915
        %v1007 = vsel %vm685, 0.0, %v917
        %v1008 = vsel %vm686, 0.0, %v919
        %v1009 = vsel %vm687, 0.0, %v921
        %v1010 = vsel %vm688, 0.0, %v923
        %v1011 = vsel %vm689, 0.0, %v925
        %v1012 = vsel %vm690, 0.0, %v927
        %v1013 = vsel %vm691, 0.0, %v929
        %v1014 = vsel %vm692, 0.0, %v931
        %v1015 = vsel %vm693, 0.0, %v933
        %v1016 = vsel %vm694, 0.0, %v935
        %v1017 = vsel %vm695, 0.0, %v937
        %v1018 = vsel %vm696, 0.0, %v939
        %v1019 = vsel %vm697, 0.0, %v941
        %v1020 = vsel %vm698, 0.0, %v943
        %v1021 = vsel %vm699, 0.0, %v945
        %v1022 = vsel %vm700, 0.0, %v947
        %v1023 = vsel %vm701, 0.0, %v949
        %v1024 = vsel %vm702, 0.0, %v951
        %v1025 = vsel %vm703, 0.0, %v953
        %v1026 = vsel %vm704, 0.0, %v955
        %v1027 = vsel %vm705, 0.0, %v957
        %v1028 = vsel %vm706, 0.0, %v959
        %v1029 = vsel %vm707, 0.0, %v961
        %v1030 = vsel %vm708, 0.0, %v963
        %v1031 = vsel %vm709, 0.0, %v965
        %v1032 = vsel %vm710, 0.0, %v967
        %v1033 = vsel %vm711, 0.0, %v969
        %v1034 = vsel %vm712, 0.0, %v1002
        %v1035 = vld [vmem:[#allocation2] ss:$4 sm:$0x7]
        %1037 = vset.pattern.permute.xlu0 0
        %1038 = vperm.xlu0 %1037, %v874
        %v1039 = vpop.permute.xlu0 %1038
        %1042 = vset.pattern.permute.xlu0 0
        %1043 = vperm.xlu0 %1042, %v875
        %v1044 = vpop.permute.xlu0 %1043
        %1047 = vset.pattern.permute.xlu0 0
        %1048 = vperm.xlu0 %1047, %v876
        %v1049 = vpop.permute.xlu0 %1048
        %1052 = vset.pattern.permute.xlu0 0
        %1053 = vperm.xlu0 %1052, %v877
        %v1054 = vpop.permute.xlu0 %1053
        %1057 = vset.pattern.permute.xlu0 0
        %1058 = vperm.xlu0 %1057, %v878
        %v1059 = vpop.permute.xlu0 %1058
        %1062 = vset.pattern.permute.xlu0 0
        %1063 = vperm.xlu0 %1062, %v879
        %v1064 = vpop.permute.xlu0 %1063
        %1067 = vset.pattern.permute.xlu0 0
        %1068 = vperm.xlu0 %1067, %v880
        %v1069 = vpop.permute.xlu0 %1068
        %1072 = vset.pattern.permute.xlu0 0
        %1073 = vperm.xlu0 %1072, %v881
        %v1074 = vpop.permute.xlu0 %1073
        %1077 = vset.pattern.permute.xlu0 0
        %1078 = vperm.xlu0 %1077, %v882
        %v1079 = vpop.permute.xlu0 %1078
        %1082 = vset.pattern.permute.xlu0 0
        %1083 = vperm.xlu0 %1082, %v883
        %v1084 = vpop.permute.xlu0 %1083
        %1087 = vset.pattern.permute.xlu0 0
        %1088 = vperm.xlu0 %1087, %v884
        %v1089 = vpop.permute.xlu0 %1088
        %1092 = vset.pattern.permute.xlu0 0
        %1093 = vperm.xlu0 %1092, %v885
        %v1094 = vpop.permute.xlu0 %1093
        %1097 = vset.pattern.permute.xlu0 0
        %1098 = vperm.xlu0 %1097, %v886
        %v1099 = vpop.permute.xlu0 %1098
        %1102 = vset.pattern.permute.xlu0 0
        %1103 = vperm.xlu0 %1102, %v887
        %v1104 = vpop.permute.xlu0 %1103
        %1107 = vset.pattern.permute.xlu0 0
        %1108 = vperm.xlu0 %1107, %v888
        %v1109 = vpop.permute.xlu0 %1108
        %1112 = vset.pattern.permute.xlu0 0
        %1113 = vperm.xlu0 %1112, %v889
        %v1114 = vpop.permute.xlu0 %1113
        %1117 = vset.pattern.permute.xlu0 0
        %1118 = vperm.xlu0 %1117, %v890
        %v1119 = vpop.permute.xlu0 %1118
        %1122 = vset.pattern.permute.xlu0 0
        %1123 = vperm.xlu0 %1122, %v891
        %v1124 = vpop.permute.xlu0 %1123
        %1127 = vset.pattern.permute.xlu0 0
        %1128 = vperm.xlu0 %1127, %v892
        %v1129 = vpop.permute.xlu0 %1128
        %1132 = vset.pattern.permute.xlu0 0
        %1133 = vperm.xlu0 %1132, %v893
        %v1134 = vpop.permute.xlu0 %1133
        %1137 = vset.pattern.permute.xlu0 0
        %1138 = vperm.xlu0 %1137, %v894
        %v1139 = vpop.permute.xlu0 %1138
        %1142 = vset.pattern.permute.xlu0 0
        %1143 = vperm.xlu0 %1142, %v895
        %v1144 = vpop.permute.xlu0 %1143
        %1147 = vset.pattern.permute.xlu0 0
        %1148 = vperm.xlu0 %1147, %v896
        %v1149 = vpop.permute.xlu0 %1148
        %1152 = vset.pattern.permute.xlu0 0
        %1153 = vperm.xlu0 %1152, %v897
        %v1154 = vpop.permute.xlu0 %1153
        %1157 = vset.pattern.permute.xlu0 0
        %1158 = vperm.xlu0 %1157, %v898
        %v1159 = vpop.permute.xlu0 %1158
        %1162 = vset.pattern.permute.xlu0 0
        %1163 = vperm.xlu0 %1162, %v899
        %v1164 = vpop.permute.xlu0 %1163
        %1167 = vset.pattern.permute.xlu0 0
        %1168 = vperm.xlu0 %1167, %v900
        %v1169 = vpop.permute.xlu0 %1168
        %1172 = vset.pattern.permute.xlu0 0
        %1173 = vperm.xlu0 %1172, %v901
        %v1174 = vpop.permute.xlu0 %1173
        %1177 = vset.pattern.permute.xlu0 0
        %1178 = vperm.xlu0 %1177, %v902
        %v1179 = vpop.permute.xlu0 %1178
        %1182 = vset.pattern.permute.xlu0 0
        %1183 = vperm.xlu0 %1182, %v903
        %v1184 = vpop.permute.xlu0 %1183
        %1187 = vset.pattern.permute.xlu0 0
        %1188 = vperm.xlu0 %1187, %v904
        %v1189 = vpop.permute.xlu0 %1188
        %1192 = vset.pattern.permute.xlu0 0
        %1193 = vperm.xlu0 %1192, %v905
        %v1194 = vpop.permute.xlu0 %1193
        %v1197 = vlaneseq
        %v1198 = vshrl.u32 %v1197, 7
        %v1199 = vsub.s32 0, %v1198
        %v1200 = vrot.slane %v1035, %v1199
        %v1201 = vlaneseq
        %v1202 = vshrl.u32 %v1201, 7
        %v1203 = vsub.s32 1, %v1202
        %v1204 = vrot.slane %v1035, %v1203
        %v1205 = vlaneseq
        %v1206 = vshrl.u32 %v1205, 7
        %v1207 = vsub.s32 2, %v1206
        %v1208 = vrot.slane %v1035, %v1207
        %v1212 = vmul.f32 %v1039, %v1200
        %v1213 = vmul.f32 %v1039, %v1204
        %v1214 = vmul.f32 %v1044, %v1200
        %v1215 = vmul.f32 %v1044, %v1204
        %v1216 = vmul.f32 %v1049, %v1200
        %v1217 = vmul.f32 %v1049, %v1204
        %v1218 = vmul.f32 %v1049, %v1208
        %v1219 = vmul.f32 %v1054, %v1200
        %v1220 = vmul.f32 %v1054, %v1204
        %v1221 = vmul.f32 %v1054, %v1208
        %v1222 = vmul.f32 %v1059, %v1200
        %v1223 = vmul.f32 %v1059, %v1204
        %v1224 = vmul.f32 %v1059, %v1208
        %v1225 = vmul.f32 %v1064, %v1200
        %v1226 = vmul.f32 %v1064, %v1204
        %v1227 = vmul.f32 %v1064, %v1208
        %v1228 = vmul.f32 %v1069, %v1200
        %v1229 = vmul.f32 %v1069, %v1204
        %v1230 = vmul.f32 %v1069, %v1208
        %v1231 = vmul.f32 %v1074, %v1200
        %v1232 = vmul.f32 %v1074, %v1204
        %v1233 = vmul.f32 %v1074, %v1208
        %v1234 = vmul.f32 %v1079, %v1200
        %v1235 = vmul.f32 %v1079, %v1204
        %v1236 = vmul.f32 %v1079, %v1208
        %v1237 = vmul.f32 %v1084, %v1200
        %v1238 = vmul.f32 %v1084, %v1204
        %v1239 = vmul.f32 %v1084, %v1208
        %v1240 = vmul.f32 %v1089, %v1200
        %v1241 = vmul.f32 %v1089, %v1204
        %v1242 = vmul.f32 %v1089, %v1208
        %v1243 = vmul.f32 %v1094, %v1200
        %v1244 = vmul.f32 %v1094, %v1204
        %v1245 = vmul.f32 %v1094, %v1208
        %v1246 = vmul.f32 %v1099, %v1200
        %v1247 = vmul.f32 %v1099, %v1204
        %v1248 = vmul.f32 %v1099, %v1208
        %v1249 = vmul.f32 %v1104, %v1200
        %v1250 = vmul.f32 %v1104, %v1204
        %v1251 = vmul.f32 %v1104, %v1208
        %v1252 = vmul.f32 %v1109, %v1200
        %v1253 = vmul.f32 %v1109, %v1204
        %v1254 = vmul.f32 %v1109, %v1208
        %v1255 = vmul.f32 %v1114, %v1200
        %v1256 = vmul.f32 %v1114, %v1204
        %v1257 = vmul.f32 %v1114, %v1208
        %v1258 = vmul.f32 %v1119, %v1200
        %v1259 = vmul.f32 %v1119, %v1204
        %v1260 = vmul.f32 %v1119, %v1208
        %v1261 = vmul.f32 %v1124, %v1200
        %v1262 = vmul.f32 %v1124, %v1204
        %v1263 = vmul.f32 %v1124, %v1208
        %v1264 = vmul.f32 %v1129, %v1200
        %v1265 = vmul.f32 %v1129, %v1204
        %v1266 = vmul.f32 %v1129, %v1208
        %v1267 = vmul.f32 %v1134, %v1200
        %v1268 = vmul.f32 %v1134, %v1204
        %v1269 = vmul.f32 %v1134, %v1208
        %v1270 = vmul.f32 %v1139, %v1200
        %v1271 = vmul.f32 %v1139, %v1204
        %v1272 = vmul.f32 %v1139, %v1208
        %v1273 = vmul.f32 %v1144, %v1200
        %v1274 = vmul.f32 %v1144, %v1204
        %v1275 = vmul.f32 %v1144, %v1208
        %v1276 = vmul.f32 %v1149, %v1200
        %v1277 = vmul.f32 %v1149, %v1204
        %v1278 = vmul.f32 %v1149, %v1208
        %v1279 = vmul.f32 %v1154, %v1200
        %v1280 = vmul.f32 %v1154, %v1204
        %v1281 = vmul.f32 %v1154, %v1208
        %v1282 = vmul.f32 %v1159, %v1200
        %v1283 = vmul.f32 %v1159, %v1204
        %v1284 = vmul.f32 %v1159, %v1208
        %v1285 = vmul.f32 %v1164, %v1200
        %v1286 = vmul.f32 %v1164, %v1204
        %v1287 = vmul.f32 %v1164, %v1208
        %v1288 = vmul.f32 %v1169, %v1200
        %v1289 = vmul.f32 %v1169, %v1204
        %v1290 = vmul.f32 %v1169, %v1208
        %v1291 = vmul.f32 %v1174, %v1200
        %v1292 = vmul.f32 %v1174, %v1204
        %v1293 = vmul.f32 %v1174, %v1208
        %v1294 = vmul.f32 %v1179, %v1200
        %v1295 = vmul.f32 %v1179, %v1204
        %v1296 = vmul.f32 %v1179, %v1208
        %v1297 = vmul.f32 %v1184, %v1200
        %v1298 = vmul.f32 %v1184, %v1204
        %v1299 = vmul.f32 %v1184, %v1208
        %v1300 = vmul.f32 %v1189, %v1204
        %v1301 = vmul.f32 %v1189, %v1208
        %v1302 = vmul.f32 %v1194, %v1204
        %v1303 = vmul.f32 %v1194, %v1208
        %s1304 = scalar_lea.vmem [#allocation2], 1
        %v1305 = vld [vmem:[%s1304] ss:$4 sm:$0x7]
        %1306 = vset.pattern.permute.xlu0 0
        %1307 = vperm.xlu0 %1306, %v713
        %v1308 = vpop.permute.xlu0 %1307
        %1310 = vset.pattern.permute.xlu0 0
        %1311 = vperm.xlu0 %1310, %v714
        %v1312 = vpop.permute.xlu0 %1311
        %1314 = vset.pattern.permute.xlu0 0
        %1315 = vperm.xlu0 %1314, %v715
        %v1316 = vpop.permute.xlu0 %1315
        %1318 = vset.pattern.permute.xlu0 0
        %1319 = vperm.xlu0 %1318, %v716
        %v1320 = vpop.permute.xlu0 %1319
        %1322 = vset.pattern.permute.xlu0 0
        %1323 = vperm.xlu0 %1322, %v717
        %v1324 = vpop.permute.xlu0 %1323
        %1326 = vset.pattern.permute.xlu0 0
        %1327 = vperm.xlu0 %1326, %v718
        %v1328 = vpop.permute.xlu0 %1327
        %1330 = vset.pattern.permute.xlu0 0
        %1331 = vperm.xlu0 %1330, %v719
        %v1332 = vpop.permute.xlu0 %1331
        %1334 = vset.pattern.permute.xlu0 0
        %1335 = vperm.xlu0 %1334, %v720
        %v1336 = vpop.permute.xlu0 %1335
        %1338 = vset.pattern.permute.xlu0 0
        %1339 = vperm.xlu0 %1338, %v721
        %v1340 = vpop.permute.xlu0 %1339
        %1342 = vset.pattern.permute.xlu0 0
        %1343 = vperm.xlu0 %1342, %v722
        %v1344 = vpop.permute.xlu0 %1343
        %1346 = vset.pattern.permute.xlu0 0
        %1347 = vperm.xlu0 %1346, %v723
        %v1348 = vpop.permute.xlu0 %1347
        %1350 = vset.pattern.permute.xlu0 0
        %1351 = vperm.xlu0 %1350, %v724
        %v1352 = vpop.permute.xlu0 %1351
        %1354 = vset.pattern.permute.xlu0 0
        %1355 = vperm.xlu0 %1354, %v725
        %v1356 = vpop.permute.xlu0 %1355
        %1358 = vset.pattern.permute.xlu0 0
        %1359 = vperm.xlu0 %1358, %v726
        %v1360 = vpop.permute.xlu0 %1359
        %1362 = vset.pattern.permute.xlu0 0
        %1363 = vperm.xlu0 %1362, %v727
        %v1364 = vpop.permute.xlu0 %1363
        %1366 = vset.pattern.permute.xlu0 0
        %1367 = vperm.xlu0 %1366, %v728
        %v1368 = vpop.permute.xlu0 %1367
        %1370 = vset.pattern.permute.xlu0 0
        %1371 = vperm.xlu0 %1370, %v729
        %v1372 = vpop.permute.xlu0 %1371
        %1374 = vset.pattern.permute.xlu0 0
        %1375 = vperm.xlu0 %1374, %v730
        %v1376 = vpop.permute.xlu0 %1375
        %1378 = vset.pattern.permute.xlu0 0
        %1379 = vperm.xlu0 %1378, %v731
        %v1380 = vpop.permute.xlu0 %1379
        %1382 = vset.pattern.permute.xlu0 0
        %1383 = vperm.xlu0 %1382, %v732
        %v1384 = vpop.permute.xlu0 %1383
        %1386 = vset.pattern.permute.xlu0 0
        %1387 = vperm.xlu0 %1386, %v733
        %v1388 = vpop.permute.xlu0 %1387
        %1390 = vset.pattern.permute.xlu0 0
        %1391 = vperm.xlu0 %1390, %v734
        %v1392 = vpop.permute.xlu0 %1391
        %1394 = vset.pattern.permute.xlu0 0
        %1395 = vperm.xlu0 %1394, %v735
        %v1396 = vpop.permute.xlu0 %1395
        %1398 = vset.pattern.permute.xlu0 0
        %1399 = vperm.xlu0 %1398, %v736
        %v1400 = vpop.permute.xlu0 %1399
        %1402 = vset.pattern.permute.xlu0 0
        %1403 = vperm.xlu0 %1402, %v737
        %v1404 = vpop.permute.xlu0 %1403
        %1406 = vset.pattern.permute.xlu0 0
        %1407 = vperm.xlu0 %1406, %v738
        %v1408 = vpop.permute.xlu0 %1407
        %1410 = vset.pattern.permute.xlu0 0
        %1411 = vperm.xlu0 %1410, %v739
        %v1412 = vpop.permute.xlu0 %1411
        %1414 = vset.pattern.permute.xlu0 0
        %1415 = vperm.xlu0 %1414, %v740
        %v1416 = vpop.permute.xlu0 %1415
        %1418 = vset.pattern.permute.xlu0 0
        %1419 = vperm.xlu0 %1418, %v741
        %v1420 = vpop.permute.xlu0 %1419
        %1422 = vset.pattern.permute.xlu0 0
        %1423 = vperm.xlu0 %1422, %v742
        %v1424 = vpop.permute.xlu0 %1423
        %1426 = vset.pattern.permute.xlu0 0
        %1427 = vperm.xlu0 %1426, %v743
        %v1428 = vpop.permute.xlu0 %1427
        %1430 = vset.pattern.permute.xlu0 0
        %1431 = vperm.xlu0 %1430, %v744
        %v1432 = vpop.permute.xlu0 %1431
        %v1435 = vlaneseq
        %v1436 = vshrl.u32 %v1435, 7
        %v1437 = vsub.s32 0, %v1436
        %v1438 = vrot.slane %v1305, %v1437
        %v1439 = vlaneseq
        %v1440 = vshrl.u32 %v1439, 7
        %v1441 = vsub.s32 1, %v1440
        %v1442 = vrot.slane %v1305, %v1441
        %v1443 = vlaneseq
        %v1444 = vshrl.u32 %v1443, 7
        %v1445 = vsub.s32 2, %v1444
        %v1446 = vrot.slane %v1305, %v1445
        %v1450 = vmul.f32 %v1308, %v1438
        %v1451 = vmul.f32 %v1308, %v1442
        %v1452 = vmul.f32 %v1312, %v1438
        %v1453 = vmul.f32 %v1312, %v1442
        %v1454 = vmul.f32 %v1316, %v1438
        %v1455 = vmul.f32 %v1316, %v1442
        %v1456 = vmul.f32 %v1316, %v1446
        %v1457 = vmul.f32 %v1320, %v1438
        %v1458 = vmul.f32 %v1320, %v1442
        %v1459 = vmul.f32 %v1320, %v1446
        %v1460 = vmul.f32 %v1324, %v1438
        %v1461 = vmul.f32 %v1324, %v1442
        %v1462 = vmul.f32 %v1324, %v1446
        %v1463 = vmul.f32 %v1328, %v1438
        %v1464 = vmul.f32 %v1328, %v1442
        %v1465 = vmul.f32 %v1328, %v1446
        %v1466 = vmul.f32 %v1332, %v1438
        %v1467 = vmul.f32 %v1332, %v1442
        %v1468 = vmul.f32 %v1332, %v1446
        %v1469 = vmul.f32 %v1336, %v1438
        %v1470 = vmul.f32 %v1336, %v1442
        %v1471 = vmul.f32 %v1336, %v1446
        %v1472 = vmul.f32 %v1340, %v1438
        %v1473 = vmul.f32 %v1340, %v1442
        %v1474 = vmul.f32 %v1340, %v1446
        %v1475 = vmul.f32 %v1344, %v1438
        %v1476 = vmul.f32 %v1344, %v1442
        %v1477 = vmul.f32 %v1344, %v1446
        %v1478 = vmul.f32 %v1348, %v1438
        %v1479 = vmul.f32 %v1348, %v1442
        %v1480 = vmul.f32 %v1348, %v1446
        %v1481 = vmul.f32 %v1352, %v1438
        %v1482 = vmul.f32 %v1352, %v1442
        %v1483 = vmul.f32 %v1352, %v1446
        %v1484 = vmul.f32 %v1356, %v1438
        %v1485 = vmul.f32 %v1356, %v1442
        %v1486 = vmul.f32 %v1356, %v1446
        %v1487 = vmul.f32 %v1360, %v1438
        %v1488 = vmul.f32 %v1360, %v1442
        %v1489 = vmul.f32 %v1360, %v1446
        %v1490 = vmul.f32 %v1364, %v1438
        %v1491 = vmul.f32 %v1364, %v1442
        %v1492 = vmul.f32 %v1364, %v1446
        %v1493 = vmul.f32 %v1368, %v1438
        %v1494 = vmul.f32 %v1368, %v1442
        %v1495 = vmul.f32 %v1368, %v1446
        %v1496 = vmul.f32 %v1372, %v1438
        %v1497 = vmul.f32 %v1372, %v1442
        %v1498 = vmul.f32 %v1372, %v1446
        %v1499 = vmul.f32 %v1376, %v1438
        %v1500 = vmul.f32 %v1376, %v1442
        %v1501 = vmul.f32 %v1376, %v1446
        %v1502 = vmul.f32 %v1380, %v1438
        %v1503 = vmul.f32 %v1380, %v1442
        %v1504 = vmul.f32 %v1380, %v1446
        %v1505 = vmul.f32 %v1384, %v1438
        %v1506 = vmul.f32 %v1384, %v1442
        %v1507 = vmul.f32 %v1384, %v1446
        %v1508 = vmul.f32 %v1388, %v1438
        %v1509 = vmul.f32 %v1388, %v1442
        %v1510 = vmul.f32 %v1388, %v1446
        %v1511 = vmul.f32 %v1392, %v1438
        %v1512 = vmul.f32 %v1392, %v1442
        %v1513 = vmul.f32 %v1392, %v1446
        %v1514 = vmul.f32 %v1396, %v1438
        %v1515 = vmul.f32 %v1396, %v1442
        %v1516 = vmul.f32 %v1396, %v1446
        %v1517 = vmul.f32 %v1400, %v1438
        %v1518 = vmul.f32 %v1400, %v1442
        %v1519 = vmul.f32 %v1400, %v1446
        %v1520 = vmul.f32 %v1404, %v1438
        %v1521 = vmul.f32 %v1404, %v1442
        %v1522 = vmul.f32 %v1404, %v1446
        %v1523 = vmul.f32 %v1408, %v1438
        %v1524 = vmul.f32 %v1408, %v1442
        %v1525 = vmul.f32 %v1408, %v1446
        %v1526 = vmul.f32 %v1412, %v1438
        %v1527 = vmul.f32 %v1412, %v1442
        %v1528 = vmul.f32 %v1412, %v1446
        %v1529 = vmul.f32 %v1416, %v1438
        %v1530 = vmul.f32 %v1416, %v1442
        %v1531 = vmul.f32 %v1416, %v1446
        %v1532 = vmul.f32 %v1420, %v1438
        %v1533 = vmul.f32 %v1420, %v1442
        %v1534 = vmul.f32 %v1420, %v1446
        %v1535 = vmul.f32 %v1424, %v1438
        %v1536 = vmul.f32 %v1424, %v1442
        %v1537 = vmul.f32 %v1424, %v1446
        %v1538 = vmul.f32 %v1428, %v1442
        %v1539 = vmul.f32 %v1428, %v1446
        %v1540 = vmul.f32 %v1432, %v1442
        %v1541 = vmul.f32 %v1432, %v1446
        %v1542 = vadd.f32 %v1212, %v1450
        %v1543 = vadd.f32 %v1213, %v1451
        %v1544 = vadd.f32 %v1214, %v1452
        %v1545 = vadd.f32 %v1215, %v1453
        %v1546 = vadd.f32 %v1216, %v1454
        %v1547 = vadd.f32 %v1217, %v1455
        %v1548 = vadd.f32 %v1218, %v1456
        %v1549 = vadd.f32 %v1219, %v1457
        %v1550 = vadd.f32 %v1220, %v1458
        %v1551 = vadd.f32 %v1221, %v1459
        %v1552 = vadd.f32 %v1222, %v1460
        %v1553 = vadd.f32 %v1223, %v1461
        %v1554 = vadd.f32 %v1224, %v1462
        %v1555 = vadd.f32 %v1225, %v1463
        %v1556 = vadd.f32 %v1226, %v1464
        %v1557 = vadd.f32 %v1227, %v1465
        %v1558 = vadd.f32 %v1228, %v1466
        %v1559 = vadd.f32 %v1229, %v1467
        %v1560 = vadd.f32 %v1230, %v1468
        %v1561 = vadd.f32 %v1231, %v1469
        %v1562 = vadd.f32 %v1232, %v1470
        %v1563 = vadd.f32 %v1233, %v1471
        %v1564 = vadd.f32 %v1234, %v1472
        %v1565 = vadd.f32 %v1235, %v1473
        %v1566 = vadd.f32 %v1236, %v1474
        %v1567 = vadd.f32 %v1237, %v1475
        %v1568 = vadd.f32 %v1238, %v1476
        %v1569 = vadd.f32 %v1239, %v1477
        %v1570 = vadd.f32 %v1240, %v1478
        %v1571 = vadd.f32 %v1241, %v1479
        %v1572 = vadd.f32 %v1242, %v1480
        %v1573 = vadd.f32 %v1243, %v1481
        %v1574 = vadd.f32 %v1244, %v1482
        %v1575 = vadd.f32 %v1245, %v1483
        %v1576 = vadd.f32 %v1246, %v1484
        %v1577 = vadd.f32 %v1247, %v1485
        %v1578 = vadd.f32 %v1248, %v1486
        %v1579 = vadd.f32 %v1249, %v1487
        %v1580 = vadd.f32 %v1250, %v1488
        %v1581 = vadd.f32 %v1251, %v1489
        %v1582 = vadd.f32 %v1252, %v1490
        %v1583 = vadd.f32 %v1253, %v1491
        %v1584 = vadd.f32 %v1254, %v1492
        %v1585 = vadd.f32 %v1255, %v1493
        %v1586 = vadd.f32 %v1256, %v1494
        %v1587 = vadd.f32 %v1257, %v1495
        %v1588 = vadd.f32 %v1258, %v1496
        %v1589 = vadd.f32 %v1259, %v1497
        %v1590 = vadd.f32 %v1260, %v1498
        %v1591 = vadd.f32 %v1261, %v1499
        %v1592 = vadd.f32 %v1262, %v1500
        %v1593 = vadd.f32 %v1263, %v1501
        %v1594 = vadd.f32 %v1264, %v1502
        %v1595 = vadd.f32 %v1265, %v1503
        %v1596 = vadd.f32 %v1266, %v1504
        %v1597 = vadd.f32 %v1267, %v1505
        %v1598 = vadd.f32 %v1268, %v1506
        %v1599 = vadd.f32 %v1269, %v1507
        %v1600 = vadd.f32 %v1270, %v1508
        %v1601 = vadd.f32 %v1271, %v1509
        %v1602 = vadd.f32 %v1272, %v1510
        %v1603 = vadd.f32 %v1273, %v1511
        %v1604 = vadd.f32 %v1274, %v1512
        %v1605 = vadd.f32 %v1275, %v1513
        %v1606 = vadd.f32 %v1276, %v1514
        %v1607 = vadd.f32 %v1277, %v1515
        %v1608 = vadd.f32 %v1278, %v1516
        %v1609 = vadd.f32 %v1279, %v1517
        %v1610 = vadd.f32 %v1280, %v1518
        %v1611 = vadd.f32 %v1281, %v1519
        %v1612 = vadd.f32 %v1282, %v1520
        %v1613 = vadd.f32 %v1283, %v1521
        %v1614 = vadd.f32 %v1284, %v1522
        %v1615 = vadd.f32 %v1285, %v1523
        %v1616 = vadd.f32 %v1286, %v1524
        %v1617 = vadd.f32 %v1287, %v1525
        %v1618 = vadd.f32 %v1288, %v1526
        %v1619 = vadd.f32 %v1289, %v1527
        %v1620 = vadd.f32 %v1290, %v1528
        %v1621 = vadd.f32 %v1291, %v1529
        %v1622 = vadd.f32 %v1292, %v1530
        %v1623 = vadd.f32 %v1293, %v1531
        %v1624 = vadd.f32 %v1294, %v1532
        %v1625 = vadd.f32 %v1295, %v1533
        %v1626 = vadd.f32 %v1296, %v1534
        %v1627 = vadd.f32 %v1297, %v1535
        %v1628 = vadd.f32 %v1298, %v1536
        %v1629 = vadd.f32 %v1299, %v1537
        %v1630 = vadd.f32 %v1300, %v1538
        %v1631 = vadd.f32 %v1301, %v1539
        %v1632 = vadd.f32 %v1302, %v1540
        %v1633 = vadd.f32 %v1303, %v1541
        %s1634 = scalar_lea.vmem [#allocation2], 2
        %v1635 = vld [vmem:[%s1634] ss:$4 sm:$0x7]
        %1637 = vset.pattern.permute.xlu0 0
        %1638 = vperm.xlu0 %1637, %v1003
        %v1639 = vpop.permute.xlu0 %1638
        %1642 = vset.pattern.permute.xlu0 0
        %1643 = vperm.xlu0 %1642, %v1004
        %v1644 = vpop.permute.xlu0 %1643
        %1647 = vset.pattern.permute.xlu0 0
        %1648 = vperm.xlu0 %1647, %v1005
        %v1649 = vpop.permute.xlu0 %1648
        %1652 = vset.pattern.permute.xlu0 0
        %1653 = vperm.xlu0 %1652, %v1006
        %v1654 = vpop.permute.xlu0 %1653
        %1657 = vset.pattern.permute.xlu0 0
        %1658 = vperm.xlu0 %1657, %v1007
        %v1659 = vpop.permute.xlu0 %1658
        %1662 = vset.pattern.permute.xlu0 0
        %1663 = vperm.xlu0 %1662, %v1008
        %v1664 = vpop.permute.xlu0 %1663
        %1667 = vset.pattern.permute.xlu0 0
        %1668 = vperm.xlu0 %1667, %v1009
        %v1669 = vpop.permute.xlu0 %1668
        %1672 = vset.pattern.permute.xlu0 0
        %1673 = vperm.xlu0 %1672, %v1010
        %v1674 = vpop.permute.xlu0 %1673
        %1677 = vset.pattern.permute.xlu0 0
        %1678 = vperm.xlu0 %1677, %v1011
        %v1679 = vpop.permute.xlu0 %1678
        %1682 = vset.pattern.permute.xlu0 0
        %1683 = vperm.xlu0 %1682, %v1012
        %v1684 = vpop.permute.xlu0 %1683
        %1687 = vset.pattern.permute.xlu0 0
        %1688 = vperm.xlu0 %1687, %v1013
        %v1689 = vpop.permute.xlu0 %1688
        %1692 = vset.pattern.permute.xlu0 0
        %1693 = vperm.xlu0 %1692, %v1014
        %v1694 = vpop.permute.xlu0 %1693
        %1697 = vset.pattern.permute.xlu0 0
        %1698 = vperm.xlu0 %1697, %v1015
        %v1699 = vpop.permute.xlu0 %1698
        %1702 = vset.pattern.permute.xlu0 0
        %1703 = vperm.xlu0 %1702, %v1016
        %v1704 = vpop.permute.xlu0 %1703
        %1707 = vset.pattern.permute.xlu0 0
        %1708 = vperm.xlu0 %1707, %v1017
        %v1709 = vpop.permute.xlu0 %1708
        %1712 = vset.pattern.permute.xlu0 0
        %1713 = vperm.xlu0 %1712, %v1018
        %v1714 = vpop.permute.xlu0 %1713
        %1717 = vset.pattern.permute.xlu0 0
        %1718 = vperm.xlu0 %1717, %v1019
        %v1719 = vpop.permute.xlu0 %1718
        %1722 = vset.pattern.permute.xlu0 0
        %1723 = vperm.xlu0 %1722, %v1020
        %v1724 = vpop.permute.xlu0 %1723
        %1727 = vset.pattern.permute.xlu0 0
        %1728 = vperm.xlu0 %1727, %v1021
        %v1729 = vpop.permute.xlu0 %1728
        %1732 = vset.pattern.permute.xlu0 0
        %1733 = vperm.xlu0 %1732, %v1022
        %v1734 = vpop.permute.xlu0 %1733
        %1737 = vset.pattern.permute.xlu0 0
        %1738 = vperm.xlu0 %1737, %v1023
        %v1739 = vpop.permute.xlu0 %1738
        %1742 = vset.pattern.permute.xlu0 0
        %1743 = vperm.xlu0 %1742, %v1024
        %v1744 = vpop.permute.xlu0 %1743
        %1747 = vset.pattern.permute.xlu0 0
        %1748 = vperm.xlu0 %1747, %v1025
        %v1749 = vpop.permute.xlu0 %1748
        %1752 = vset.pattern.permute.xlu0 0
        %1753 = vperm.xlu0 %1752, %v1026
        %v1754 = vpop.permute.xlu0 %1753
        %1757 = vset.pattern.permute.xlu0 0
        %1758 = vperm.xlu0 %1757, %v1027
        %v1759 = vpop.permute.xlu0 %1758
        %1762 = vset.pattern.permute.xlu0 0
        %1763 = vperm.xlu0 %1762, %v1028
        %v1764 = vpop.permute.xlu0 %1763
        %1767 = vset.pattern.permute.xlu0 0
        %1768 = vperm.xlu0 %1767, %v1029
        %v1769 = vpop.permute.xlu0 %1768
        %1772 = vset.pattern.permute.xlu0 0
        %1773 = vperm.xlu0 %1772, %v1030
        %v1774 = vpop.permute.xlu0 %1773
        %1777 = vset.pattern.permute.xlu0 0
        %1778 = vperm.xlu0 %1777, %v1031
        %v1779 = vpop.permute.xlu0 %1778
        %1782 = vset.pattern.permute.xlu0 0
        %1783 = vperm.xlu0 %1782, %v1032
        %v1784 = vpop.permute.xlu0 %1783
        %1787 = vset.pattern.permute.xlu0 0
        %1788 = vperm.xlu0 %1787, %v1033
        %v1789 = vpop.permute.xlu0 %1788
        %1792 = vset.pattern.permute.xlu0 0
        %1793 = vperm.xlu0 %1792, %v1034
        %v1794 = vpop.permute.xlu0 %1793
        %v1797 = vlaneseq
        %v1798 = vshrl.u32 %v1797, 7
        %v1799 = vsub.s32 0, %v1798
        %v1800 = vrot.slane %v1635, %v1799
        %v1801 = vlaneseq
        %v1802 = vshrl.u32 %v1801, 7
        %v1803 = vsub.s32 1, %v1802
        %v1804 = vrot.slane %v1635, %v1803
        %v1805 = vlaneseq
        %v1806 = vshrl.u32 %v1805, 7
        %v1807 = vsub.s32 2, %v1806
        %v1808 = vrot.slane %v1635, %v1807
        %v1812 = vmul.f32 %v1639, %v1800
        %v1813 = vmul.f32 %v1639, %v1804
        %v1814 = vmul.f32 %v1644, %v1800
        %v1815 = vmul.f32 %v1644, %v1804
        %v1816 = vmul.f32 %v1649, %v1800
        %v1817 = vmul.f32 %v1649, %v1804
        %v1818 = vmul.f32 %v1649, %v1808
        %v1819 = vmul.f32 %v1654, %v1800
        %v1820 = vmul.f32 %v1654, %v1804
        %v1821 = vmul.f32 %v1654, %v1808
        %v1822 = vmul.f32 %v1659, %v1800
        %v1823 = vmul.f32 %v1659, %v1804
        %v1824 = vmul.f32 %v1659, %v1808
        %v1825 = vmul.f32 %v1664, %v1800
        %v1826 = vmul.f32 %v1664, %v1804
        %v1827 = vmul.f32 %v1664, %v1808
        %v1828 = vmul.f32 %v1669, %v1800
        %v1829 = vmul.f32 %v1669, %v1804
        %v1830 = vmul.f32 %v1669, %v1808
        %v1831 = vmul.f32 %v1674, %v1800
        %v1832 = vmul.f32 %v1674, %v1804
        %v1833 = vmul.f32 %v1674, %v1808
        %v1834 = vmul.f32 %v1679, %v1800
        %v1835 = vmul.f32 %v1679, %v1804
        %v1836 = vmul.f32 %v1679, %v1808
        %v1837 = vmul.f32 %v1684, %v1800
        %v1838 = vmul.f32 %v1684, %v1804
        %v1839 = vmul.f32 %v1684, %v1808
        %v1840 = vmul.f32 %v1689, %v1800
        %v1841 = vmul.f32 %v1689, %v1804
        %v1842 = vmul.f32 %v1689, %v1808
        %v1843 = vmul.f32 %v1694, %v1800
        %v1844 = vmul.f32 %v1694, %v1804
        %v1845 = vmul.f32 %v1694, %v1808
        %v1846 = vmul.f32 %v1699, %v1800
        %v1847 = vmul.f32 %v1699, %v1804
        %v1848 = vmul.f32 %v1699, %v1808
        %v1849 = vmul.f32 %v1704, %v1800
        %v1850 = vmul.f32 %v1704, %v1804
        %v1851 = vmul.f32 %v1704, %v1808
        %v1852 = vmul.f32 %v1709, %v1800
        %v1853 = vmul.f32 %v1709, %v1804
        %v1854 = vmul.f32 %v1709, %v1808
        %v1855 = vmul.f32 %v1714, %v1800
        %v1856 = vmul.f32 %v1714, %v1804
        %v1857 = vmul.f32 %v1714, %v1808
        %v1858 = vmul.f32 %v1719, %v1800
        %v1859 = vmul.f32 %v1719, %v1804
        %v1860 = vmul.f32 %v1719, %v1808
        %v1861 = vmul.f32 %v1724, %v1800
        %v1862 = vmul.f32 %v1724, %v1804
        %v1863 = vmul.f32 %v1724, %v1808
        %v1864 = vmul.f32 %v1729, %v1800
        %v1865 = vmul.f32 %v1729, %v1804
        %v1866 = vmul.f32 %v1729, %v1808
        %v1867 = vmul.f32 %v1734, %v1800
        %v1868 = vmul.f32 %v1734, %v1804
        %v1869 = vmul.f32 %v1734, %v1808
        %v1870 = vmul.f32 %v1739, %v1800
        %v1871 = vmul.f32 %v1739, %v1804
        %v1872 = vmul.f32 %v1739, %v1808
        %v1873 = vmul.f32 %v1744, %v1800
        %v1874 = vmul.f32 %v1744, %v1804
        %v1875 = vmul.f32 %v1744, %v1808
        %v1876 = vmul.f32 %v1749, %v1800
        %v1877 = vmul.f32 %v1749, %v1804
        %v1878 = vmul.f32 %v1749, %v1808
        %v1879 = vmul.f32 %v1754, %v1800
        %v1880 = vmul.f32 %v1754, %v1804
        %v1881 = vmul.f32 %v1754, %v1808
        %v1882 = vmul.f32 %v1759, %v1800
        %v1883 = vmul.f32 %v1759, %v1804
        %v1884 = vmul.f32 %v1759, %v1808
        %v1885 = vmul.f32 %v1764, %v1800
        %v1886 = vmul.f32 %v1764, %v1804
        %v1887 = vmul.f32 %v1764, %v1808
        %v1888 = vmul.f32 %v1769, %v1800
        %v1889 = vmul.f32 %v1769, %v1804
        %v1890 = vmul.f32 %v1769, %v1808
        %v1891 = vmul.f32 %v1774, %v1800
        %v1892 = vmul.f32 %v1774, %v1804
        %v1893 = vmul.f32 %v1774, %v1808
        %v1894 = vmul.f32 %v1779, %v1800
        %v1895 = vmul.f32 %v1779, %v1804
        %v1896 = vmul.f32 %v1779, %v1808
        %v1897 = vmul.f32 %v1784, %v1800
        %v1898 = vmul.f32 %v1784, %v1804
        %v1899 = vmul.f32 %v1784, %v1808
        %v1900 = vmul.f32 %v1789, %v1804
        %v1901 = vmul.f32 %v1789, %v1808
        %v1902 = vmul.f32 %v1794, %v1804
        %v1903 = vmul.f32 %v1794, %v1808
        %v1904 = vadd.f32 %v1542, %v1812
        %v1905 = vadd.f32 %v1543, %v1813
        %v1906 = vadd.f32 %v1544, %v1814
        %v1907 = vadd.f32 %v1545, %v1815
        %v1908 = vadd.f32 %v1546, %v1816
        %v1909 = vadd.f32 %v1547, %v1817
        %v1910 = vadd.f32 %v1548, %v1818
        %v1911 = vadd.f32 %v1549, %v1819
        %v1912 = vadd.f32 %v1550, %v1820
        %v1913 = vadd.f32 %v1551, %v1821
        %v1914 = vadd.f32 %v1552, %v1822
        %v1915 = vadd.f32 %v1553, %v1823
        %v1916 = vadd.f32 %v1554, %v1824
        %v1917 = vadd.f32 %v1555, %v1825
        %v1918 = vadd.f32 %v1556, %v1826
        %v1919 = vadd.f32 %v1557, %v1827
        %v1920 = vadd.f32 %v1558, %v1828
        %v1921 = vadd.f32 %v1559, %v1829
        %v1922 = vadd.f32 %v1560, %v1830
        %v1923 = vadd.f32 %v1561, %v1831
        %v1924 = vadd.f32 %v1562, %v1832
        %v1925 = vadd.f32 %v1563, %v1833
        %v1926 = vadd.f32 %v1564, %v1834
        %v1927 = vadd.f32 %v1565, %v1835
        %v1928 = vadd.f32 %v1566, %v1836
        %v1929 = vadd.f32 %v1567, %v1837
        %v1930 = vadd.f32 %v1568, %v1838
        %v1931 = vadd.f32 %v1569, %v1839
        %v1932 = vadd.f32 %v1570, %v1840
        %v1933 = vadd.f32 %v1571, %v1841
        %v1934 = vadd.f32 %v1572, %v1842
        %v1935 = vadd.f32 %v1573, %v1843
        %v1936 = vadd.f32 %v1574, %v1844
        %v1937 = vadd.f32 %v1575, %v1845
        %v1938 = vadd.f32 %v1576, %v1846
        %v1939 = vadd.f32 %v1577, %v1847
        %v1940 = vadd.f32 %v1578, %v1848
        %v1941 = vadd.f32 %v1579, %v1849
        %v1942 = vadd.f32 %v1580, %v1850
        %v1943 = vadd.f32 %v1581, %v1851
        %v1944 = vadd.f32 %v1582, %v1852
        %v1945 = vadd.f32 %v1583, %v1853
        %v1946 = vadd.f32 %v1584, %v1854
        %v1947 = vadd.f32 %v1585, %v1855
        %v1948 = vadd.f32 %v1586, %v1856
        %v1949 = vadd.f32 %v1587, %v1857
        %v1950 = vadd.f32 %v1588, %v1858
        %v1951 = vadd.f32 %v1589, %v1859
        %v1952 = vadd.f32 %v1590, %v1860
        %v1953 = vadd.f32 %v1591, %v1861
        %v1954 = vadd.f32 %v1592, %v1862
        %v1955 = vadd.f32 %v1593, %v1863
        %v1956 = vadd.f32 %v1594, %v1864
        %v1957 = vadd.f32 %v1595, %v1865
        %v1958 = vadd.f32 %v1596, %v1866
        %v1959 = vadd.f32 %v1597, %v1867
        %v1960 = vadd.f32 %v1598, %v1868
        %v1961 = vadd.f32 %v1599, %v1869
        %v1962 = vadd.f32 %v1600, %v1870
        %v1963 = vadd.f32 %v1601, %v1871
        %v1964 = vadd.f32 %v1602, %v1872
        %v1965 = vadd.f32 %v1603, %v1873
        %v1966 = vadd.f32 %v1604, %v1874
        %v1967 = vadd.f32 %v1605, %v1875
        %v1968 = vadd.f32 %v1606, %v1876
        %v1969 = vadd.f32 %v1607, %v1877
        %v1970 = vadd.f32 %v1608, %v1878
        %v1971 = vadd.f32 %v1609, %v1879
        %v1972 = vadd.f32 %v1610, %v1880
        %v1973 = vadd.f32 %v1611, %v1881
        %v1974 = vadd.f32 %v1612, %v1882
        %v1975 = vadd.f32 %v1613, %v1883
        %v1976 = vadd.f32 %v1614, %v1884
        %v1977 = vadd.f32 %v1615, %v1885
        %v1978 = vadd.f32 %v1616, %v1886
        %v1979 = vadd.f32 %v1617, %v1887
        %v1980 = vadd.f32 %v1618, %v1888
        %v1981 = vadd.f32 %v1619, %v1889
        %v1982 = vadd.f32 %v1620, %v1890
        %v1983 = vadd.f32 %v1621, %v1891
        %v1984 = vadd.f32 %v1622, %v1892
        %v1985 = vadd.f32 %v1623, %v1893
        %v1986 = vadd.f32 %v1624, %v1894
        %v1987 = vadd.f32 %v1625, %v1895
        %v1988 = vadd.f32 %v1626, %v1896
        %v1989 = vadd.f32 %v1627, %v1897
        %v1990 = vadd.f32 %v1628, %v1898
        %v1991 = vadd.f32 %v1629, %v1899
        %v1992 = vadd.f32 %v1630, %v1900
        %v1993 = vadd.f32 %v1631, %v1901
        %v1994 = vadd.f32 %v1632, %v1902
        %v1995 = vadd.f32 %v1633, %v1903
        %v1996 = vadd.f32 %v1905, 0.0
        %v1997 = vadd.f32 %v1907, 0.0
        %v1998 = vadd.f32 %v1904, %v1909
        %v1999 = vadd.f32 %v1906, %v1912
        %v2000 = vadd.f32 %v1908, %v1915
        %v2001 = vadd.f32 %v1911, %v1918
        %v2002 = vadd.f32 %v1914, %v1921
        %v2003 = vadd.f32 %v1917, %v1924
        %v2004 = vadd.f32 %v1920, %v1927
        %v2005 = vadd.f32 %v1923, %v1930
        %v2006 = vadd.f32 %v1926, %v1933
        %v2007 = vadd.f32 %v1929, %v1936
        %v2008 = vadd.f32 %v1932, %v1939
        %v2009 = vadd.f32 %v1935, %v1942
        %v2010 = vadd.f32 %v1938, %v1945
        %v2011 = vadd.f32 %v1941, %v1948
        %v2012 = vadd.f32 %v1944, %v1951
        %v2013 = vadd.f32 %v1947, %v1954
        %v2014 = vadd.f32 %v1950, %v1957
        %v2015 = vadd.f32 %v1953, %v1960
        %v2016 = vadd.f32 %v1956, %v1963
        %v2017 = vadd.f32 %v1959, %v1966
        %v2018 = vadd.f32 %v1962, %v1969
        %v2019 = vadd.f32 %v1965, %v1972
        %v2020 = vadd.f32 %v1968, %v1975
        %v2021 = vadd.f32 %v1971, %v1978
        %v2022 = vadd.f32 %v1974, %v1981
        %v2023 = vadd.f32 %v1977, %v1984
        %v2024 = vadd.f32 %v1980, %v1987
        %v2025 = vadd.f32 %v1983, %v1990
        %v2026 = vadd.f32 %v1986, %v1992
        %v2027 = vadd.f32 %v1989, %v1994
        %v2028 = vadd.f32 %v1996, %v1910
        %v2029 = vadd.f32 %v1997, %v1913
        %v2030 = vadd.f32 %v1998, %v1916
        %v2031 = vadd.f32 %v1999, %v1919
        %v2032 = vadd.f32 %v2000, %v1922
        %v2033 = vadd.f32 %v2001, %v1925
        %v2034 = vadd.f32 %v2002, %v1928
        %v2035 = vadd.f32 %v2003, %v1931
        %v2036 = vadd.f32 %v2004, %v1934
        %v2037 = vadd.f32 %v2005, %v1937
        %v2038 = vadd.f32 %v2006, %v1940
        %v2039 = vadd.f32 %v2007, %v1943
        %v2040 = vadd.f32 %v2008, %v1946
        %v2041 = vadd.f32 %v2009, %v1949
        %v2042 = vadd.f32 %v2010, %v1952
        %v2043 = vadd.f32 %v2011, %v1955
        %v2044 = vadd.f32 %v2012, %v1958
        %v2045 = vadd.f32 %v2013, %v1961
        %v2046 = vadd.f32 %v2014, %v1964
        %v2047 = vadd.f32 %v2015, %v1967
        %v2048 = vadd.f32 %v2016, %v1970
        %v2049 = vadd.f32 %v2017, %v1973
        %v2050 = vadd.f32 %v2018, %v1976
        %v2051 = vadd.f32 %v2019, %v1979
        %v2052 = vadd.f32 %v2020, %v1982
        %v2053 = vadd.f32 %v2021, %v1985
        %v2054 = vadd.f32 %v2022, %v1988
        %v2055 = vadd.f32 %v2023, %v1991
        %v2056 = vadd.f32 %v2024, %v1993
        %v2057 = vadd.f32 %v2025, %v1995
        %v2058 = vadd.f32 %v2026, 0.0
        %v2059 = vadd.f32 %v2027, 0.0
        loop: start=0, step=1, limit=7
        $region41: #{simple_net_forward.1} parent=31 // loop_pre_header
          _
        $region42: #{simple_net_forward.1} parent=31 // loop_header
          %s2061 = sphi 0, %s2065
          %p2062 = scmp.ge.s32.totalorder %s2061, 7
          %v2066 = vphi %v2028, %v3587
          %v2067 = vphi %v2029, %v3588
          %v2068 = vphi %v2030, %v3589
          %v2069 = vphi %v2031, %v3590
          %v2070 = vphi %v2032, %v3591
          %v2071 = vphi %v2033, %v3592
          %v2072 = vphi %v2034, %v3593
          %v2073 = vphi %v2035, %v3594
          %v2074 = vphi %v2036, %v3595
          %v2075 = vphi %v2037, %v3596
          %v2076 = vphi %v2038, %v3597
          %v2077 = vphi %v2039, %v3598
          %v2078 = vphi %v2040, %v3599
          %v2079 = vphi %v2041, %v3600
          %v2080 = vphi %v2042, %v3601
          %v2081 = vphi %v2043, %v3602
          %v2082 = vphi %v2044, %v3603
          %v2083 = vphi %v2045, %v3604
          %v2084 = vphi %v2046, %v3605
          %v2085 = vphi %v2047, %v3606
          %v2086 = vphi %v2048, %v3607
          %v2087 = vphi %v2049, %v3608
          %v2088 = vphi %v2050, %v3609
          %v2089 = vphi %v2051, %v3610
          %v2090 = vphi %v2052, %v3611
          %v2091 = vphi %v2053, %v3612
          %v2092 = vphi %v2054, %v3613
          %v2093 = vphi %v2055, %v3614
          %v2094 = vphi %v2056, %v3615
          %v2095 = vphi %v2057, %v3616
          %v2096 = vphi %v2058, %v3617
          %v2097 = vphi %v2059, %v3618
        $region43: #{simple_net_forward.1} parent=31 // loop_header_branch
          %2064 = sbr.rel (%p2062) target = $region47
        $region44: #{simple_net_forward.1} parent=31 // loop_body
          %v2098 = vmax.f32 %v2066, 0.0
          %v2099 = vmax.f32 %v2067, 0.0
          %v2100 = vmax.f32 %v2068, 0.0
          %v2101 = vmax.f32 %v2069, 0.0
          %v2102 = vmax.f32 %v2070, 0.0
          %v2103 = vmax.f32 %v2071, 0.0
          %v2104 = vmax.f32 %v2072, 0.0
          %v2105 = vmax.f32 %v2073, 0.0
          %v2106 = vmax.f32 %v2074, 0.0
          %v2107 = vmax.f32 %v2075, 0.0
          %v2108 = vmax.f32 %v2076, 0.0
          %v2109 = vmax.f32 %v2077, 0.0
          %v2110 = vmax.f32 %v2078, 0.0
          %v2111 = vmax.f32 %v2079, 0.0
          %v2112 = vmax.f32 %v2080, 0.0
          %v2113 = vmax.f32 %v2081, 0.0
          %v2114 = vmax.f32 %v2082, 0.0
          %v2115 = vmax.f32 %v2083, 0.0
          %v2116 = vmax.f32 %v2084, 0.0
          %v2117 = vmax.f32 %v2085, 0.0
          %v2118 = vmax.f32 %v2086, 0.0
          %v2119 = vmax.f32 %v2087, 0.0
          %v2120 = vmax.f32 %v2088, 0.0
          %v2121 = vmax.f32 %v2089, 0.0
          %v2122 = vmax.f32 %v2090, 0.0
          %v2123 = vmax.f32 %v2091, 0.0
          %v2124 = vmax.f32 %v2092, 0.0
          %v2125 = vmax.f32 %v2093, 0.0
          %v2126 = vmax.f32 %v2094, 0.0
          %v2127 = vmax.f32 %v2095, 0.0
          %v2128 = vmax.f32 %v2096, 0.0
          %v2129 = vmax.f32 %v2097, 0.0
          %v2130 = vrot.slane %v2098, 7
          %v2131 = vrot.slane %v2099, 7
          %v2132 = vrot.slane %v2100, 7
          %v2133 = vrot.slane %v2101, 7
          %v2134 = vrot.slane %v2102, 7
          %v2135 = vrot.slane %v2103, 7
          %v2136 = vrot.slane %v2104, 7
          %v2137 = vrot.slane %v2105, 7
          %v2138 = vrot.slane %v2106, 7
          %v2139 = vrot.slane %v2107, 7
          %v2140 = vrot.slane %v2108, 7
          %v2141 = vrot.slane %v2109, 7
          %v2142 = vrot.slane %v2110, 7
          %v2143 = vrot.slane %v2111, 7
          %v2144 = vrot.slane %v2112, 7
          %v2145 = vrot.slane %v2113, 7
          %v2146 = vrot.slane %v2114, 7
          %v2147 = vrot.slane %v2115, 7
          %v2148 = vrot.slane %v2116, 7
          %v2149 = vrot.slane %v2117, 7
          %v2150 = vrot.slane %v2118, 7
          %v2151 = vrot.slane %v2119, 7
          %v2152 = vrot.slane %v2120, 7
          %v2153 = vrot.slane %v2121, 7
          %v2154 = vrot.slane %v2122, 7
          %v2155 = vrot.slane %v2123, 7
          %v2156 = vrot.slane %v2124, 7
          %v2157 = vrot.slane %v2125, 7
          %v2158 = vrot.slane %v2126, 7
          %v2159 = vrot.slane %v2127, 7
          %v2160 = vrot.slane %v2128, 7
          %v2161 = vrot.slane %v2129, 7
          %vm2162 = vcmp.lt.s32.totalorder %v233, 1
          %v2163 = vsel %vm2162, %v2160, %v2161
          %v2164 = vsel %vm2162, %v2159, %v2160
          %v2165 = vsel %vm2162, %v2158, %v2159
          %v2166 = vsel %vm2162, %v2157, %v2158
          %v2167 = vsel %vm2162, %v2156, %v2157
          %v2168 = vsel %vm2162, %v2155, %v2156
          %v2169 = vsel %vm2162, %v2154, %v2155
          %v2170 = vsel %vm2162, %v2153, %v2154
          %v2171 = vsel %vm2162, %v2152, %v2153
          %v2172 = vsel %vm2162, %v2151, %v2152
          %v2173 = vsel %vm2162, %v2150, %v2151
          %v2174 = vsel %vm2162, %v2149, %v2150
          %v2175 = vsel %vm2162, %v2148, %v2149
          %v2176 = vsel %vm2162, %v2147, %v2148
          %v2177 = vsel %vm2162, %v2146, %v2147
          %v2178 = vsel %vm2162, %v2145, %v2146
          %v2179 = vsel %vm2162, %v2144, %v2145
          %v2180 = vsel %vm2162, %v2143, %v2144
          %v2181 = vsel %vm2162, %v2142, %v2143
          %v2182 = vsel %vm2162, %v2141, %v2142
          %v2183 = vsel %vm2162, %v2140, %v2141
          %v2184 = vsel %vm2162, %v2139, %v2140
          %v2185 = vsel %vm2162, %v2138, %v2139
          %v2186 = vsel %vm2162, %v2137, %v2138
          %v2187 = vsel %vm2162, %v2136, %v2137
          %v2188 = vsel %vm2162, %v2135, %v2136
          %v2189 = vsel %vm2162, %v2134, %v2135
          %v2190 = vsel %vm2162, %v2133, %v2134
          %v2191 = vsel %vm2162, %v2132, %v2133
          %v2192 = vsel %vm2162, %v2131, %v2132
          %v2193 = vsel %vm2162, %v2130, %v2131
          %v2194 = vsel %vm2162, %v2161, %v2130
          %v2195 = vsel %vm649, 0.0, %v2194
          %v2196 = vsel %vm650, 0.0, %v2193
          %v2197 = vsel %vm651, 0.0, %v2192
          %v2198 = vsel %vm652, 0.0, %v2191
          %v2199 = vsel %vm653, 0.0, %v2190
          %v2200 = vsel %vm654, 0.0, %v2189
          %v2201 = vsel %vm655, 0.0, %v2188
          %v2202 = vsel %vm656, 0.0, %v2187
          %v2203 = vsel %vm657, 0.0, %v2186
          %v2204 = vsel %vm658, 0.0, %v2185
          %v2205 = vsel %vm659, 0.0, %v2184
          %v2206 = vsel %vm660, 0.0, %v2183
          %v2207 = vsel %vm661, 0.0, %v2182
          %v2208 = vsel %vm662, 0.0, %v2181
          %v2209 = vsel %vm663, 0.0, %v2180
          %v2210 = vsel %vm664, 0.0, %v2179
          %v2211 = vsel %vm665, 0.0, %v2178
          %v2212 = vsel %vm666, 0.0, %v2177
          %v2213 = vsel %vm667, 0.0, %v2176
          %v2214 = vsel %vm668, 0.0, %v2175
          %v2215 = vsel %vm669, 0.0, %v2174
          %v2216 = vsel %vm670, 0.0, %v2173
          %v2217 = vsel %vm671, 0.0, %v2172
          %v2218 = vsel %vm672, 0.0, %v2171
          %v2219 = vsel %vm673, 0.0, %v2170
          %v2220 = vsel %vm674, 0.0, %v2169
          %v2221 = vsel %vm675, 0.0, %v2168
          %v2222 = vsel %vm676, 0.0, %v2167
          %v2223 = vsel %vm677, 0.0, %v2166
          %v2224 = vsel %vm678, 0.0, %v2165
          %v2225 = vsel %vm679, 0.0, %v2164
          %v2226 = vsel %vm680, 0.0, %v2163
          %v2227 = vrot.slane %v2098, 1
          %v2228 = vrot.slane %v2099, 1
          %v2229 = vrot.slane %v2100, 1
          %v2230 = vrot.slane %v2101, 1
          %v2231 = vrot.slane %v2102, 1
          %v2232 = vrot.slane %v2103, 1
          %v2233 = vrot.slane %v2104, 1
          %v2234 = vrot.slane %v2105, 1
          %v2235 = vrot.slane %v2106, 1
          %v2236 = vrot.slane %v2107, 1
          %v2237 = vrot.slane %v2108, 1
          %v2238 = vrot.slane %v2109, 1
          %v2239 = vrot.slane %v2110, 1
          %v2240 = vrot.slane %v2111, 1
          %v2241 = vrot.slane %v2112, 1
          %v2242 = vrot.slane %v2113, 1
          %v2243 = vrot.slane %v2114, 1
          %v2244 = vrot.slane %v2115, 1
          %v2245 = vrot.slane %v2116, 1
          %v2246 = vrot.slane %v2117, 1
          %v2247 = vrot.slane %v2118, 1
          %v2248 = vrot.slane %v2119, 1
          %v2249 = vrot.slane %v2120, 1
          %v2250 = vrot.slane %v2121, 1
          %v2251 = vrot.slane %v2122, 1
          %v2252 = vrot.slane %v2123, 1
          %v2253 = vrot.slane %v2124, 1
          %v2254 = vrot.slane %v2125, 1
          %v2255 = vrot.slane %v2126, 1
          %v2256 = vrot.slane %v2127, 1
          %v2257 = vrot.slane %v2128, 1
          %v2258 = vrot.slane %v2129, 1
          %vm2259 = vcmp.lt.s32.totalorder %v233, 7
          %v2260 = vsel %vm2259, %v2257, %v2258
          %v2261 = vsel %vm2259, %v2256, %v2257
          %v2262 = vsel %vm2259, %v2255, %v2256
          %v2263 = vsel %vm2259, %v2254, %v2255
          %v2264 = vsel %vm2259, %v2253, %v2254
          %v2265 = vsel %vm2259, %v2252, %v2253
          %v2266 = vsel %vm2259, %v2251, %v2252
          %v2267 = vsel %vm2259, %v2250, %v2251
          %v2268 = vsel %vm2259, %v2249, %v2250
          %v2269 = vsel %vm2259, %v2248, %v2249
          %v2270 = vsel %vm2259, %v2247, %v2248
          %v2271 = vsel %vm2259, %v2246, %v2247
          %v2272 = vsel %vm2259, %v2245, %v2246
          %v2273 = vsel %vm2259, %v2244, %v2245
          %v2274 = vsel %vm2259, %v2243, %v2244
          %v2275 = vsel %vm2259, %v2242, %v2243
          %v2276 = vsel %vm2259, %v2241, %v2242
          %v2277 = vsel %vm2259, %v2240, %v2241
          %v2278 = vsel %vm2259, %v2239, %v2240
          %v2279 = vsel %vm2259, %v2238, %v2239
          %v2280 = vsel %vm2259, %v2237, %v2238
          %v2281 = vsel %vm2259, %v2236, %v2237
          %v2282 = vsel %vm2259, %v2235, %v2236
          %v2283 = vsel %vm2259, %v2234, %v2235
          %v2284 = vsel %vm2259, %v2233, %v2234
          %v2285 = vsel %vm2259, %v2232, %v2233
          %v2286 = vsel %vm2259, %v2231, %v2232
          %v2287 = vsel %vm2259, %v2230, %v2231
          %v2288 = vsel %vm2259, %v2229, %v2230
          %v2289 = vsel %vm2259, %v2228, %v2229
          %v2290 = vsel %vm2259, %v2227, %v2228
          %v2291 = vsel %vm2259, %v2258, %v2227
          %v2292 = vsel %vm681, 0.0, %v2290
          %v2293 = vsel %vm682, 0.0, %v2289
          %v2294 = vsel %vm683, 0.0, %v2288
          %v2295 = vsel %vm684, 0.0, %v2287
          %v2296 = vsel %vm685, 0.0, %v2286
          %v2297 = vsel %vm686, 0.0, %v2285
          %v2298 = vsel %vm687, 0.0, %v2284
          %v2299 = vsel %vm688, 0.0, %v2283
          %v2300 = vsel %vm689, 0.0, %v2282
          %v2301 = vsel %vm690, 0.0, %v2281
          %v2302 = vsel %vm691, 0.0, %v2280
          %v2303 = vsel %vm692, 0.0, %v2279
          %v2304 = vsel %vm693, 0.0, %v2278
          %v2305 = vsel %vm694, 0.0, %v2277
          %v2306 = vsel %vm695, 0.0, %v2276
          %v2307 = vsel %vm696, 0.0, %v2275
          %v2308 = vsel %vm697, 0.0, %v2274
          %v2309 = vsel %vm698, 0.0, %v2273
          %v2310 = vsel %vm699, 0.0, %v2272
          %v2311 = vsel %vm700, 0.0, %v2271
          %v2312 = vsel %vm701, 0.0, %v2270
          %v2313 = vsel %vm702, 0.0, %v2269
          %v2314 = vsel %vm703, 0.0, %v2268
          %v2315 = vsel %vm704, 0.0, %v2267
          %v2316 = vsel %vm705, 0.0, %v2266
          %v2317 = vsel %vm706, 0.0, %v2265
          %v2318 = vsel %vm707, 0.0, %v2264
          %v2319 = vsel %vm708, 0.0, %v2263
          %v2320 = vsel %vm709, 0.0, %v2262
          %v2321 = vsel %vm710, 0.0, %v2261
          %v2322 = vsel %vm711, 0.0, %v2260
          %v2323 = vsel %vm712, 0.0, %v2291
          %v2324 = vpack.c.bf16 %v2196, %v2195
          %v2325 = vpack.c.bf16 %v2198, %v2197
          %v2326 = vpack.c.bf16 %v2200, %v2199
          %v2327 = vpack.c.bf16 %v2202, %v2201
          %v2328 = vpack.c.bf16 %v2204, %v2203
          %v2329 = vpack.c.bf16 %v2206, %v2205
          %v2330 = vpack.c.bf16 %v2208, %v2207
          %v2331 = vpack.c.bf16 %v2210, %v2209
          %v2332 = vpack.c.bf16 %v2212, %v2211
          %v2333 = vpack.c.bf16 %v2214, %v2213
          %v2334 = vpack.c.bf16 %v2216, %v2215
          %v2335 = vpack.c.bf16 %v2218, %v2217
          %v2336 = vpack.c.bf16 %v2220, %v2219
          %v2337 = vpack.c.bf16 %v2222, %v2221
          %v2338 = vpack.c.bf16 %v2224, %v2223
          %v2339 = vpack.c.bf16 %v2226, %v2225
          %v2340 = vpack.c.bf16 %v2099, %v2098
          %v2341 = vpack.c.bf16 %v2101, %v2100
          %v2342 = vpack.c.bf16 %v2103, %v2102
          %v2343 = vpack.c.bf16 %v2105, %v2104
          %v2344 = vpack.c.bf16 %v2107, %v2106
          %v2345 = vpack.c.bf16 %v2109, %v2108
          %v2346 = vpack.c.bf16 %v2111, %v2110
          %v2347 = vpack.c.bf16 %v2113, %v2112
          %v2348 = vpack.c.bf16 %v2115, %v2114
          %v2349 = vpack.c.bf16 %v2117, %v2116
          %v2350 = vpack.c.bf16 %v2119, %v2118
          %v2351 = vpack.c.bf16 %v2121, %v2120
          %v2352 = vpack.c.bf16 %v2123, %v2122
          %v2353 = vpack.c.bf16 %v2125, %v2124
          %v2354 = vpack.c.bf16 %v2127, %v2126
          %v2355 = vpack.c.bf16 %v2129, %v2128
          %v2356 = vpack.c.bf16 %v2293, %v2292
          %v2357 = vpack.c.bf16 %v2295, %v2294
          %v2358 = vpack.c.bf16 %v2297, %v2296
          %v2359 = vpack.c.bf16 %v2299, %v2298
          %v2360 = vpack.c.bf16 %v2301, %v2300
          %v2361 = vpack.c.bf16 %v2303, %v2302
          %v2362 = vpack.c.bf16 %v2305, %v2304
          %v2363 = vpack.c.bf16 %v2307, %v2306
          %v2364 = vpack.c.bf16 %v2309, %v2308
          %v2365 = vpack.c.bf16 %v2311, %v2310
          %v2366 = vpack.c.bf16 %v2313, %v2312
          %v2367 = vpack.c.bf16 %v2315, %v2314
          %v2368 = vpack.c.bf16 %v2317, %v2316
          %v2369 = vpack.c.bf16 %v2319, %v2318
          %v2370 = vpack.c.bf16 %v2321, %v2320
          %v2371 = vpack.c.bf16 %v2323, %v2322
          %s2372 = smul.u32 %s2061, 144
          %s2373 = smul.addr %s2372, 4
          %s2374 = scalar_lea.vmem [#allocation4], %s2373
          %v2375 = vld [vmem:[%s2374] sm:$0xff]
          %v2376 = vld [vmem:[%s2374 + $0x8] sm:$0xf]
          %v2377 = vld [vmem:[%s2374 + $0xc] sm:$0xff]
          %v2378 = vld [vmem:[%s2374 + $0x14] sm:$0xf]
          %v2379 = vld [vmem:[%s2374 + $0x18] sm:$0xff]
          %v2380 = vld [vmem:[%s2374 + $0x20] sm:$0xf]
          %v2381 = vld [vmem:[%s2374 + $0x24] sm:$0xff]
          %v2382 = vld [vmem:[%s2374 + $0x2c] sm:$0xf]
          %v2383 = vld [vmem:[%s2374 + $0x30] sm:$0xff]
          %v2384 = vld [vmem:[%s2374 + $0x38] sm:$0xf]
          %v2385 = vld [vmem:[%s2374 + $0x3c] sm:$0xff]
          %v2386 = vld [vmem:[%s2374 + $0x44] sm:$0xf]
          %v2387 = vld [vmem:[%s2374 + $0x48] sm:$0xff]
          %v2388 = vld [vmem:[%s2374 + $0x50] sm:$0xf]
          %v2389 = vld [vmem:[%s2374 + $0x54] sm:$0xff]
          %v2390 = vld [vmem:[%s2374 + $0x5c] sm:$0xf]
          %v2391 = vld [vmem:[%s2374 + $0x60] sm:$0xff]
          %v2392 = vld [vmem:[%s2374 + $0x68] sm:$0xf]
          %v2393 = vld [vmem:[%s2374 + $0x6c] sm:$0xff]
          %v2394 = vld [vmem:[%s2374 + $0x74] sm:$0xf]
          %v2395 = vld [vmem:[%s2374 + $0x78] sm:$0xff]
          %v2396 = vld [vmem:[%s2374 + $0x80] sm:$0xf]
          %v2397 = vld [vmem:[%s2374 + $0x84] sm:$0xff]
          %v2398 = vld [vmem:[%s2374 + $0x8c] sm:$0xf]
          %v2399 = vld [vmem:[%s2374 + $0x90] sm:$0xff]
          %v2400 = vld [vmem:[%s2374 + $0x98] sm:$0xf]
          %v2401 = vld [vmem:[%s2374 + $0x9c] sm:$0xff]
          %v2402 = vld [vmem:[%s2374 + $0xa4] sm:$0xf]
          %v2403 = vld [vmem:[%s2374 + $0xa8] sm:$0xff]
          %v2404 = vld [vmem:[%s2374 + $0xb0] sm:$0xf]
          %v2405 = vld [vmem:[%s2374 + $0xb4] sm:$0xff]
          %v2406 = vld [vmem:[%s2374 + $0xbc] sm:$0xf]
          %v2407 = vld [vmem:[%s2374 + $0xc0] sm:$0xff]
          %v2408 = vld [vmem:[%s2374 + $0xc8] sm:$0xf]
          %v2409 = vld [vmem:[%s2374 + $0xcc] sm:$0xff]
          %v2410 = vld [vmem:[%s2374 + $0xd4] sm:$0xf]
          %v2411 = vld [vmem:[%s2374 + $0xd8] sm:$0xff]
          %v2412 = vld [vmem:[%s2374 + $0xe0] sm:$0xf]
          %v2413 = vld [vmem:[%s2374 + $0xe4] sm:$0xff]
          %v2414 = vld [vmem:[%s2374 + $0xec] sm:$0xf]
          %v2415 = vld [vmem:[%s2374 + $0xf0] sm:$0xff]
          %v2416 = vld [vmem:[%s2374 + $0xf8] sm:$0xf]
          %v2417 = vld [vmem:[%s2374 + $0xfc] sm:$0xff]
          %v2418 = vld [vmem:[%s2374 + $0x104] sm:$0xf]
          %v2419 = vld [vmem:[%s2374 + $0x108] sm:$0xff]
          %v2420 = vld [vmem:[%s2374 + $0x110] sm:$0xf]
          %v2421 = vld [vmem:[%s2374 + $0x114] sm:$0xff]
          %v2422 = vld [vmem:[%s2374 + $0x11c] sm:$0xf]
          %v2423 = vld [vmem:[%s2374 + $0x120] sm:$0xff]
          %v2424 = vld [vmem:[%s2374 + $0x128] sm:$0xf]
          %v2425 = vld [vmem:[%s2374 + $0x12c] sm:$0xff]
          %v2426 = vld [vmem:[%s2374 + $0x134] sm:$0xf]
          %v2427 = vld [vmem:[%s2374 + $0x138] sm:$0xff]
          %v2428 = vld [vmem:[%s2374 + $0x140] sm:$0xf]
          %v2429 = vld [vmem:[%s2374 + $0x144] sm:$0xff]
          %v2430 = vld [vmem:[%s2374 + $0x14c] sm:$0xf]
          %v2431 = vld [vmem:[%s2374 + $0x150] sm:$0xff]
          %v2432 = vld [vmem:[%s2374 + $0x158] sm:$0xf]
          %v2433 = vld [vmem:[%s2374 + $0x15c] sm:$0xff]
          %v2434 = vld [vmem:[%s2374 + $0x164] sm:$0xf]
          %v2435 = vld [vmem:[%s2374 + $0x168] sm:$0xff]
          %v2436 = vld [vmem:[%s2374 + $0x170] sm:$0xf]
          %v2437 = vld [vmem:[%s2374 + $0x174] sm:$0xff]
          %v2438 = vld [vmem:[%s2374 + $0x17c] sm:$0xf]
          %v2439 = vld [vmem:[%s2374 + $0x180] sm:$0xff]
          %v2440 = vld [vmem:[%s2374 + $0x188] sm:$0xf]
          %v2441 = vld [vmem:[%s2374 + $0x18c] sm:$0xff]
          %v2442 = vld [vmem:[%s2374 + $0x194] sm:$0xf]
          %v2443 = vld [vmem:[%s2374 + $0x198] sm:$0xff]
          %v2444 = vld [vmem:[%s2374 + $0x1a0] sm:$0xf]
          %v2445 = vld [vmem:[%s2374 + $0x1a4] sm:$0xff]
          %v2446 = vld [vmem:[%s2374 + $0x1ac] sm:$0xf]
          %v2447 = vld [vmem:[%s2374 + $0x1b0] sm:$0xff]
          %v2448 = vld [vmem:[%s2374 + $0x1b8] sm:$0xf]
          %v2449 = vld [vmem:[%s2374 + $0x1bc] sm:$0xff]
          %v2450 = vld [vmem:[%s2374 + $0x1c4] sm:$0xf]
          %v2451 = vld [vmem:[%s2374 + $0x1c8] sm:$0xff]
          %v2452 = vld [vmem:[%s2374 + $0x1d0] sm:$0xf]
          %v2453 = vld [vmem:[%s2374 + $0x1d4] sm:$0xff]
          %v2454 = vld [vmem:[%s2374 + $0x1dc] sm:$0xf]
          %v2455 = vld [vmem:[%s2374 + $0x1e0] sm:$0xff]
          %v2456 = vld [vmem:[%s2374 + $0x1e8] sm:$0xf]
          %v2457 = vld [vmem:[%s2374 + $0x1ec] sm:$0xff]
          %v2458 = vld [vmem:[%s2374 + $0x1f4] sm:$0xf]
          %v2459 = vld [vmem:[%s2374 + $0x1f8] sm:$0xff]
          %v2460 = vld [vmem:[%s2374 + $0x200] sm:$0xf]
          %v2461 = vld [vmem:[%s2374 + $0x204] sm:$0xff]
          %v2462 = vld [vmem:[%s2374 + $0x20c] sm:$0xf]
          %v2463 = vld [vmem:[%s2374 + $0x210] sm:$0xff]
          %v2464 = vld [vmem:[%s2374 + $0x218] sm:$0xf]
          %v2465 = vld [vmem:[%s2374 + $0x21c] sm:$0xff]
          %v2466 = vld [vmem:[%s2374 + $0x224] sm:$0xf]
          %v2467 = vld [vmem:[%s2374 + $0x228] sm:$0xff]
          %v2468 = vld [vmem:[%s2374 + $0x230] sm:$0xf]
          %v2469 = vld [vmem:[%s2374 + $0x234] sm:$0xff]
          %v2470 = vld [vmem:[%s2374 + $0x23c] sm:$0xf]
          %v2567 = vunpack.c.l.b16 %v2375
          %v2568 = vunpack.c.h.b16 %v2375
          %v2569 = vunpack.c.l.b16 %v2376
          %v2570 = vunpack.c.l.b16 %v2377
          %v2571 = vunpack.c.h.b16 %v2377
          %v2572 = vunpack.c.l.b16 %v2378
          %v2573 = vunpack.c.l.b16 %v2379
          %v2574 = vunpack.c.h.b16 %v2379
          %v2575 = vunpack.c.l.b16 %v2380
          %v2576 = vunpack.c.l.b16 %v2381
          %v2577 = vunpack.c.h.b16 %v2381
          %v2578 = vunpack.c.l.b16 %v2382
          %v2579 = vunpack.c.l.b16 %v2383
          %v2580 = vunpack.c.h.b16 %v2383
          %v2581 = vunpack.c.l.b16 %v2384
          %v2582 = vunpack.c.l.b16 %v2385
          %v2583 = vunpack.c.h.b16 %v2385
          %v2584 = vunpack.c.l.b16 %v2386
          %v2585 = vunpack.c.l.b16 %v2387
          %v2586 = vunpack.c.h.b16 %v2387
          %v2587 = vunpack.c.l.b16 %v2388
          %v2588 = vunpack.c.l.b16 %v2389
          %v2589 = vunpack.c.h.b16 %v2389
          %v2590 = vunpack.c.l.b16 %v2390
          %v2591 = vunpack.c.l.b16 %v2391
          %v2592 = vunpack.c.h.b16 %v2391
          %v2593 = vunpack.c.l.b16 %v2392
          %v2594 = vunpack.c.l.b16 %v2393
          %v2595 = vunpack.c.h.b16 %v2393
          %v2596 = vunpack.c.l.b16 %v2394
          %v2597 = vunpack.c.l.b16 %v2395
          %v2598 = vunpack.c.h.b16 %v2395
          %v2599 = vunpack.c.l.b16 %v2396
          %v2600 = vunpack.c.l.b16 %v2397
          %v2601 = vunpack.c.h.b16 %v2397
          %v2602 = vunpack.c.l.b16 %v2398
          %v2603 = vunpack.c.l.b16 %v2399
          %v2604 = vunpack.c.h.b16 %v2399
          %v2605 = vunpack.c.l.b16 %v2400
          %v2606 = vunpack.c.l.b16 %v2401
          %v2607 = vunpack.c.h.b16 %v2401
          %v2608 = vunpack.c.l.b16 %v2402
          %v2609 = vunpack.c.l.b16 %v2403
          %v2610 = vunpack.c.h.b16 %v2403
          %v2611 = vunpack.c.l.b16 %v2404
          %v2612 = vunpack.c.l.b16 %v2405
          %v2613 = vunpack.c.h.b16 %v2405
          %v2614 = vunpack.c.l.b16 %v2406
          %v2615 = vunpack.c.l.b16 %v2407
          %v2616 = vunpack.c.h.b16 %v2407
          %v2617 = vunpack.c.l.b16 %v2408
          %v2618 = vunpack.c.l.b16 %v2409
          %v2619 = vunpack.c.h.b16 %v2409
          %v2620 = vunpack.c.l.b16 %v2410
          %v2621 = vunpack.c.l.b16 %v2411
          %v2622 = vunpack.c.h.b16 %v2411
          %v2623 = vunpack.c.l.b16 %v2412
          %v2624 = vunpack.c.l.b16 %v2413
          %v2625 = vunpack.c.h.b16 %v2413
          %v2626 = vunpack.c.l.b16 %v2414
          %v2627 = vunpack.c.l.b16 %v2415
          %v2628 = vunpack.c.h.b16 %v2415
          %v2629 = vunpack.c.l.b16 %v2416
          %v2630 = vunpack.c.l.b16 %v2417
          %v2631 = vunpack.c.h.b16 %v2417
          %v2632 = vunpack.c.l.b16 %v2418
          %v2633 = vunpack.c.l.b16 %v2419
          %v2634 = vunpack.c.h.b16 %v2419
          %v2635 = vunpack.c.l.b16 %v2420
          %v2636 = vunpack.c.l.b16 %v2421
          %v2637 = vunpack.c.h.b16 %v2421
          %v2638 = vunpack.c.l.b16 %v2422
          %v2639 = vunpack.c.l.b16 %v2423
          %v2640 = vunpack.c.h.b16 %v2423
          %v2641 = vunpack.c.l.b16 %v2424
          %v2642 = vunpack.c.l.b16 %v2425
          %v2643 = vunpack.c.h.b16 %v2425
          %v2644 = vunpack.c.l.b16 %v2426
          %v2645 = vunpack.c.l.b16 %v2427
          %v2646 = vunpack.c.h.b16 %v2427
          %v2647 = vunpack.c.l.b16 %v2428
          %v2648 = vunpack.c.l.b16 %v2429
          %v2649 = vunpack.c.h.b16 %v2429
          %v2650 = vunpack.c.l.b16 %v2430
          %v2651 = vunpack.c.l.b16 %v2431
          %v2652 = vunpack.c.h.b16 %v2431
          %v2653 = vunpack.c.l.b16 %v2432
          %v2654 = vunpack.c.l.b16 %v2433
          %v2655 = vunpack.c.h.b16 %v2433
          %v2656 = vunpack.c.l.b16 %v2434
          %v2657 = vunpack.c.l.b16 %v2435
          %v2658 = vunpack.c.h.b16 %v2435
          %v2659 = vunpack.c.l.b16 %v2436
          %v2660 = vunpack.c.l.b16 %v2437
          %v2661 = vunpack.c.h.b16 %v2437
          %v2662 = vunpack.c.l.b16 %v2438
          %v2663 = vunpack.c.l.b16 %v2439
          %v2664 = vunpack.c.h.b16 %v2439
          %v2665 = vunpack.c.l.b16 %v2440
          %v2666 = vunpack.c.l.b16 %v2441
          %v2667 = vunpack.c.h.b16 %v2441
          %v2668 = vunpack.c.l.b16 %v2442
          %v2669 = vunpack.c.l.b16 %v2443
          %v2670 = vunpack.c.h.b16 %v2443
          %v2671 = vunpack.c.l.b16 %v2444
          %v2672 = vunpack.c.l.b16 %v2445
          %v2673 = vunpack.c.h.b16 %v2445
          %v2674 = vunpack.c.l.b16 %v2446
          %v2675 = vunpack.c.l.b16 %v2447
          %v2676 = vunpack.c.h.b16 %v2447
          %v2677 = vunpack.c.l.b16 %v2448
          %v2678 = vunpack.c.l.b16 %v2449
          %v2679 = vunpack.c.h.b16 %v2449
          %v2680 = vunpack.c.l.b16 %v2450
          %v2681 = vunpack.c.l.b16 %v2451
          %v2682 = vunpack.c.h.b16 %v2451
          %v2683 = vunpack.c.l.b16 %v2452
          %v2684 = vunpack.c.l.b16 %v2453
          %v2685 = vunpack.c.h.b16 %v2453
          %v2686 = vunpack.c.l.b16 %v2454
          %v2687 = vunpack.c.l.b16 %v2455
          %v2688 = vunpack.c.h.b16 %v2455
          %v2689 = vunpack.c.l.b16 %v2456
          %v2690 = vunpack.c.l.b16 %v2457
          %v2691 = vunpack.c.h.b16 %v2457
          %v2692 = vunpack.c.l.b16 %v2458
          %v2693 = vunpack.c.l.b16 %v2459
          %v2694 = vunpack.c.h.b16 %v2459
          %v2695 = vunpack.c.l.b16 %v2460
          %v2696 = vunpack.c.l.b16 %v2461
          %v2697 = vunpack.c.h.b16 %v2461
          %v2698 = vunpack.c.l.b16 %v2462
          %v2699 = vunpack.c.l.b16 %v2463
          %v2700 = vunpack.c.h.b16 %v2463
          %v2701 = vunpack.c.l.b16 %v2464
          %v2702 = vunpack.c.l.b16 %v2465
          %v2703 = vunpack.c.h.b16 %v2465
          %v2704 = vunpack.c.l.b16 %v2466
          %v2705 = vunpack.c.l.b16 %v2467
          %v2706 = vunpack.c.h.b16 %v2467
          %v2707 = vunpack.c.l.b16 %v2468
          %v2708 = vunpack.c.l.b16 %v2469
          %v2709 = vunpack.c.h.b16 %v2469
          %v2710 = vunpack.c.l.b16 %v2470
          %v2711 = vpack.c.b16 %v2570, %v2567
          %v2712 = vpack.c.b16 %v2571, %v2568
          %v2713 = vpack.c.b16 %v2572, %v2569
          %v2714 = vpack.c.b16 %v2576, %v2573
          %v2715 = vpack.c.b16 %v2577, %v2574
          %v2716 = vpack.c.b16 %v2578, %v2575
          %v2717 = vpack.c.b16 %v2582, %v2579
          %v2718 = vpack.c.b16 %v2583, %v2580
          %v2719 = vpack.c.b16 %v2584, %v2581
          %v2720 = vpack.c.b16 %v2588, %v2585
          %v2721 = vpack.c.b16 %v2589, %v2586
          %v2722 = vpack.c.b16 %v2590, %v2587
          %v2723 = vpack.c.b16 %v2594, %v2591
          %v2724 = vpack.c.b16 %v2595, %v2592
          %v2725 = vpack.c.b16 %v2596, %v2593
          %v2726 = vpack.c.b16 %v2600, %v2597
          %v2727 = vpack.c.b16 %v2601, %v2598
          %v2728 = vpack.c.b16 %v2602, %v2599
          %v2729 = vpack.c.b16 %v2606, %v2603
          %v2730 = vpack.c.b16 %v2607, %v2604
          %v2731 = vpack.c.b16 %v2608, %v2605
          %v2732 = vpack.c.b16 %v2612, %v2609
          %v2733 = vpack.c.b16 %v2613, %v2610
          %v2734 = vpack.c.b16 %v2614, %v2611
          %v2735 = vpack.c.b16 %v2618, %v2615
          %v2736 = vpack.c.b16 %v2619, %v2616
          %v2737 = vpack.c.b16 %v2620, %v2617
          %v2738 = vpack.c.b16 %v2624, %v2621
          %v2739 = vpack.c.b16 %v2625, %v2622
          %v2740 = vpack.c.b16 %v2626, %v2623
          %v2741 = vpack.c.b16 %v2630, %v2627
          %v2742 = vpack.c.b16 %v2631, %v2628
          %v2743 = vpack.c.b16 %v2632, %v2629
          %v2744 = vpack.c.b16 %v2636, %v2633
          %v2745 = vpack.c.b16 %v2637, %v2634
          %v2746 = vpack.c.b16 %v2638, %v2635
          %v2747 = vpack.c.b16 %v2642, %v2639
          %v2748 = vpack.c.b16 %v2643, %v2640
          %v2749 = vpack.c.b16 %v2644, %v2641
          %v2750 = vpack.c.b16 %v2648, %v2645
          %v2751 = vpack.c.b16 %v2649, %v2646
          %v2752 = vpack.c.b16 %v2650, %v2647
          %v2753 = vpack.c.b16 %v2654, %v2651
          %v2754 = vpack.c.b16 %v2655, %v2652
          %v2755 = vpack.c.b16 %v2656, %v2653
          %v2756 = vpack.c.b16 %v2660, %v2657
          %v2757 = vpack.c.b16 %v2661, %v2658
          %v2758 = vpack.c.b16 %v2662, %v2659
          %v2759 = vpack.c.b16 %v2666, %v2663
          %v2760 = vpack.c.b16 %v2667, %v2664
          %v2761 = vpack.c.b16 %v2668, %v2665
          %v2762 = vpack.c.b16 %v2672, %v2669
          %v2763 = vpack.c.b16 %v2673, %v2670
          %v2764 = vpack.c.b16 %v2674, %v2671
          %v2765 = vpack.c.b16 %v2678, %v2675
          %v2766 = vpack.c.b16 %v2679, %v2676
          %v2767 = vpack.c.b16 %v2680, %v2677
          %v2768 = vpack.c.b16 %v2684, %v2681
          %v2769 = vpack.c.b16 %v2685, %v2682
          %v2770 = vpack.c.b16 %v2686, %v2683
          %v2771 = vpack.c.b16 %v2690, %v2687
          %v2772 = vpack.c.b16 %v2691, %v2688
          %v2773 = vpack.c.b16 %v2692, %v2689
          %v2774 = vpack.c.b16 %v2696, %v2693
          %v2775 = vpack.c.b16 %v2697, %v2694
          %v2776 = vpack.c.b16 %v2698, %v2695
          %v2777 = vpack.c.b16 %v2702, %v2699
          %v2778 = vpack.c.b16 %v2703, %v2700
          %v2779 = vpack.c.b16 %v2704, %v2701
          %v2780 = vpack.c.b16 %v2708, %v2705
          %v2781 = vpack.c.b16 %v2709, %v2706
          %v2782 = vpack.c.b16 %v2710, %v2707
          %2855 = vmatprep.subr.bf16.mxu0 %v2712
          %2856 = vmatpush1.bf16.msra.mxu0 %v2711
          %2857 = vmatprep.subr.bf16.mxu0 %v2715
          %2858 = vmatpush1.bf16.msra.mxu0 %v2714
          %2859 = vmatprep.subr.bf16.mxu0 %v2718
          %2860 = vmatpush1.bf16.msra.mxu0 %v2717
          %2861 = vmatprep.subr.bf16.mxu0 %v2721
          %2862 = vmatpush1.bf16.msra.mxu0 %v2720
          %2863 = vmatprep.subr.bf16.mxu0 %v2724
          %2864 = vmatpush1.bf16.msra.mxu0 %v2723
          %2865 = vmatprep.subr.bf16.mxu0 %v2727
          %2866 = vmatpush1.bf16.msra.mxu0 %v2726
          %2867 = vmatprep.subr.bf16.mxu0 %v2730
          %2868 = vmatpush1.bf16.msra.mxu0 %v2729
          %2869 = vmatprep.subr.bf16.mxu0 %v2733
          %2870 = vmatpush1.bf16.msra.mxu0 %v2732
          %2871 = vmatprep.subr.bf16.mxu0 %v2736
          %2872 = vmatpush1.bf16.msra.mxu0 %v2735
          %2873 = vmatprep.subr.bf16.mxu0 %v2739
          %2874 = vmatpush1.bf16.msra.mxu0 %v2738
          %2875 = vmatprep.subr.bf16.mxu0 %v2742
          %2876 = vmatpush1.bf16.msra.mxu0 %v2741
          %2877 = vmatprep.subr.bf16.mxu0 %v2745
          %2878 = vmatpush1.bf16.msra.mxu0 %v2744
          %2879 = vmatprep.subr.bf16.mxu0 %v2748
          %2880 = vmatpush1.bf16.msra.mxu0 %v2747
          %2881 = vmatprep.subr.bf16.mxu0 %v2751
          %2882 = vmatpush1.bf16.msra.mxu0 %v2750
          %2883 = vmatprep.subr.bf16.mxu0 %v2754
          %2884 = vmatpush1.bf16.msra.mxu0 %v2753
          %2885 = vmatprep.subr.bf16.mxu0 %v2757
          %2886 = vmatpush1.bf16.msra.mxu0 %v2756
          %2887 = vmatprep.mubr.bf16.mxu0 %v2340
          %2888 = vmatmul.mubr.bf16.gmra.mrb[0].mxu0 %v2324
          %v2889 = vpop.f32.mrb[0].mxu0
          %v2890 = vadd.f32 0.0, %v2889
          %v2891 = vpop.f32.mrb[0].mxu0
          %v2892 = vadd.f32 0.0, %v2891
          %v2893 = vpop.f32.mrb[0].mxu0
          %v2894 = vadd.f32 0.0, %v2893
          %v2895 = vpop.f32.mrb[0].mxu0
          %v2896 = vadd.f32 0.0, %v2895
          %2897 = vmatprep.mubr.bf16.mxu0 %v2341
          %2898 = vmatmul.mubr.bf16.gmra.mrb[0].mxu0 %v2325
          %v2899 = vpop.f32.mrb[0].mxu0
          %v2900 = vadd.f32 0.0, %v2899
          %v2901 = vpop.f32.mrb[0].mxu0
          %v2902 = vadd.f32 0.0, %v2901
          %v2903 = vpop.f32.mrb[0].mxu0
          %v2904 = vadd.f32 0.0, %v2903
          %v2905 = vpop.f32.mrb[0].mxu0
          %v2906 = vadd.f32 0.0, %v2905
          %2907 = vmatprep.mubr.bf16.mxu0 %v2342
          %2908 = vmatmul.mubr.bf16.gmra.mrb[0].mxu0 %v2326
          %v2909 = vpop.f32.mrb[0].mxu0
          %v2910 = vadd.f32 0.0, %v2909
          %v2911 = vpop.f32.mrb[0].mxu0
          %v2912 = vadd.f32 0.0, %v2911
          %v2913 = vpop.f32.mrb[0].mxu0
          %v2914 = vadd.f32 0.0, %v2913
          %v2915 = vpop.f32.mrb[0].mxu0
          %v2916 = vadd.f32 0.0, %v2915
          %2917 = vmatprep.mubr.bf16.mxu0 %v2343
          %2918 = vmatmul.mubr.bf16.gmra.mrb[0].mxu0 %v2327
          %v2919 = vpop.f32.mrb[0].mxu0
          %v2920 = vadd.f32 0.0, %v2919
          %v2921 = vpop.f32.mrb[0].mxu0
          %v2922 = vadd.f32 0.0, %v2921
          %v2923 = vpop.f32.mrb[0].mxu0
          %v2924 = vadd.f32 0.0, %v2923
          %v2925 = vpop.f32.mrb[0].mxu0
          %v2926 = vadd.f32 0.0, %v2925
          %2927 = vmatprep.mubr.bf16.mxu0 %v2344
          %2928 = vmatmul.mubr.bf16.gmra.mrb[0].mxu0 %v2328
          %v2929 = vpop.f32.mrb[0].mxu0
          %v2930 = vadd.f32 0.0, %v2929
          %v2931 = vpop.f32.mrb[0].mxu0
          %v2932 = vadd.f32 0.0, %v2931
          %v2933 = vpop.f32.mrb[0].mxu0
          %v2934 = vadd.f32 0.0, %v2933
          %v2935 = vpop.f32.mrb[0].mxu0
          %v2936 = vadd.f32 0.0, %v2935
          %2937 = vmatprep.mubr.bf16.mxu0 %v2345
          %2938 = vmatmul.mubr.bf16.gmra.mrb[0].mxu0 %v2329
          %v2939 = vpop.f32.mrb[0].mxu0
          %v2940 = vadd.f32 0.0, %v2939
          %v2941 = vpop.f32.mrb[0].mxu0
          %v2942 = vadd.f32 0.0, %v2941
          %v2943 = vpop.f32.mrb[0].mxu0
          %v2944 = vadd.f32 0.0, %v2943
          %v2945 = vpop.f32.mrb[0].mxu0
          %v2946 = vadd.f32 0.0, %v2945
          %2947 = vmatprep.mubr.bf16.mxu0 %v2346
          %2948 = vmatmul.mubr.bf16.gmra.mrb[0].mxu0 %v2330
          %v2949 = vpop.f32.mrb[0].mxu0
          %v2950 = vadd.f32 0.0, %v2949
          %v2951 = vpop.f32.mrb[0].mxu0
          %v2952 = vadd.f32 0.0, %v2951
          %v2953 = vpop.f32.mrb[0].mxu0
          %v2954 = vadd.f32 0.0, %v2953
          %v2955 = vpop.f32.mrb[0].mxu0
          %v2956 = vadd.f32 0.0, %v2955
          %2957 = vmatprep.mubr.bf16.mxu0 %v2347
          %2958 = vmatmul.mubr.bf16.gmra.mrb[0].mxu0 %v2331
          %v2959 = vpop.f32.mrb[0].mxu0
          %v2960 = vadd.f32 0.0, %v2959
          %v2961 = vpop.f32.mrb[0].mxu0
          %v2962 = vadd.f32 0.0, %v2961
          %v2963 = vpop.f32.mrb[0].mxu0
          %v2964 = vadd.f32 0.0, %v2963
          %v2965 = vpop.f32.mrb[0].mxu0
          %v2966 = vadd.f32 0.0, %v2965
          %2967 = vmatprep.mubr.bf16.mxu0 %v2348
          %2968 = vmatmul.mubr.bf16.gmra.mrb[0].mxu0 %v2332
          %v2969 = vpop.f32.mrb[0].mxu0
          %v2970 = vadd.f32 0.0, %v2969
          %v2971 = vpop.f32.mrb[0].mxu0
          %v2972 = vadd.f32 0.0, %v2971
          %v2973 = vpop.f32.mrb[0].mxu0
          %v2974 = vadd.f32 0.0, %v2973
          %v2975 = vpop.f32.mrb[0].mxu0
          %v2976 = vadd.f32 0.0, %v2975
          %2977 = vmatprep.mubr.bf16.mxu0 %v2349
          %2978 = vmatmul.mubr.bf16.gmra.mrb[0].mxu0 %v2333
          %v2979 = vpop.f32.mrb[0].mxu0
          %v2980 = vadd.f32 0.0, %v2979
          %v2981 = vpop.f32.mrb[0].mxu0
          %v2982 = vadd.f32 0.0, %v2981
          %v2983 = vpop.f32.mrb[0].mxu0
          %v2984 = vadd.f32 0.0, %v2983
          %v2985 = vpop.f32.mrb[0].mxu0
          %v2986 = vadd.f32 0.0, %v2985
          %2987 = vmatprep.mubr.bf16.mxu0 %v2350
          %2988 = vmatmul.mubr.bf16.gmra.mrb[0].mxu0 %v2334
          %v2989 = vpop.f32.mrb[0].mxu0
          %v2990 = vadd.f32 0.0, %v2989
          %v2991 = vpop.f32.mrb[0].mxu0
          %v2992 = vadd.f32 0.0, %v2991
          %v2993 = vpop.f32.mrb[0].mxu0
          %v2994 = vadd.f32 0.0, %v2993
          %v2995 = vpop.f32.mrb[0].mxu0
          %v2996 = vadd.f32 0.0, %v2995
          %2997 = vmatprep.mubr.bf16.mxu0 %v2351
          %2998 = vmatmul.mubr.bf16.gmra.mrb[0].mxu0 %v2335
          %v2999 = vpop.f32.mrb[0].mxu0
          %v3000 = vadd.f32 0.0, %v2999
          %v3001 = vpop.f32.mrb[0].mxu0
          %v3002 = vadd.f32 0.0, %v3001
          %v3003 = vpop.f32.mrb[0].mxu0
          %v3004 = vadd.f32 0.0, %v3003
          %v3005 = vpop.f32.mrb[0].mxu0
          %v3006 = vadd.f32 0.0, %v3005
          %3007 = vmatprep.mubr.bf16.mxu0 %v2352
          %3008 = vmatmul.mubr.bf16.gmra.mrb[0].mxu0 %v2336
          %v3009 = vpop.f32.mrb[0].mxu0
          %v3010 = vadd.f32 0.0, %v3009
          %v3011 = vpop.f32.mrb[0].mxu0
          %v3012 = vadd.f32 0.0, %v3011
          %v3013 = vpop.f32.mrb[0].mxu0
          %v3014 = vadd.f32 0.0, %v3013
          %v3015 = vpop.f32.mrb[0].mxu0
          %v3016 = vadd.f32 0.0, %v3015
          %3017 = vmatprep.mubr.bf16.mxu0 %v2353
          %3018 = vmatmul.mubr.bf16.gmra.mrb[0].mxu0 %v2337
          %v3019 = vpop.f32.mrb[0].mxu0
          %v3020 = vadd.f32 0.0, %v3019
          %v3021 = vpop.f32.mrb[0].mxu0
          %v3022 = vadd.f32 0.0, %v3021
          %v3023 = vpop.f32.mrb[0].mxu0
          %v3024 = vadd.f32 0.0, %v3023
          %v3025 = vpop.f32.mrb[0].mxu0
          %v3026 = vadd.f32 0.0, %v3025
          %3027 = vmatprep.mubr.bf16.mxu0 %v2354
          %3028 = vmatmul.mubr.bf16.gmra.mrb[0].mxu0 %v2338
          %v3029 = vpop.f32.mrb[0].mxu0
          %v3030 = vadd.f32 0.0, %v3029
          %v3031 = vpop.f32.mrb[0].mxu0
          %v3032 = vadd.f32 0.0, %v3031
          %v3033 = vpop.f32.mrb[0].mxu0
          %v3034 = vadd.f32 0.0, %v3033
          %v3035 = vpop.f32.mrb[0].mxu0
          %v3036 = vadd.f32 0.0, %v3035
          %3037 = vmatprep.mubr.bf16.mxu0 %v2355
          %3038 = vmatmul.mubr.bf16.gmra.mrb[0].mxu0 %v2339
          %v3039 = vpop.f32.mrb[0].mxu0
          %v3040 = vpop.f32.mrb[0].mxu0
          %v3041 = vadd.f32 0.0, %v3040
          %v3042 = vpop.f32.mrb[0].mxu0
          %v3043 = vpop.f32.mrb[0].mxu0
          %v3044 = vadd.f32 0.0, %v3043
          %3045 = vdwg.mxu0
          %3046 = vmatprep.subr.bf16.mxu0 %v2760
          %3047 = vmatpush1.bf16.msra.mxu0 %v2759
          %3048 = vmatprep.subr.bf16.mxu0 %v2763
          %3049 = vmatpush1.bf16.msra.mxu0 %v2762
          %3050 = vmatprep.subr.bf16.mxu0 %v2766
          %3051 = vmatpush1.bf16.msra.mxu0 %v2765
          %3052 = vmatprep.subr.bf16.mxu0 %v2769
          %3053 = vmatpush1.bf16.msra.mxu0 %v2768
          %3054 = vmatprep.subr.bf16.mxu0 %v2772
          %3055 = vmatpush1.bf16.msra.mxu0 %v2771
          %3056 = vmatprep.subr.bf16.mxu0 %v2775
          %3057 = vmatpush1.bf16.msra.mxu0 %v2774
          %3058 = vmatprep.subr.bf16.mxu0 %v2778
          %3059 = vmatpush1.bf16.msra.mxu0 %v2777
          %3060 = vmatprep.subr.bf16.mxu0 %v2781
          %3061 = vmatpush1.bf16.msra.mxu0 %v2780
          %3062 = vmatprep.subr.bf16.mxu0 0
          %3063 = vmatpush1.bf16.msra.mxu0 0
          %3064 = vmatprep.subr.bf16.mxu0 0
          %3065 = vmatpush1.bf16.msra.mxu0 0
          %3066 = vmatprep.subr.bf16.mxu0 0
          %3067 = vmatpush1.bf16.msra.mxu0 0
          %3068 = vmatprep.subr.bf16.mxu0 0
          %3069 = vmatpush1.bf16.msra.mxu0 0
          %3070 = vmatprep.subr.bf16.mxu0 0
          %3071 = vmatpush1.bf16.msra.mxu0 0
          %3072 = vmatprep.subr.bf16.mxu0 0
          %3073 = vmatpush1.bf16.msra.mxu0 0
          %3074 = vmatprep.subr.bf16.mxu0 0
          %3075 = vmatpush1.bf16.msra.mxu0 0
          %3076 = vmatprep.subr.bf16.mxu0 0
          %3077 = vmatpush1.bf16.msra.mxu0 0
          %3078 = vmatprep.mubr.bf16.mxu0 0
          %3079 = vmatmul.mubr.bf16.gmra.mrb[0].mxu0 %v2356
          %v3080 = vpop.f32.mrb[0].mxu0
          %v3081 = vadd.f32 %v2890, %v3080
          %v3082 = vpop.f32.mrb[0].mxu0
          %v3083 = vadd.f32 %v2892, %v3082
          %v3084 = vpop.f32.mrb[0].mxu0
          %v3085 = vadd.f32 %v2894, %v3084
          %v3086 = vpop.f32.mrb[0].mxu0
          %v3087 = vadd.f32 %v2896, %v3086
          %3088 = vmatprep.mubr.bf16.mxu0 0
          %3089 = vmatmul.mubr.bf16.gmra.mrb[0].mxu0 %v2357
          %v3090 = vpop.f32.mrb[0].mxu0
          %v3091 = vadd.f32 %v2900, %v3090
          %v3092 = vpop.f32.mrb[0].mxu0
          %v3093 = vadd.f32 %v2902, %v3092
          %v3094 = vpop.f32.mrb[0].mxu0
          %v3095 = vadd.f32 %v2904, %v3094
          %v3096 = vpop.f32.mrb[0].mxu0
          %v3097 = vadd.f32 %v2906, %v3096
          %3098 = vmatprep.mubr.bf16.mxu0 0
          %3099 = vmatmul.mubr.bf16.gmra.mrb[0].mxu0 %v2358
          %v3100 = vpop.f32.mrb[0].mxu0
          %v3101 = vadd.f32 %v2910, %v3100
          %v3102 = vpop.f32.mrb[0].mxu0
          %v3103 = vadd.f32 %v2912, %v3102
          %v3104 = vpop.f32.mrb[0].mxu0
          %v3105 = vadd.f32 %v2914, %v3104
          %v3106 = vpop.f32.mrb[0].mxu0
          %v3107 = vadd.f32 %v2916, %v3106
          %3108 = vmatprep.mubr.bf16.mxu0 0
          %3109 = vmatmul.mubr.bf16.gmra.mrb[0].mxu0 %v2359
          %v3110 = vpop.f32.mrb[0].mxu0
          %v3111 = vadd.f32 %v2920, %v3110
          %v3112 = vpop.f32.mrb[0].mxu0
          %v3113 = vadd.f32 %v2922, %v3112
          %v3114 = vpop.f32.mrb[0].mxu0
          %v3115 = vadd.f32 %v2924, %v3114
          %v3116 = vpop.f32.mrb[0].mxu0
          %v3117 = vadd.f32 %v2926, %v3116
          %3118 = vmatprep.mubr.bf16.mxu0 0
          %3119 = vmatmul.mubr.bf16.gmra.mrb[0].mxu0 %v2360
          %v3120 = vpop.f32.mrb[0].mxu0
          %v3121 = vadd.f32 %v2930, %v3120
          %v3122 = vpop.f32.mrb[0].mxu0
          %v3123 = vadd.f32 %v2932, %v3122
          %v3124 = vpop.f32.mrb[0].mxu0
          %v3125 = vadd.f32 %v2934, %v3124
          %v3126 = vpop.f32.mrb[0].mxu0
          %v3127 = vadd.f32 %v2936, %v3126
          %3128 = vmatprep.mubr.bf16.mxu0 0
          %3129 = vmatmul.mubr.bf16.gmra.mrb[0].mxu0 %v2361
          %v3130 = vpop.f32.mrb[0].mxu0
          %v3131 = vadd.f32 %v2940, %v3130
          %v3132 = vpop.f32.mrb[0].mxu0
          %v3133 = vadd.f32 %v2942, %v3132
          %v3134 = vpop.f32.mrb[0].mxu0
          %v3135 = vadd.f32 %v2944, %v3134
          %v3136 = vpop.f32.mrb[0].mxu0
          %v3137 = vadd.f32 %v2946, %v3136
          %3138 = vmatprep.mubr.bf16.mxu0 0
          %3139 = vmatmul.mubr.bf16.gmra.mrb[0].mxu0 %v2362
          %v3140 = vpop.f32.mrb[0].mxu0
          %v3141 = vadd.f32 %v2950, %v3140
          %v3142 = vpop.f32.mrb[0].mxu0
          %v3143 = vadd.f32 %v2952, %v3142
          %v3144 = vpop.f32.mrb[0].mxu0
          %v3145 = vadd.f32 %v2954, %v3144
          %v3146 = vpop.f32.mrb[0].mxu0
          %v3147 = vadd.f32 %v2956, %v3146
          %3148 = vmatprep.mubr.bf16.mxu0 0
          %3149 = vmatmul.mubr.bf16.gmra.mrb[0].mxu0 %v2363
          %v3150 = vpop.f32.mrb[0].mxu0
          %v3151 = vadd.f32 %v2960, %v3150
          %v3152 = vpop.f32.mrb[0].mxu0
          %v3153 = vadd.f32 %v2962, %v3152
          %v3154 = vpop.f32.mrb[0].mxu0
          %v3155 = vadd.f32 %v2964, %v3154
          %v3156 = vpop.f32.mrb[0].mxu0
          %v3157 = vadd.f32 %v2966, %v3156
          %3158 = vmatprep.mubr.bf16.mxu0 0
          %3159 = vmatmul.mubr.bf16.gmra.mrb[0].mxu0 %v2364
          %v3160 = vpop.f32.mrb[0].mxu0
          %v3161 = vadd.f32 %v2970, %v3160
          %v3162 = vpop.f32.mrb[0].mxu0
          %v3163 = vadd.f32 %v2972, %v3162
          %v3164 = vpop.f32.mrb[0].mxu0
          %v3165 = vadd.f32 %v2974, %v3164
          %v3166 = vpop.f32.mrb[0].mxu0
          %v3167 = vadd.f32 %v2976, %v3166
          %3168 = vmatprep.mubr.bf16.mxu0 0
          %3169 = vmatmul.mubr.bf16.gmra.mrb[0].mxu0 %v2365
          %v3170 = vpop.f32.mrb[0].mxu0
          %v3171 = vadd.f32 %v2980, %v3170
          %v3172 = vpop.f32.mrb[0].mxu0
          %v3173 = vadd.f32 %v2982, %v3172
          %v3174 = vpop.f32.mrb[0].mxu0
          %v3175 = vadd.f32 %v2984, %v3174
          %v3176 = vpop.f32.mrb[0].mxu0
          %v3177 = vadd.f32 %v2986, %v3176
          %3178 = vmatprep.mubr.bf16.mxu0 0
          %3179 = vmatmul.mubr.bf16.gmra.mrb[0].mxu0 %v2366
          %v3180 = vpop.f32.mrb[0].mxu0
          %v3181 = vadd.f32 %v2990, %v3180
          %v3182 = vpop.f32.mrb[0].mxu0
          %v3183 = vadd.f32 %v2992, %v3182
          %v3184 = vpop.f32.mrb[0].mxu0
          %v3185 = vadd.f32 %v2994, %v3184
          %v3186 = vpop.f32.mrb[0].mxu0
          %v3187 = vadd.f32 %v2996, %v3186
          %3188 = vmatprep.mubr.bf16.mxu0 0
          %3189 = vmatmul.mubr.bf16.gmra.mrb[0].mxu0 %v2367
          %v3190 = vpop.f32.mrb[0].mxu0
          %v3191 = vadd.f32 %v3000, %v3190
          %v3192 = vpop.f32.mrb[0].mxu0
          %v3193 = vadd.f32 %v3002, %v3192
          %v3194 = vpop.f32.mrb[0].mxu0
          %v3195 = vadd.f32 %v3004, %v3194
          %v3196 = vpop.f32.mrb[0].mxu0
          %v3197 = vadd.f32 %v3006, %v3196
          %3198 = vmatprep.mubr.bf16.mxu0 0
          %3199 = vmatmul.mubr.bf16.gmra.mrb[0].mxu0 %v2368
          %v3200 = vpop.f32.mrb[0].mxu0
          %v3201 = vadd.f32 %v3010, %v3200
          %v3202 = vpop.f32.mrb[0].mxu0
          %v3203 = vadd.f32 %v3012, %v3202
          %v3204 = vpop.f32.mrb[0].mxu0
          %v3205 = vadd.f32 %v3014, %v3204
          %v3206 = vpop.f32.mrb[0].mxu0
          %v3207 = vadd.f32 %v3016, %v3206
          %3208 = vmatprep.mubr.bf16.mxu0 0
          %3209 = vmatmul.mubr.bf16.gmra.mrb[0].mxu0 %v2369
          %v3210 = vpop.f32.mrb[0].mxu0
          %v3211 = vadd.f32 %v3020, %v3210
          %v3212 = vpop.f32.mrb[0].mxu0
          %v3213 = vadd.f32 %v3022, %v3212
          %v3214 = vpop.f32.mrb[0].mxu0
          %v3215 = vadd.f32 %v3024, %v3214
          %v3216 = vpop.f32.mrb[0].mxu0
          %v3217 = vadd.f32 %v3026, %v3216
          %3218 = vmatprep.mubr.bf16.mxu0 0
          %3219 = vmatmul.mubr.bf16.gmra.mrb[0].mxu0 %v2370
          %v3220 = vpop.f32.mrb[0].mxu0
          %v3221 = vadd.f32 %v3030, %v3220
          %v3222 = vpop.f32.mrb[0].mxu0
          %v3223 = vadd.f32 %v3032, %v3222
          %v3224 = vpop.f32.mrb[0].mxu0
          %v3225 = vadd.f32 %v3034, %v3224
          %v3226 = vpop.f32.mrb[0].mxu0
          %v3227 = vadd.f32 %v3036, %v3226
          %3228 = vmatprep.mubr.bf16.mxu0 0
          %3229 = vmatmul.mubr.bf16.gmra.mrb[0].mxu0 %v2371
          %v3230 = vpop.f32.mrb[0].mxu0
          %v3231 = vpop.f32.mrb[0].mxu0
          %v3232 = vadd.f32 %v3041, %v3231
          %v3233 = vpop.f32.mrb[0].mxu0
          %v3234 = vpop.f32.mrb[0].mxu0
          %v3235 = vadd.f32 %v3044, %v3234
          %3236 = vdwg.mxu0
          %3237 = vmatprep.subr.bf16.mxu0 0
          %3238 = vmatpush1.bf16.msra.mxu0 %v2713
          %3239 = vmatprep.subr.bf16.mxu0 0
          %3240 = vmatpush1.bf16.msra.mxu0 %v2716
          %3241 = vmatprep.subr.bf16.mxu0 0
          %3242 = vmatpush1.bf16.msra.mxu0 %v2719
          %3243 = vmatprep.subr.bf16.mxu0 0
          %3244 = vmatpush1.bf16.msra.mxu0 %v2722
          %3245 = vmatprep.subr.bf16.mxu0 0
          %3246 = vmatpush1.bf16.msra.mxu0 %v2725
          %3247 = vmatprep.subr.bf16.mxu0 0
          %3248 = vmatpush1.bf16.msra.mxu0 %v2728
          %3249 = vmatprep.subr.bf16.mxu0 0
          %3250 = vmatpush1.bf16.msra.mxu0 %v2731
          %3251 = vmatprep.subr.bf16.mxu0 0
          %3252 = vmatpush1.bf16.msra.mxu0 %v2734
          %3253 = vmatprep.subr.bf16.mxu0 0
          %3254 = vmatpush1.bf16.msra.mxu0 %v2737
          %3255 = vmatprep.subr.bf16.mxu0 0
          %3256 = vmatpush1.bf16.msra.mxu0 %v2740
          %3257 = vmatprep.subr.bf16.mxu0 0
          %3258 = vmatpush1.bf16.msra.mxu0 %v2743
          %3259 = vmatprep.subr.bf16.mxu0 0
          %3260 = vmatpush1.bf16.msra.mxu0 %v2746
          %3261 = vmatprep.subr.bf16.mxu0 0
          %3262 = vmatpush1.bf16.msra.mxu0 %v2749
          %3263 = vmatprep.subr.bf16.mxu0 0
          %3264 = vmatpush1.bf16.msra.mxu0 %v2752
          %3265 = vmatprep.subr.bf16.mxu0 0
          %3266 = vmatpush1.bf16.msra.mxu0 %v2755
          %3267 = vmatprep.subr.bf16.mxu0 0
          %3268 = vmatpush1.bf16.msra.mxu0 %v2758
          %3269 = vmatprep.mubr.bf16.mxu0 %v2340
          %3270 = vmatmul.mubr.bf16.gmra.mrb[0].mxu0 %v2324
          %v3271 = vpop.f32.mrb[0].mxu0
          %v3272 = vpop.f32.mrb[0].mxu0
          %v3273 = vpop.f32.mrb[0].mxu0
          %v3274 = vpop.f32.mrb[0].mxu0
          %3275 = vmatprep.mubr.bf16.mxu0 %v2341
          %3276 = vmatmul.mubr.bf16.gmra.mrb[0].mxu0 %v2325
          %v3277 = vpop.f32.mrb[0].mxu0
          %v3278 = vadd.f32 0.0, %v3277
          %v3279 = vpop.f32.mrb[0].mxu0
          %v3280 = vpop.f32.mrb[0].mxu0
          %v3281 = vadd.f32 0.0, %v3280
          %v3282 = vpop.f32.mrb[0].mxu0
          %3283 = vmatprep.mubr.bf16.mxu0 %v2342
          %3284 = vmatmul.mubr.bf16.gmra.mrb[0].mxu0 %v2326
          %v3285 = vpop.f32.mrb[0].mxu0
          %v3286 = vadd.f32 0.0, %v3285
          %v3287 = vpop.f32.mrb[0].mxu0
          %v3288 = vpop.f32.mrb[0].mxu0
          %v3289 = vadd.f32 0.0, %v3288
          %v3290 = vpop.f32.mrb[0].mxu0
          %3291 = vmatprep.mubr.bf16.mxu0 %v2343
          %3292 = vmatmul.mubr.bf16.gmra.mrb[0].mxu0 %v2327
          %v3293 = vpop.f32.mrb[0].mxu0
          %v3294 = vadd.f32 0.0, %v3293
          %v3295 = vpop.f32.mrb[0].mxu0
          %v3296 = vpop.f32.mrb[0].mxu0
          %v3297 = vadd.f32 0.0, %v3296
          %v3298 = vpop.f32.mrb[0].mxu0
          %3299 = vmatprep.mubr.bf16.mxu0 %v2344
          %3300 = vmatmul.mubr.bf16.gmra.mrb[0].mxu0 %v2328
          %v3301 = vpop.f32.mrb[0].mxu0
          %v3302 = vadd.f32 0.0, %v3301
          %v3303 = vpop.f32.mrb[0].mxu0
          %v3304 = vpop.f32.mrb[0].mxu0
          %v3305 = vadd.f32 0.0, %v3304
          %v3306 = vpop.f32.mrb[0].mxu0
          %3307 = vmatprep.mubr.bf16.mxu0 %v2345
          %3308 = vmatmul.mubr.bf16.gmra.mrb[0].mxu0 %v2329
          %v3309 = vpop.f32.mrb[0].mxu0
          %v3310 = vadd.f32 0.0, %v3309
          %v3311 = vpop.f32.mrb[0].mxu0
          %v3312 = vpop.f32.mrb[0].mxu0
          %v3313 = vadd.f32 0.0, %v3312
          %v3314 = vpop.f32.mrb[0].mxu0
          %3315 = vmatprep.mubr.bf16.mxu0 %v2346
          %3316 = vmatmul.mubr.bf16.gmra.mrb[0].mxu0 %v2330
          %v3317 = vpop.f32.mrb[0].mxu0
          %v3318 = vadd.f32 0.0, %v3317
          %v3319 = vpop.f32.mrb[0].mxu0
          %v3320 = vpop.f32.mrb[0].mxu0
          %v3321 = vadd.f32 0.0, %v3320
          %v3322 = vpop.f32.mrb[0].mxu0
          %3323 = vmatprep.mubr.bf16.mxu0 %v2347
          %3324 = vmatmul.mubr.bf16.gmra.mrb[0].mxu0 %v2331
          %v3325 = vpop.f32.mrb[0].mxu0
          %v3326 = vadd.f32 0.0, %v3325
          %v3327 = vpop.f32.mrb[0].mxu0
          %v3328 = vpop.f32.mrb[0].mxu0
          %v3329 = vadd.f32 0.0, %v3328
          %v3330 = vpop.f32.mrb[0].mxu0
          %3331 = vmatprep.mubr.bf16.mxu0 %v2348
          %3332 = vmatmul.mubr.bf16.gmra.mrb[0].mxu0 %v2332
          %v3333 = vpop.f32.mrb[0].mxu0
          %v3334 = vadd.f32 0.0, %v3333
          %v3335 = vpop.f32.mrb[0].mxu0
          %v3336 = vpop.f32.mrb[0].mxu0
          %v3337 = vadd.f32 0.0, %v3336
          %v3338 = vpop.f32.mrb[0].mxu0
          %3339 = vmatprep.mubr.bf16.mxu0 %v2349
          %3340 = vmatmul.mubr.bf16.gmra.mrb[0].mxu0 %v2333
          %v3341 = vpop.f32.mrb[0].mxu0
          %v3342 = vadd.f32 0.0, %v3341
          %v3343 = vpop.f32.mrb[0].mxu0
          %v3344 = vpop.f32.mrb[0].mxu0
          %v3345 = vadd.f32 0.0, %v3344
          %v3346 = vpop.f32.mrb[0].mxu0
          %3347 = vmatprep.mubr.bf16.mxu0 %v2350
          %3348 = vmatmul.mubr.bf16.gmra.mrb[0].mxu0 %v2334
          %v3349 = vpop.f32.mrb[0].mxu0
          %v3350 = vadd.f32 0.0, %v3349
          %v3351 = vpop.f32.mrb[0].mxu0
          %v3352 = vpop.f32.mrb[0].mxu0
          %v3353 = vadd.f32 0.0, %v3352
          %v3354 = vpop.f32.mrb[0].mxu0
          %3355 = vmatprep.mubr.bf16.mxu0 %v2351
          %3356 = vmatmul.mubr.bf16.gmra.mrb[0].mxu0 %v2335
          %v3357 = vpop.f32.mrb[0].mxu0
          %v3358 = vadd.f32 0.0, %v3357
          %v3359 = vpop.f32.mrb[0].mxu0
          %v3360 = vpop.f32.mrb[0].mxu0
          %v3361 = vadd.f32 0.0, %v3360
          %v3362 = vpop.f32.mrb[0].mxu0
          %3363 = vmatprep.mubr.bf16.mxu0 %v2352
          %3364 = vmatmul.mubr.bf16.gmra.mrb[0].mxu0 %v2336
          %v3365 = vpop.f32.mrb[0].mxu0
          %v3366 = vadd.f32 0.0, %v3365
          %v3367 = vpop.f32.mrb[0].mxu0
          %v3368 = vpop.f32.mrb[0].mxu0
          %v3369 = vadd.f32 0.0, %v3368
          %v3370 = vpop.f32.mrb[0].mxu0
          %3371 = vmatprep.mubr.bf16.mxu0 %v2353
          %3372 = vmatmul.mubr.bf16.gmra.mrb[0].mxu0 %v2337
          %v3373 = vpop.f32.mrb[0].mxu0
          %v3374 = vadd.f32 0.0, %v3373
          %v3375 = vpop.f32.mrb[0].mxu0
          %v3376 = vpop.f32.mrb[0].mxu0
          %v3377 = vadd.f32 0.0, %v3376
          %v3378 = vpop.f32.mrb[0].mxu0
          %3379 = vmatprep.mubr.bf16.mxu0 %v2354
          %3380 = vmatmul.mubr.bf16.gmra.mrb[0].mxu0 %v2338
          %v3381 = vpop.f32.mrb[0].mxu0
          %v3382 = vadd.f32 0.0, %v3381
          %v3383 = vpop.f32.mrb[0].mxu0
          %v3384 = vpop.f32.mrb[0].mxu0
          %v3385 = vadd.f32 0.0, %v3384
          %v3386 = vpop.f32.mrb[0].mxu0
          %3387 = vmatprep.mubr.bf16.mxu0 %v2355
          %3388 = vmatmul.mubr.bf16.gmra.mrb[0].mxu0 %v2339
          %v3389 = vpop.f32.mrb[0].mxu0
          %v3390 = vadd.f32 0.0, %v3389
          %v3391 = vpop.f32.mrb[0].mxu0
          %v3392 = vpop.f32.mrb[0].mxu0
          %v3393 = vadd.f32 0.0, %v3392
          %v3394 = vpop.f32.mrb[0].mxu0
          %3395 = vdwg.mxu0
          %3396 = vmatprep.subr.bf16.mxu0 0
          %3397 = vmatpush1.bf16.msra.mxu0 %v2761
          %3398 = vmatprep.subr.bf16.mxu0 0
          %3399 = vmatpush1.bf16.msra.mxu0 %v2764
          %3400 = vmatprep.subr.bf16.mxu0 0
          %3401 = vmatpush1.bf16.msra.mxu0 %v2767
          %3402 = vmatprep.subr.bf16.mxu0 0
          %3403 = vmatpush1.bf16.msra.mxu0 %v2770
          %3404 = vmatprep.subr.bf16.mxu0 0
          %3405 = vmatpush1.bf16.msra.mxu0 %v2773
          %3406 = vmatprep.subr.bf16.mxu0 0
          %3407 = vmatpush1.bf16.msra.mxu0 %v2776
          %3408 = vmatprep.subr.bf16.mxu0 0
          %3409 = vmatpush1.bf16.msra.mxu0 %v2779
          %3410 = vmatprep.subr.bf16.mxu0 0
          %3411 = vmatpush1.bf16.msra.mxu0 %v2782
          %3412 = vmatprep.subr.bf16.mxu0 0
          %3413 = vmatpush1.bf16.msra.mxu0 0
          %3414 = vmatprep.subr.bf16.mxu0 0
          %3415 = vmatpush1.bf16.msra.mxu0 0
          %3416 = vmatprep.subr.bf16.mxu0 0
          %3417 = vmatpush1.bf16.msra.mxu0 0
          %3418 = vmatprep.subr.bf16.mxu0 0
          %3419 = vmatpush1.bf16.msra.mxu0 0
          %3420 = vmatprep.subr.bf16.mxu0 0
          %3421 = vmatpush1.bf16.msra.mxu0 0
          %3422 = vmatprep.subr.bf16.mxu0 0
          %3423 = vmatpush1.bf16.msra.mxu0 0
          %3424 = vmatprep.subr.bf16.mxu0 0
          %3425 = vmatpush1.bf16.msra.mxu0 0
          %3426 = vmatprep.subr.bf16.mxu0 0
          %3427 = vmatpush1.bf16.msra.mxu0 0
          %3428 = vmatprep.mubr.bf16.mxu0 0
          %3429 = vmatmul.mubr.bf16.gmra.mrb[0].mxu0 %v2356
          %v3430 = vpop.f32.mrb[0].mxu0
          %v3431 = vpop.f32.mrb[0].mxu0
          %v3432 = vpop.f32.mrb[0].mxu0
          %v3433 = vpop.f32.mrb[0].mxu0
          %3434 = vmatprep.mubr.bf16.mxu0 0
          %3435 = vmatmul.mubr.bf16.gmra.mrb[0].mxu0 %v2357
          %v3436 = vpop.f32.mrb[0].mxu0
          %v3437 = vadd.f32 %v3278, %v3436
          %v3438 = vpop.f32.mrb[0].mxu0
          %v3439 = vpop.f32.mrb[0].mxu0
          %v3440 = vadd.f32 %v3281, %v3439
          %v3441 = vpop.f32.mrb[0].mxu0
          %3442 = vmatprep.mubr.bf16.mxu0 0
          %3443 = vmatmul.mubr.bf16.gmra.mrb[0].mxu0 %v2358
          %v3444 = vpop.f32.mrb[0].mxu0
          %v3445 = vadd.f32 %v3286, %v3444
          %v3446 = vpop.f32.mrb[0].mxu0
          %v3447 = vpop.f32.mrb[0].mxu0
          %v3448 = vadd.f32 %v3289, %v3447
          %v3449 = vpop.f32.mrb[0].mxu0
          %3450 = vmatprep.mubr.bf16.mxu0 0
          %3451 = vmatmul.mubr.bf16.gmra.mrb[0].mxu0 %v2359
          %v3452 = vpop.f32.mrb[0].mxu0
          %v3453 = vadd.f32 %v3294, %v3452
          %v3454 = vpop.f32.mrb[0].mxu0
          %v3455 = vpop.f32.mrb[0].mxu0
          %v3456 = vadd.f32 %v3297, %v3455
          %v3457 = vpop.f32.mrb[0].mxu0
          %3458 = vmatprep.mubr.bf16.mxu0 0
          %3459 = vmatmul.mubr.bf16.gmra.mrb[0].mxu0 %v2360
          %v3460 = vpop.f32.mrb[0].mxu0
          %v3461 = vadd.f32 %v3302, %v3460
          %v3462 = vpop.f32.mrb[0].mxu0
          %v3463 = vpop.f32.mrb[0].mxu0
          %v3464 = vadd.f32 %v3305, %v3463
          %v3465 = vpop.f32.mrb[0].mxu0
          %3466 = vmatprep.mubr.bf16.mxu0 0
          %3467 = vmatmul.mubr.bf16.gmra.mrb[0].mxu0 %v2361
          %v3468 = vpop.f32.mrb[0].mxu0
          %v3469 = vadd.f32 %v3310, %v3468
          %v3470 = vpop.f32.mrb[0].mxu0
          %v3471 = vpop.f32.mrb[0].mxu0
          %v3472 = vadd.f32 %v3313, %v3471
          %v3473 = vpop.f32.mrb[0].mxu0
          %3474 = vmatprep.mubr.bf16.mxu0 0
          %3475 = vmatmul.mubr.bf16.gmra.mrb[0].mxu0 %v2362
          %v3476 = vpop.f32.mrb[0].mxu0
          %v3477 = vadd.f32 %v3318, %v3476
          %v3478 = vpop.f32.mrb[0].mxu0
          %v3479 = vpop.f32.mrb[0].mxu0
          %v3480 = vadd.f32 %v3321, %v3479
          %v3481 = vpop.f32.mrb[0].mxu0
          %3482 = vmatprep.mubr.bf16.mxu0 0
          %3483 = vmatmul.mubr.bf16.gmra.mrb[0].mxu0 %v2363
          %v3484 = vpop.f32.mrb[0].mxu0
          %v3485 = vadd.f32 %v3326, %v3484
          %v3486 = vpop.f32.mrb[0].mxu0
          %v3487 = vpop.f32.mrb[0].mxu0
          %v3488 = vadd.f32 %v3329, %v3487
          %v3489 = vpop.f32.mrb[0].mxu0
          %3490 = vmatprep.mubr.bf16.mxu0 0
          %3491 = vmatmul.mubr.bf16.gmra.mrb[0].mxu0 %v2364
          %v3492 = vpop.f32.mrb[0].mxu0
          %v3493 = vadd.f32 %v3334, %v3492
          %v3494 = vpop.f32.mrb[0].mxu0
          %v3495 = vpop.f32.mrb[0].mxu0
          %v3496 = vadd.f32 %v3337, %v3495
          %v3497 = vpop.f32.mrb[0].mxu0
          %3498 = vmatprep.mubr.bf16.mxu0 0
          %3499 = vmatmul.mubr.bf16.gmra.mrb[0].mxu0 %v2365
          %v3500 = vpop.f32.mrb[0].mxu0
          %v3501 = vadd.f32 %v3342, %v3500
          %v3502 = vpop.f32.mrb[0].mxu0
          %v3503 = vpop.f32.mrb[0].mxu0
          %v3504 = vadd.f32 %v3345, %v3503
          %v3505 = vpop.f32.mrb[0].mxu0
          %3506 = vmatprep.mubr.bf16.mxu0 0
          %3507 = vmatmul.mubr.bf16.gmra.mrb[0].mxu0 %v2366
          %v3508 = vpop.f32.mrb[0].mxu0
          %v3509 = vadd.f32 %v3350, %v3508
          %v3510 = vpop.f32.mrb[0].mxu0
          %v3511 = vpop.f32.mrb[0].mxu0
          %v3512 = vadd.f32 %v3353, %v3511
          %v3513 = vpop.f32.mrb[0].mxu0
          %3514 = vmatprep.mubr.bf16.mxu0 0
          %3515 = vmatmul.mubr.bf16.gmra.mrb[0].mxu0 %v2367
          %v3516 = vpop.f32.mrb[0].mxu0
          %v3517 = vadd.f32 %v3358, %v3516
          %v3518 = vpop.f32.mrb[0].mxu0
          %v3519 = vpop.f32.mrb[0].mxu0
          %v3520 = vadd.f32 %v3361, %v3519
          %v3521 = vpop.f32.mrb[0].mxu0
          %3522 = vmatprep.mubr.bf16.mxu0 0
          %3523 = vmatmul.mubr.bf16.gmra.mrb[0].mxu0 %v2368
          %v3524 = vpop.f32.mrb[0].mxu0
          %v3525 = vadd.f32 %v3366, %v3524
          %v3526 = vpop.f32.mrb[0].mxu0
          %v3527 = vpop.f32.mrb[0].mxu0
          %v3528 = vadd.f32 %v3369, %v3527
          %v3529 = vpop.f32.mrb[0].mxu0
          %3530 = vmatprep.mubr.bf16.mxu0 0
          %3531 = vmatmul.mubr.bf16.gmra.mrb[0].mxu0 %v2369
          %v3532 = vpop.f32.mrb[0].mxu0
          %v3533 = vadd.f32 %v3374, %v3532
          %v3534 = vpop.f32.mrb[0].mxu0
          %v3535 = vpop.f32.mrb[0].mxu0
          %v3536 = vadd.f32 %v3377, %v3535
          %v3537 = vpop.f32.mrb[0].mxu0
          %3538 = vmatprep.mubr.bf16.mxu0 0
          %3539 = vmatmul.mubr.bf16.gmra.mrb[0].mxu0 %v2370
          %v3540 = vpop.f32.mrb[0].mxu0
          %v3541 = vadd.f32 %v3382, %v3540
          %v3542 = vpop.f32.mrb[0].mxu0
          %v3543 = vpop.f32.mrb[0].mxu0
          %v3544 = vadd.f32 %v3385, %v3543
          %v3545 = vpop.f32.mrb[0].mxu0
          %3546 = vmatprep.mubr.bf16.mxu0 0
          %3547 = vmatmul.mubr.bf16.gmra.mrb[0].mxu0 %v2371
          %v3548 = vpop.f32.mrb[0].mxu0
          %v3549 = vadd.f32 %v3390, %v3548
          %v3550 = vpop.f32.mrb[0].mxu0
          %v3551 = vpop.f32.mrb[0].mxu0
          %v3552 = vadd.f32 %v3393, %v3551
          %v3553 = vpop.f32.mrb[0].mxu0
          %3554 = vdwg.mxu0
          %v3555 = vadd.f32 %v3083, 0.0
          %v3556 = vadd.f32 %v3087, 0.0
          %v3557 = vadd.f32 %v3081, %v3093
          %v3558 = vadd.f32 %v3085, %v3097
          %v3559 = vadd.f32 %v3091, %v3103
          %v3560 = vadd.f32 %v3095, %v3107
          %v3561 = vadd.f32 %v3101, %v3113
          %v3562 = vadd.f32 %v3105, %v3117
          %v3563 = vadd.f32 %v3111, %v3123
          %v3564 = vadd.f32 %v3115, %v3127
          %v3565 = vadd.f32 %v3121, %v3133
          %v3566 = vadd.f32 %v3125, %v3137
          %v3567 = vadd.f32 %v3131, %v3143
          %v3568 = vadd.f32 %v3135, %v3147
          %v3569 = vadd.f32 %v3141, %v3153
          %v3570 = vadd.f32 %v3145, %v3157
          %v3571 = vadd.f32 %v3151, %v3163
          %v3572 = vadd.f32 %v3155, %v3167
          %v3573 = vadd.f32 %v3161, %v3173
          %v3574 = vadd.f32 %v3165, %v3177
          %v3575 = vadd.f32 %v3171, %v3183
          %v3576 = vadd.f32 %v3175, %v3187
          %v3577 = vadd.f32 %v3181, %v3193
          %v3578 = vadd.f32 %v3185, %v3197
          %v3579 = vadd.f32 %v3191, %v3203
          %v3580 = vadd.f32 %v3195, %v3207
          %v3581 = vadd.f32 %v3201, %v3213
          %v3582 = vadd.f32 %v3205, %v3217
          %v3583 = vadd.f32 %v3211, %v3223
          %v3584 = vadd.f32 %v3215, %v3227
          %v3585 = vadd.f32 %v3221, %v3232
          %v3586 = vadd.f32 %v3225, %v3235
          %v3587 = vadd.f32 %v3555, %v3437
          %v3588 = vadd.f32 %v3556, %v3440
          %v3589 = vadd.f32 %v3557, %v3445
          %v3590 = vadd.f32 %v3558, %v3448
          %v3591 = vadd.f32 %v3559, %v3453
          %v3592 = vadd.f32 %v3560, %v3456
          %v3593 = vadd.f32 %v3561, %v3461
          %v3594 = vadd.f32 %v3562, %v3464
          %v3595 = vadd.f32 %v3563, %v3469
          %v3596 = vadd.f32 %v3564, %v3472
          %v3597 = vadd.f32 %v3565, %v3477
          %v3598 = vadd.f32 %v3566, %v3480
          %v3599 = vadd.f32 %v3567, %v3485
          %v3600 = vadd.f32 %v3568, %v3488
          %v3601 = vadd.f32 %v3569, %v3493
          %v3602 = vadd.f32 %v3570, %v3496
          %v3603 = vadd.f32 %v3571, %v3501
          %v3604 = vadd.f32 %v3572, %v3504
          %v3605 = vadd.f32 %v3573, %v3509
          %v3606 = vadd.f32 %v3574, %v3512
          %v3607 = vadd.f32 %v3575, %v3517
          %v3608 = vadd.f32 %v3576, %v3520
          %v3609 = vadd.f32 %v3577, %v3525
          %v3610 = vadd.f32 %v3578, %v3528
          %v3611 = vadd.f32 %v3579, %v3533
          %v3612 = vadd.f32 %v3580, %v3536
          %v3613 = vadd.f32 %v3581, %v3541
          %v3614 = vadd.f32 %v3582, %v3544
          %v3615 = vadd.f32 %v3583, %v3549
          %v3616 = vadd.f32 %v3584, %v3552
          %v3617 = vadd.f32 %v3585, 0.0
          %v3618 = vadd.f32 %v3586, 0.0
        $region45: #{simple_net_forward.1} parent=31 // loop_footer
          %s2065 = sadd.s32 1, %s2061
        $region46: #{simple_net_forward.1} parent=31 // loop_footer_branch
          %2060 = sbr.rel target = $region42
        $region47: #{simple_net_forward.1} parent=31 // loop_exit
          _
        %v3619 = vadd.f32 %v2066, %v200
        %v3620 = vadd.f32 %v2067, %v201
        %v3621 = vadd.f32 %v2068, %v202
        %v3622 = vadd.f32 %v2069, %v203
        %v3623 = vadd.f32 %v2070, %v204
        %v3624 = vadd.f32 %v2071, %v205
        %v3625 = vadd.f32 %v2072, %v206
        %v3626 = vadd.f32 %v2073, %v207
        %v3627 = vadd.f32 %v2074, %v208
        %v3628 = vadd.f32 %v2075, %v209
        %v3629 = vadd.f32 %v2076, %v210
        %v3630 = vadd.f32 %v2077, %v211
        %v3631 = vadd.f32 %v2078, %v212
        %v3632 = vadd.f32 %v2079, %v213
        %v3633 = vadd.f32 %v2080, %v214
        %v3634 = vadd.f32 %v2081, %v215
        %v3635 = vadd.f32 %v2082, %v216
        %v3636 = vadd.f32 %v2083, %v217
        %v3637 = vadd.f32 %v2084, %v218
        %v3638 = vadd.f32 %v2085, %v219
        %v3639 = vadd.f32 %v2086, %v220
        %v3640 = vadd.f32 %v2087, %v221
        %v3641 = vadd.f32 %v2088, %v222
        %v3642 = vadd.f32 %v2089, %v223
        %v3643 = vadd.f32 %v2090, %v224
        %v3644 = vadd.f32 %v2091, %v225
        %v3645 = vadd.f32 %v2092, %v226
        %v3646 = vadd.f32 %v2093, %v227
        %v3647 = vadd.f32 %v2094, %v228
        %v3648 = vadd.f32 %v2095, %v229
        %v3649 = vadd.f32 %v2096, %v230
        %v3650 = vadd.f32 %v2097, %v231
        %vm3651 = vcmask 7168
        %3652 = vst.msk [vmem:[%s198] sm:$0xff] %vm3651, %v3619
        %3653 = vst.msk [vmem:[%s198 + $0x8] sm:$0xff] %vm3651, %v3620
        %3654 = vst.msk [vmem:[%s198 + $0x10] sm:$0xff] %vm3651, %v3621
        %3655 = vst.msk [vmem:[%s198 + $0x18] sm:$0xff] %vm3651, %v3622
        %3656 = vst.msk [vmem:[%s198 + $0x20] sm:$0xff] %vm3651, %v3623
        %3657 = vst.msk [vmem:[%s198 + $0x28] sm:$0xff] %vm3651, %v3624
        %3658 = vst.msk [vmem:[%s198 + $0x30] sm:$0xff] %vm3651, %v3625
        %3659 = vst.msk [vmem:[%s198 + $0x38] sm:$0xff] %vm3651, %v3626
        %3660 = vst.msk [vmem:[%s198 + $0x40] sm:$0xff] %vm3651, %v3627
        %3661 = vst.msk [vmem:[%s198 + $0x48] sm:$0xff] %vm3651, %v3628
        %3662 = vst.msk [vmem:[%s198 + $0x50] sm:$0xff] %vm3651, %v3629
        %3663 = vst.msk [vmem:[%s198 + $0x58] sm:$0xff] %vm3651, %v3630
        %3664 = vst.msk [vmem:[%s198 + $0x60] sm:$0xff] %vm3651, %v3631
        %3665 = vst.msk [vmem:[%s198 + $0x68] sm:$0xff] %vm3651, %v3632
        %3666 = vst.msk [vmem:[%s198 + $0x70] sm:$0xff] %vm3651, %v3633
        %3667 = vst.msk [vmem:[%s198 + $0x78] sm:$0xff] %vm3651, %v3634
        %3668 = vst.msk [vmem:[%s198 + $0x80] sm:$0xff] %vm3651, %v3635
        %3669 = vst.msk [vmem:[%s198 + $0x88] sm:$0xff] %vm3651, %v3636
        %3670 = vst.msk [vmem:[%s198 + $0x90] sm:$0xff] %vm3651, %v3637
        %3671 = vst.msk [vmem:[%s198 + $0x98] sm:$0xff] %vm3651, %v3638
        %3672 = vst.msk [vmem:[%s198 + $0xa0] sm:$0xff] %vm3651, %v3639
        %3673 = vst.msk [vmem:[%s198 + $0xa8] sm:$0xff] %vm3651, %v3640
        %3674 = vst.msk [vmem:[%s198 + $0xb0] sm:$0xff] %vm3651, %v3641
        %3675 = vst.msk [vmem:[%s198 + $0xb8] sm:$0xff] %vm3651, %v3642
        %3676 = vst.msk [vmem:[%s198 + $0xc0] sm:$0xff] %vm3651, %v3643
        %3677 = vst.msk [vmem:[%s198 + $0xc8] sm:$0xff] %vm3651, %v3644
        %3678 = vst.msk [vmem:[%s198 + $0xd0] sm:$0xff] %vm3651, %v3645
        %3679 = vst.msk [vmem:[%s198 + $0xd8] sm:$0xff] %vm3651, %v3646
        %3680 = vst.msk [vmem:[%s198 + $0xe0] sm:$0xff] %vm3651, %v3647
        %3681 = vst.msk [vmem:[%s198 + $0xe8] sm:$0xff] %vm3651, %v3648
        %3682 = vst.msk [vmem:[%s198 + $0xf0] sm:$0xff] %vm3651, %v3649
        %3683 = vst.msk [vmem:[%s198 + $0xf8] sm:$0xff] %vm3651, %v3650
        %p3684 = scmp.lt.s32.totalorder %s16, 1
        %s3685 = scalar_select %p3684, %s16, 1
        %s3686 = smul.addr %s3685, 32
        %s3687 = smul.addr %s3686, 8
        %s3688 = scalar_lea.vmem %s3, %s3687
        // Predicated region
        $region48: #{simple_net_forward.1} parent=31 // pred_check
          %p3689 = pneg %p102
        $region49: #{simple_net_forward.1} parent=31 // pred_check_branch
          %3691 = sbr.rel (%p3689) target = $region51
        $region50: #{simple_net_forward.1} parent=31 // pred_region
          _
        $region51: #{simple_net_forward.1} parent=31 // pred_fallthru
          _
      $region32: #{simple_net_forward.1} parent=5 // pred_fallthru
        _
      %p3692 = scmp.le.s32.totalorder 2, %s11
      // Predicated region
      $region52: #{simple_net_forward.1} parent=5 // pred_check
        %p3693 = pneg %p3692
      $region53: #{simple_net_forward.1} parent=5 // pred_check_branch
        %3695 = sbr.rel (%p3693) target = $region55
      $region54: #{simple_net_forward.1} parent=5 // pred_region
        %s3696 = ssub.s32 %s11, 2
        // Predicated region
        $region56: #{simple_net_forward.1} parent=54 // pred_check
          %p3697 = pneg %p108
        $region57: #{simple_net_forward.1} parent=54 // pred_check_branch
          %3699 = sbr.rel (%p3697) target = $region59
        $region58: #{simple_net_forward.1} parent=54 // pred_region
          %p3700 = scmp.lt.s32.totalorder %s17, 1
          %s3701 = scalar_select %p3700, %s17, 1
          %s3702 = smul.addr %s3701, 32
          %s3703 = smul.addr %s3702, 8
          %s3704 = scalar_lea.vmem %s3, %s3703
        $region59: #{simple_net_forward.1} parent=54 // pred_fallthru
          _
      $region55: #{simple_net_forward.1} parent=5 // pred_fallthru
        _
    $region6: #{simple_net_forward.1} parent=1 // loop_footer
      %s15 = sadd.s32 1, %s11
    $region7: #{simple_net_forward.1} parent=1 // loop_footer_branch
      %10 = sbr.rel target = $region3
    $region8: #{simple_net_forward.1} parent=1 // loop_exit
      _
    %3705 = vsyncpa [#allocation3], 1
    %s3706 = scalar_lea.sflag [#allocation3], 1
    %3707 = vsyncpa %s3706, 1
    %3708 = vsyncpa [#allocation5], 1

</llo_original>
